<compile_context>
chip_gen: v7x
topology: tpu7x:2x2x1
jax: 0.10.0
libtpu: 0.0.40
codegen_flags: <defaults>
</compile_context>

<pallas_src>
import functools

import numpy as np

import jax
import jax.numpy as jnp
from jax.experimental import pallas as pl
from jax.experimental.pallas import tpu as pltpu

EPS = 1e-5  # nn.BatchNorm2d default


def _round_up(v, m):
    return ((v + m - 1) // m) * m


def _tap_masks(N, H, W):
    """(9, N*H*W) 0/1 masks: validity of each 3x3 tap under SAME padding.

    Built with numpy at trace time (static shapes); shipped as a tiny bf16
    constant (exact for 0/1), avoiding in-kernel vector integer div/mod.
    """
    S = H * W
    sp = np.arange(N * S, dtype=np.int64) % S
    yv, xv = sp // W, sp % W
    rows = []
    for dy in range(3):
        for dx in range(3):
            ry, rx = dy - 1, dx - 1
            rows.append((yv + ry >= 0) & (yv + ry < H)
                        & (xv + rx >= 0) & (xv + rx < W))
    return np.stack(rows, axis=0).astype(np.float32)


def _conv_weight_taps(w_oihw, cp):
    """(Co, Ci, 3, 3) OIHW -> (9, Co, cp): one (Co, cp) matrix per 3x3 tap."""
    co, ci = w_oihw.shape[0], w_oihw.shape[1]
    wt = jnp.transpose(w_oihw, (2, 3, 0, 1)).reshape(9, co, ci)   # [dy*3+dx, o, c]
    wt = jnp.pad(wt, ((0, 0), (0, 0), (0, cp - ci)))              # pad channels -> cp
    return wt.astype(jnp.float32)


def _conv_bn_relu_stage(apad_ref, wt_ref, bias, gamma, beta, masks,
                        *, W, NS, lane_pad):
    """One fused 3x3-conv + bias + BatchNorm(train) + ReLU stage.

    apad_ref : (CP, lane_pad + NS + lane_pad) activation, channel-major,
               flattened spatial on lanes, zero halo on both sides.
    wt_ref   : (9, Cout, CP) per-tap weights; bias/gamma/beta: (Cout, 1).
    masks    : (9, NS) f32 edge-validity masks.
    Returns (Cout, NS) float32.
    """
    Cout = wt_ref.shape[1]

    # 9 accumulated small matmuls over masked, lane-shifted views of the
    # activation (no im2col scratch, no extra VMEM round trip).
    acc = jnp.zeros((Cout, NS), jnp.float32)
    t = 0
    for dy in range(3):
        for dx in range(3):
            start = lane_pad + (dy - 1) * W + (dx - 1)            # static offset
            tap = apad_ref[:, start:start + NS]                   # (CP, NS)
            if not (dy == 1 and dx == 1):                         # center mask == 1
                tap = tap * masks[t:t + 1, :]
            acc = acc + jnp.dot(wt_ref[t], tap,
                                preferred_element_type=jnp.float32)
            t += 1
    acc = acc + bias                                              # (Cout, NS)

    # BatchNorm2d (training): one-pass per-channel batch stats over all N*H*W.
    # TODO(synk): on large tiles, do these reductions as acc @ ones on the MXU.
    inv_n = 1.0 / NS
    mu = jnp.sum(acc, axis=1, keepdims=True) * inv_n
    var = jnp.sum(acc * acc, axis=1, keepdims=True) * inv_n - mu * mu
    var = jnp.maximum(var, 0.0)
    scale = gamma * jax.lax.rsqrt(var + EPS)                      # folded BN affine
    shift = beta - mu * scale
    return jnp.maximum(acc * scale + shift, 0.0)                  # ReLU


def conv_block_kernel(x_ref, mask_ref,
                      wt1_ref, b1_ref, g1_ref, be1_ref,
                      wt2_ref, b2_ref, g2_ref, be2_ref,
                      out_ref, apad_ref, *, W):
    N, Cin, S = x_ref.shape
    Cout = out_ref.shape[1]
    CP, WIDE = apad_ref.shape
    NS = N * S
    lane_pad = (WIDE - NS) // 2

    # Zero only what correctness needs: the two lane halos and the padded
    # channel rows of the data region (the live region is overwritten below).
    apad_ref[:, :lane_pad] = jnp.zeros((CP, lane_pad), jnp.float32)
    apad_ref[:, lane_pad + NS:] = jnp.zeros((CP, WIDE - lane_pad - NS), jnp.float32)
    c_live = min(Cin, Cout)
    if c_live < CP:
        apad_ref[c_live:, lane_pad:lane_pad + NS] = (
            jnp.zeros((CP - c_live, NS), jnp.float32))

    # NCHW input -> channel-major, flattened-spatial (lane-dense) layout,
    # written straight into the padded VMEM scratch (no XLA pad/transpose).
    for n in range(N):
        apad_ref[:Cin, lane_pad + n * S:lane_pad + (n + 1) * S] = x_ref[n]

    masks = mask_ref[...].astype(jnp.float32)                     # (9, NS), bf16->f32 once

    y1 = _conv_bn_relu_stage(apad_ref, wt1_ref, b1_ref[...], g1_ref[...],
                             be1_ref[...], masks, W=W, NS=NS, lane_pad=lane_pad)

    # Stage 2 consumes the stage-1 activation directly from VMEM (no HBM trip).
    apad_ref[:Cout, lane_pad:lane_pad + NS] = y1
    if Cout < Cin:  # rows [Cout:Cin) still hold stage-1 input -> re-zero
        apad_ref[Cout:Cin, lane_pad:lane_pad + NS] = (
            jnp.zeros((Cin - Cout, NS), jnp.float32))

    y2 = _conv_bn_relu_stage(apad_ref, wt2_ref, b2_ref[...], g2_ref[...],
                             be2_ref[...], masks, W=W, NS=NS, lane_pad=lane_pad)

    # Lane-dense, lane-aligned output stores, already in NCHW order.
    for n in range(N):
        out_ref[n] = y2[:, n * S:(n + 1) * S]


def _full_spec(shape):
    nd = len(shape)
    return pl.BlockSpec(shape, lambda i, nd=nd: (0,) * nd)


@jax.jit
def conv_block_forward(x_nchw, params):
    """conv_block forward; input/output NCHW, matching the PyTorch module."""
    N, Cin, H, W = x_nchw.shape
    Cout = params["w1"].shape[0]
    S = H * W
    NS = N * S
    CP = _round_up(max(Cin, Cout), 8)      # channel rows padded to sublane multiple
    lane_pad = _round_up(W + 1, 128)       # halo >= W+1; keeps data region lane-aligned

    x3 = x_nchw.reshape(N, Cin, S).astype(jnp.float32)            # contiguous reshape
    masks = jnp.asarray(_tap_masks(N, H, W), dtype=jnp.bfloat16)  # 0/1 exact in bf16

    # TODO(synk): at real channel counts cast weight/activation MXU operands to
    # bf16 (keep f32 accumulation and BN math); at Cout=8 it buys nothing.
    wt1 = _conv_weight_taps(params["w1"], CP)                     # (9, Cout, CP)
    wt2 = _conv_weight_taps(params["w2"], CP)
    b1 = params["b1"].reshape(Cout, 1).astype(jnp.float32)
    g1 = params["g1"].reshape(Cout, 1).astype(jnp.float32)
    be1 = params["be1"].reshape(Cout, 1).astype(jnp.float32)
    b2 = params["b2"].reshape(Cout, 1).astype(jnp.float32)
    g2 = params["g2"].reshape(Cout, 1).astype(jnp.float32)
    be2 = params["be2"].reshape(Cout, 1).astype(jnp.float32)

    args = (x3, masks, wt1, b1, g1, be1, wt2, b2, g2, be2)

    out3 = pl.pallas_call(
        functools.partial(conv_block_kernel, W=W),
        out_shape=jax.ShapeDtypeStruct((N, Cout, S), jnp.float32),
        grid=(1,),
        in_specs=[_full_spec(a.shape) for a in args],
        out_specs=_full_spec((N, Cout, S)),
        scratch_shapes=[
            pltpu.VMEM((CP, lane_pad + NS + lane_pad), jnp.float32),  # padded activation
        ],
        compiler_params=pltpu.CompilerParams(
            dimension_semantics=("arbitrary",),
            vmem_limit_bytes=32 * 1024 * 1024),   # same budget on v5e/v6e/v7x
    )(*args)

    return out3.reshape(N, Cout, H, W)            # contiguous reshape back to NCHW


# ----------------------- pure-JAX reference (for checking) -----------------------
def _ref_stage(x, w, b, gamma, beta):
    y = jax.lax.conv_general_dilated(
        x, w, window_strides=(1, 1), padding=((1, 1), (1, 1)),
        dimension_numbers=("NCHW", "OIHW", "NCHW"))
    y = y + b[None, :, None, None]
    mu = jnp.mean(y, axis=(0, 2, 3), keepdims=True)
    var = jnp.mean((y - mu) ** 2, axis=(0, 2, 3), keepdims=True)
    y = (y - mu) / jnp.sqrt(var + EPS) * gamma[None, :, None, None] \
        + beta[None, :, None, None]
    return jnp.maximum(y, 0.0)


def conv_block_reference(x, params):
    x = _ref_stage(x, params["w1"], params["b1"], params["g1"], params["be1"])
    x = _ref_stage(x, params["w2"], params["b2"], params["g2"], params["be2"])
    return x


if __name__ == "__main__":
    # Small shapes consistent with the module: in_ch=4, out_ch=8, 16x16 images.
    N, Cin, Cout, H, W = 2, 4, 8, 16, 16

    key = jax.random.PRNGKey(0)
    ks = jax.random.split(key, 9)
    params = {
        "w1": 0.1 * jax.random.normal(ks[0], (Cout, Cin, 3, 3), jnp.float32),
        "b1": 0.1 * jax.random.normal(ks[1], (Cout,), jnp.float32),
        "g1": 1.0 + 0.1 * jax.random.normal(ks[2], (Cout,), jnp.float32),
        "be1": 0.1 * jax.random.normal(ks[3], (Cout,), jnp.float32),
        "w2": 0.1 * jax.random.normal(ks[4], (Cout, Cout, 3, 3), jnp.float32),
        "b2": 0.1 * jax.random.normal(ks[5], (Cout,), jnp.float32),
        "g2": 1.0 + 0.1 * jax.random.normal(ks[6], (Cout,), jnp.float32),
        "be2": 0.1 * jax.random.normal(ks[7], (Cout,), jnp.float32),
    }
    x = jax.random.normal(ks[8], (N, Cin, H, W), jnp.float32)

    out = jax.block_until_ready(conv_block_forward(x, params))
    ref = jax.block_until_ready(conv_block_reference(x, params))

    assert out.shape == (N, Cout, H, W), out.shape
    err = float(jnp.max(jnp.abs(out - ref)))
    assert jnp.allclose(out, ref, atol=3e-4, rtol=3e-4), f"max abs err {err}"

    print("KERNEL_OK")
</pallas_src>

<mosaic_0001>
module attributes {stable_mosaic.version = 11 : i64} {
  func.func @conv_block_kernel(%arg0: i32, %arg1: memref<2x4x256xf32, #tpu.memory_space<vmem>>, %arg2: memref<9x512xbf16, #tpu.memory_space<vmem>>, %arg3: memref<9x8x8xf32, #tpu.memory_space<vmem>>, %arg4: memref<8x1xf32, #tpu.memory_space<vmem>>, %arg5: memref<8x1xf32, #tpu.memory_space<vmem>>, %arg6: memref<8x1xf32, #tpu.memory_space<vmem>>, %arg7: memref<9x8x8xf32, #tpu.memory_space<vmem>>, %arg8: memref<8x1xf32, #tpu.memory_space<vmem>>, %arg9: memref<8x1xf32, #tpu.memory_space<vmem>>, %arg10: memref<8x1xf32, #tpu.memory_space<vmem>>, %arg11: memref<2x8x256xf32, #tpu.memory_space<vmem>>, %arg12: memref<8x768xf32, #tpu.memory_space<vmem>>) attributes {dimension_semantics = [#tpu.dimension_semantics<arbitrary>], iteration_bounds = array<i64: 1>, scalar_prefetch = 0 : i64, scratch_operands = 1 : i64, tpu.core_type = #tpu.core_type<tc>, window_params = [{pipeline_mode = #tpu.pipeline_mode<synchronous>, transform_indices = @transform_0, window_bounds = array<i64: 2, 4, 256>}, {pipeline_mode = #tpu.pipeline_mode<synchronous>, transform_indices = @transform_1, window_bounds = array<i64: 9, 512>}, {pipeline_mode = #tpu.pipeline_mode<synchronous>, transform_indices = @transform_2, window_bounds = array<i64: 9, 8, 8>}, {pipeline_mode = #tpu.pipeline_mode<synchronous>, transform_indices = @transform_3, window_bounds = array<i64: 8, 1>}, {pipeline_mode = #tpu.pipeline_mode<synchronous>, transform_indices = @transform_4, window_bounds = array<i64: 8, 1>}, {pipeline_mode = #tpu.pipeline_mode<synchronous>, transform_indices = @transform_5, window_bounds = array<i64: 8, 1>}, {pipeline_mode = #tpu.pipeline_mode<synchronous>, transform_indices = @transform_6, window_bounds = array<i64: 9, 8, 8>}, {pipeline_mode = #tpu.pipeline_mode<synchronous>, transform_indices = @transform_7, window_bounds = array<i64: 8, 1>}, {pipeline_mode = #tpu.pipeline_mode<synchronous>, transform_indices = @transform_8, window_bounds = array<i64: 8, 1>}, {pipeline_mode = #tpu.pipeline_mode<synchronous>, transform_indices = @transform_9, window_bounds = array<i64: 8, 1>}, {pipeline_mode = #tpu.pipeline_mode<synchronous>, transform_indices = @transform_10, window_bounds = array<i64: 2, 8, 256>}]} {
    %cst = arith.constant 0.000000e+00 : f32
    %0 = vector.broadcast %cst : f32 to vector<8x128xf32>
    %c0 = arith.constant 0 : index
    %c0_0 = arith.constant 0 : index
    %1 = vector.load %arg12[%c0, %c0_0] : memref<8x768xf32, #tpu.memory_space<vmem>>, vector<8x128xf32>
    tpu.vector_store %arg12[%c0, %c0_0], %0 {strides = array<i32>} : memref<8x768xf32, #tpu.memory_space<vmem>>, vector<8x128xf32>,
    %cst_1 = arith.constant 0.000000e+00 : f32
    %2 = vector.broadcast %cst_1 : f32 to vector<8x128xf32>
    %c0_2 = arith.constant 0 : index
    %c640 = arith.constant 640 : index
    %3 = vector.load %arg12[%c0_2, %c640] : memref<8x768xf32, #tpu.memory_space<vmem>>, vector<8x128xf32>
    tpu.vector_store %arg12[%c0_2, %c640], %2 {strides = array<i32>} : memref<8x768xf32, #tpu.memory_space<vmem>>, vector<8x128xf32>,
    %cst_3 = arith.constant 0.000000e+00 : f32
    %4 = vector.broadcast %cst_3 : f32 to vector<4x512xf32>
    %c4 = arith.constant 4 : index
    %c128 = arith.constant 128 : index
    %5 = vector.load %arg12[%c4, %c128] : memref<8x768xf32, #tpu.memory_space<vmem>>, vector<4x512xf32>
    tpu.vector_store %arg12[%c4, %c128], %4 {strides = array<i32>} : memref<8x768xf32, #tpu.memory_space<vmem>>, vector<4x512xf32>,
    %c0_4 = arith.constant 0 : index
    %c0_5 = arith.constant 0 : index
    %c0_6 = arith.constant 0 : index
    %6 = vector.load %arg1[%c0_4, %c0_5, %c0_6] : memref<2x4x256xf32, #tpu.memory_space<vmem>>, vector<1x4x256xf32>
    %7 = vector.shape_cast %6 : vector<1x4x256xf32> to vector<4x256xf32>
    %c0_7 = arith.constant 0 : index
    %c128_8 = arith.constant 128 : index
    %8 = vector.load %arg12[%c0_7, %c128_8] : memref<8x768xf32, #tpu.memory_space<vmem>>, vector<4x256xf32>
    tpu.vector_store %arg12[%c0_7, %c128_8], %7 {strides = array<i32>} : memref<8x768xf32, #tpu.memory_space<vmem>>, vector<4x256xf32>,
    %c1 = arith.constant 1 : index
    %c0_9 = arith.constant 0 : index
    %c0_10 = arith.constant 0 : index
    %9 = vector.load %arg1[%c1, %c0_9, %c0_10] : memref<2x4x256xf32, #tpu.memory_space<vmem>>, vector<1x4x256xf32>
    %10 = vector.shape_cast %9 : vector<1x4x256xf32> to vector<4x256xf32>
    %c0_11 = arith.constant 0 : index
    %c384 = arith.constant 384 : index
    %11 = vector.load %arg12[%c0_11, %c384] : memref<8x768xf32, #tpu.memory_space<vmem>>, vector<4x256xf32>
    tpu.vector_store %arg12[%c0_11, %c384], %10 {strides = array<i32>} : memref<8x768xf32, #tpu.memory_space<vmem>>, vector<4x256xf32>,
    %c0_12 = arith.constant 0 : index
    %c0_13 = arith.constant 0 : index
    %12 = vector.load %arg2[%c0_12, %c0_13] : memref<9x512xbf16, #tpu.memory_space<vmem>>, vector<9x512xbf16>
    %13 = arith.extf %12 : vector<9x512xbf16> to vector<9x512xf32>
    %c0_14 = arith.constant 0 : index
    %c0_15 = arith.constant 0 : index
    %14 = vector.load %arg4[%c0_14, %c0_15] : memref<8x1xf32, #tpu.memory_space<vmem>>, vector<8x1xf32>
    %c0_16 = arith.constant 0 : index
    %c0_17 = arith.constant 0 : index
    %15 = vector.load %arg5[%c0_16, %c0_17] : memref<8x1xf32, #tpu.memory_space<vmem>>, vector<8x1xf32>
    %c0_18 = arith.constant 0 : index
    %c0_19 = arith.constant 0 : index
    %16 = vector.load %arg6[%c0_18, %c0_19] : memref<8x1xf32, #tpu.memory_space<vmem>>, vector<8x1xf32>
    %cst_20 = arith.constant 0.000000e+00 : f32
    %17 = vector.broadcast %cst_20 : f32 to vector<8x512xf32>
    %c0_21 = arith.constant 0 : index
    %c111 = arith.constant 111 : index
    %18 = vector.load %arg12[%c0_21, %c111] : memref<8x768xf32, #tpu.memory_space<vmem>>, vector<8x512xf32>
    %19 = vector.extract_strided_slice %13 {offsets = [0, 0], sizes = [1, 512], strides = [1, 1]} : vector<9x512xf32> to vector<1x512xf32>
    %20 = vector.broadcast %19 : vector<1x512xf32> to vector<8x512xf32>
    %21 = arith.mulf %18, %20 : vector<8x512xf32>
    %c0_22 = arith.constant 0 : index
    %c0_23 = arith.constant 0 : index
    %c0_24 = arith.constant 0 : index
    %22 = vector.load %arg3[%c0_22, %c0_23, %c0_24] : memref<9x8x8xf32, #tpu.memory_space<vmem>>, vector<1x8x8xf32>
    %23 = vector.shape_cast %22 : vector<1x8x8xf32> to vector<8x8xf32>
    %cst_25 = arith.constant dense<0.000000e+00> : vector<8x512xf32>
    %24 = tpu.matmul %23, %21, %cst_25 {dimension_numbers = #tpu.dot_dimension_numbers<[1], [0], [0], [1], [0, 0, 1, 1], [], []>} : vector<8x8xf32>, vector<8x512xf32>, vector<8x512xf32> -> vector<8x512xf32>
    %25 = arith.addf %17, %24 : vector<8x512xf32>
    %c0_26 = arith.constant 0 : index
    %c112 = arith.constant 112 : index
    %26 = vector.load %arg12[%c0_26, %c112] : memref<8x768xf32, #tpu.memory_space<vmem>>, vector<8x512xf32>
    %27 = vector.extract_strided_slice %13 {offsets = [1, 0], sizes = [1, 512], strides = [1, 1]} : vector<9x512xf32> to vector<1x512xf32>
    %28 = vector.broadcast %27 : vector<1x512xf32> to vector<8x512xf32>
    %29 = arith.mulf %26, %28 : vector<8x512xf32>
    %c1_27 = arith.constant 1 : index
    %c0_28 = arith.constant 0 : index
    %c0_29 = arith.constant 0 : index
    %30 = vector.load %arg3[%c1_27, %c0_28, %c0_29] : memref<9x8x8xf32, #tpu.memory_space<vmem>>, vector<1x8x8xf32>
    %31 = vector.shape_cast %30 : vector<1x8x8xf32> to vector<8x8xf32>
    %cst_30 = arith.constant dense<0.000000e+00> : vector<8x512xf32>
    %32 = tpu.matmul %31, %29, %cst_30 {dimension_numbers = #tpu.dot_dimension_numbers<[1], [0], [0], [1], [0, 0, 1, 1], [], []>} : vector<8x8xf32>, vector<8x512xf32>, vector<8x512xf32> -> vector<8x512xf32>
    %33 = arith.addf %25, %32 : vector<8x512xf32>
    %c0_31 = arith.constant 0 : index
    %c113 = arith.constant 113 : index
    %34 = vector.load %arg12[%c0_31, %c113] : memref<8x768xf32, #tpu.memory_space<vmem>>, vector<8x512xf32>
    %35 = vector.extract_strided_slice %13 {offsets = [2, 0], sizes = [1, 512], strides = [1, 1]} : vector<9x512xf32> to vector<1x512xf32>
    %36 = vector.broadcast %35 : vector<1x512xf32> to vector<8x512xf32>
    %37 = arith.mulf %34, %36 : vector<8x512xf32>
    %c2 = arith.constant 2 : index
    %c0_32 = arith.constant 0 : index
    %c0_33 = arith.constant 0 : index
    %38 = vector.load %arg3[%c2, %c0_32, %c0_33] : memref<9x8x8xf32, #tpu.memory_space<vmem>>, vector<1x8x8xf32>
    %39 = vector.shape_cast %38 : vector<1x8x8xf32> to vector<8x8xf32>
    %cst_34 = arith.constant dense<0.000000e+00> : vector<8x512xf32>
    %40 = tpu.matmul %39, %37, %cst_34 {dimension_numbers = #tpu.dot_dimension_numbers<[1], [0], [0], [1], [0, 0, 1, 1], [], []>} : vector<8x8xf32>, vector<8x512xf32>, vector<8x512xf32> -> vector<8x512xf32>
    %41 = arith.addf %33, %40 : vector<8x512xf32>
    %c0_35 = arith.constant 0 : index
    %c127 = arith.constant 127 : index
    %42 = vector.load %arg12[%c0_35, %c127] : memref<8x768xf32, #tpu.memory_space<vmem>>, vector<8x512xf32>
    %43 = vector.extract_strided_slice %13 {offsets = [3, 0], sizes = [1, 512], strides = [1, 1]} : vector<9x512xf32> to vector<1x512xf32>
    %44 = vector.broadcast %43 : vector<1x512xf32> to vector<8x512xf32>
    %45 = arith.mulf %42, %44 : vector<8x512xf32>
    %c3 = arith.constant 3 : index
    %c0_36 = arith.constant 0 : index
    %c0_37 = arith.constant 0 : index
    %46 = vector.load %arg3[%c3, %c0_36, %c0_37] : memref<9x8x8xf32, #tpu.memory_space<vmem>>, vector<1x8x8xf32>
    %47 = vector.shape_cast %46 : vector<1x8x8xf32> to vector<8x8xf32>
    %cst_38 = arith.constant dense<0.000000e+00> : vector<8x512xf32>
    %48 = tpu.matmul %47, %45, %cst_38 {dimension_numbers = #tpu.dot_dimension_numbers<[1], [0], [0], [1], [0, 0, 1, 1], [], []>} : vector<8x8xf32>, vector<8x512xf32>, vector<8x512xf32> -> vector<8x512xf32>
    %49 = arith.addf %41, %48 : vector<8x512xf32>
    %c0_39 = arith.constant 0 : index
    %c128_40 = arith.constant 128 : index
    %50 = vector.load %arg12[%c0_39, %c128_40] : memref<8x768xf32, #tpu.memory_space<vmem>>, vector<8x512xf32>
    %c4_41 = arith.constant 4 : index
    %c0_42 = arith.constant 0 : index
    %c0_43 = arith.constant 0 : index
    %51 = vector.load %arg3[%c4_41, %c0_42, %c0_43] : memref<9x8x8xf32, #tpu.memory_space<vmem>>, vector<1x8x8xf32>
    %52 = vector.shape_cast %51 : vector<1x8x8xf32> to vector<8x8xf32>
    %cst_44 = arith.constant dense<0.000000e+00> : vector<8x512xf32>
    %53 = tpu.matmul %52, %50, %cst_44 {dimension_numbers = #tpu.dot_dimension_numbers<[1], [0], [0], [1], [0, 0, 1, 1], [], []>} : vector<8x8xf32>, vector<8x512xf32>, vector<8x512xf32> -> vector<8x512xf32>
    %54 = arith.addf %49, %53 : vector<8x512xf32>
    %c0_45 = arith.constant 0 : index
    %c129 = arith.constant 129 : index
    %55 = vector.load %arg12[%c0_45, %c129] : memref<8x768xf32, #tpu.memory_space<vmem>>, vector<8x512xf32>
    %56 = vector.extract_strided_slice %13 {offsets = [5, 0], sizes = [1, 512], strides = [1, 1]} : vector<9x512xf32> to vector<1x512xf32>
    %57 = vector.broadcast %56 : vector<1x512xf32> to vector<8x512xf32>
    %58 = arith.mulf %55, %57 : vector<8x512xf32>
    %c5 = arith.constant 5 : index
    %c0_46 = arith.constant 0 : index
    %c0_47 = arith.constant 0 : index
    %59 = vector.load %arg3[%c5, %c0_46, %c0_47] : memref<9x8x8xf32, #tpu.memory_space<vmem>>, vector<1x8x8xf32>
    %60 = vector.shape_cast %59 : vector<1x8x8xf32> to vector<8x8xf32>
    %cst_48 = arith.constant dense<0.000000e+00> : vector<8x512xf32>
    %61 = tpu.matmul %60, %58, %cst_48 {dimension_numbers = #tpu.dot_dimension_numbers<[1], [0], [0], [1], [0, 0, 1, 1], [], []>} : vector<8x8xf32>, vector<8x512xf32>, vector<8x512xf32> -> vector<8x512xf32>
    %62 = arith.addf %54, %61 : vector<8x512xf32>
    %c0_49 = arith.constant 0 : index
    %c143 = arith.constant 143 : index
    %63 = vector.load %arg12[%c0_49, %c143] : memref<8x768xf32, #tpu.memory_space<vmem>>, vector<8x512xf32>
    %64 = vector.extract_strided_slice %13 {offsets = [6, 0], sizes = [1, 512], strides = [1, 1]} : vector<9x512xf32> to vector<1x512xf32>
    %65 = vector.broadcast %64 : vector<1x512xf32> to vector<8x512xf32>
    %66 = arith.mulf %63, %65 : vector<8x512xf32>
    %c6 = arith.constant 6 : index
    %c0_50 = arith.constant 0 : index
    %c0_51 = arith.constant 0 : index
    %67 = vector.load %arg3[%c6, %c0_50, %c0_51] : memref<9x8x8xf32, #tpu.memory_space<vmem>>, vector<1x8x8xf32>
    %68 = vector.shape_cast %67 : vector<1x8x8xf32> to vector<8x8xf32>
    %cst_52 = arith.constant dense<0.000000e+00> : vector<8x512xf32>
    %69 = tpu.matmul %68, %66, %cst_52 {dimension_numbers = #tpu.dot_dimension_numbers<[1], [0], [0], [1], [0, 0, 1, 1], [], []>} : vector<8x8xf32>, vector<8x512xf32>, vector<8x512xf32> -> vector<8x512xf32>
    %70 = arith.addf %62, %69 : vector<8x512xf32>
    %c0_53 = arith.constant 0 : index
    %c144 = arith.constant 144 : index
    %71 = vector.load %arg12[%c0_53, %c144] : memref<8x768xf32, #tpu.memory_space<vmem>>, vector<8x512xf32>
    %72 = vector.extract_strided_slice %13 {offsets = [7, 0], sizes = [1, 512], strides = [1, 1]} : vector<9x512xf32> to vector<1x512xf32>
    %73 = vector.broadcast %72 : vector<1x512xf32> to vector<8x512xf32>
    %74 = arith.mulf %71, %73 : vector<8x512xf32>
    %c7 = arith.constant 7 : index
    %c0_54 = arith.constant 0 : index
    %c0_55 = arith.constant 0 : index
    %75 = vector.load %arg3[%c7, %c0_54, %c0_55] : memref<9x8x8xf32, #tpu.memory_space<vmem>>, vector<1x8x8xf32>
    %76 = vector.shape_cast %75 : vector<1x8x8xf32> to vector<8x8xf32>
    %cst_56 = arith.constant dense<0.000000e+00> : vector<8x512xf32>
    %77 = tpu.matmul %76, %74, %cst_56 {dimension_numbers = #tpu.dot_dimension_numbers<[1], [0], [0], [1], [0, 0, 1, 1], [], []>} : vector<8x8xf32>, vector<8x512xf32>, vector<8x512xf32> -> vector<8x512xf32>
    %78 = arith.addf %70, %77 : vector<8x512xf32>
    %c0_57 = arith.constant 0 : index
    %c145 = arith.constant 145 : index
    %79 = vector.load %arg12[%c0_57, %c145] : memref<8x768xf32, #tpu.memory_space<vmem>>, vector<8x512xf32>
    %80 = vector.extract_strided_slice %13 {offsets = [8, 0], sizes = [1, 512], strides = [1, 1]} : vector<9x512xf32> to vector<1x512xf32>
    %81 = vector.broadcast %80 : vector<1x512xf32> to vector<8x512xf32>
    %82 = arith.mulf %79, %81 : vector<8x512xf32>
    %c8 = arith.constant 8 : index
    %c0_58 = arith.constant 0 : index
    %c0_59 = arith.constant 0 : index
    %83 = vector.load %arg3[%c8, %c0_58, %c0_59] : memref<9x8x8xf32, #tpu.memory_space<vmem>>, vector<1x8x8xf32>
    %84 = vector.shape_cast %83 : vector<1x8x8xf32> to vector<8x8xf32>
    %cst_60 = arith.constant dense<0.000000e+00> : vector<8x512xf32>
    %85 = tpu.matmul %84, %82, %cst_60 {dimension_numbers = #tpu.dot_dimension_numbers<[1], [0], [0], [1], [0, 0, 1, 1], [], []>} : vector<8x8xf32>, vector<8x512xf32>, vector<8x512xf32> -> vector<8x512xf32>
    %86 = arith.addf %78, %85 : vector<8x512xf32>
    %87 = vector.broadcast %14 : vector<8x1xf32> to vector<8x512xf32>
    %88 = arith.addf %86, %87 : vector<8x512xf32>
    %cst_61 = arith.constant dense<0.000000e+00> : vector<8xf32>
    %89 = vector.multi_reduction <add>, %88, %cst_61 [1] : vector<8x512xf32> to vector<8xf32>
    %90 = vector.shape_cast %89 : vector<8xf32> to vector<8x1xf32>
    %cst_62 = arith.constant 0.001953125 : f32
    %91 = vector.broadcast %cst_62 : f32 to vector<8x1xf32>
    %92 = arith.mulf %90, %91 : vector<8x1xf32>
    %93 = arith.mulf %88, %88 : vector<8x512xf32>
    %cst_63 = arith.constant dense<0.000000e+00> : vector<8xf32>
    %94 = vector.multi_reduction <add>, %93, %cst_63 [1] : vector<8x512xf32> to vector<8xf32>
    %95 = vector.shape_cast %94 : vector<8xf32> to vector<8x1xf32>
    %cst_64 = arith.constant 0.001953125 : f32
    %96 = vector.broadcast %cst_64 : f32 to vector<8x1xf32>
    %97 = arith.mulf %95, %96 : vector<8x1xf32>
    %98 = arith.mulf %92, %92 : vector<8x1xf32>
    %99 = arith.subf %97, %98 : vector<8x1xf32>
    %cst_65 = arith.constant 0.000000e+00 : f32
    %100 = vector.broadcast %cst_65 : f32 to vector<8x1xf32>
    %101 = arith.maximumf %99, %100 : vector<8x1xf32>
    %cst_66 = arith.constant 9.99999974E-6 : f32
    %102 = vector.broadcast %cst_66 : f32 to vector<8x1xf32>
    %103 = arith.addf %101, %102 : vector<8x1xf32>
    %104 = math.rsqrt %103 : vector<8x1xf32>
    %105 = arith.mulf %15, %104 : vector<8x1xf32>
    %106 = arith.mulf %92, %105 : vector<8x1xf32>
    %107 = arith.subf %16, %106 : vector<8x1xf32>
    %108 = vector.broadcast %105 : vector<8x1xf32> to vector<8x512xf32>
    %109 = arith.mulf %88, %108 : vector<8x512xf32>
    %110 = vector.broadcast %107 : vector<8x1xf32> to vector<8x512xf32>
    %111 = arith.addf %109, %110 : vector<8x512xf32>
    %cst_67 = arith.constant 0.000000e+00 : f32
    %112 = vector.broadcast %cst_67 : f32 to vector<8x512xf32>
    %113 = arith.maximumf %111, %112 : vector<8x512xf32>
    %c0_68 = arith.constant 0 : index
    %c128_69 = arith.constant 128 : index
    %114 = vector.load %arg12[%c0_68, %c128_69] : memref<8x768xf32, #tpu.memory_space<vmem>>, vector<8x512xf32>
    tpu.vector_store %arg12[%c0_68, %c128_69], %113 {strides = array<i32>} : memref<8x768xf32, #tpu.memory_space<vmem>>, vector<8x512xf32>,
    %c0_70 = arith.constant 0 : index
    %c0_71 = arith.constant 0 : index
    %115 = vector.load %arg8[%c0_70, %c0_71] : memref<8x1xf32, #tpu.memory_space<vmem>>, vector<8x1xf32>
    %c0_72 = arith.constant 0 : index
    %c0_73 = arith.constant 0 : index
    %116 = vector.load %arg9[%c0_72, %c0_73] : memref<8x1xf32, #tpu.memory_space<vmem>>, vector<8x1xf32>
    %c0_74 = arith.constant 0 : index
    %c0_75 = arith.constant 0 : index
    %117 = vector.load %arg10[%c0_74, %c0_75] : memref<8x1xf32, #tpu.memory_space<vmem>>, vector<8x1xf32>
    %cst_76 = arith.constant 0.000000e+00 : f32
    %118 = vector.broadcast %cst_76 : f32 to vector<8x512xf32>
    %c0_77 = arith.constant 0 : index
    %c111_78 = arith.constant 111 : index
    %119 = vector.load %arg12[%c0_77, %c111_78] : memref<8x768xf32, #tpu.memory_space<vmem>>, vector<8x512xf32>
    %120 = vector.extract_strided_slice %13 {offsets = [0, 0], sizes = [1, 512], strides = [1, 1]} : vector<9x512xf32> to vector<1x512xf32>
    %121 = vector.broadcast %120 : vector<1x512xf32> to vector<8x512xf32>
    %122 = arith.mulf %119, %121 : vector<8x512xf32>
    %c0_79 = arith.constant 0 : index
    %c0_80 = arith.constant 0 : index
    %c0_81 = arith.constant 0 : index
    %123 = vector.load %arg7[%c0_79, %c0_80, %c0_81] : memref<9x8x8xf32, #tpu.memory_space<vmem>>, vector<1x8x8xf32>
    %124 = vector.shape_cast %123 : vector<1x8x8xf32> to vector<8x8xf32>
    %cst_82 = arith.constant dense<0.000000e+00> : vector<8x512xf32>
    %125 = tpu.matmul %124, %122, %cst_82 {dimension_numbers = #tpu.dot_dimension_numbers<[1], [0], [0], [1], [0, 0, 1, 1], [], []>} : vector<8x8xf32>, vector<8x512xf32>, vector<8x512xf32> -> vector<8x512xf32>
    %126 = arith.addf %118, %125 : vector<8x512xf32>
    %c0_83 = arith.constant 0 : index
    %c112_84 = arith.constant 112 : index
    %127 = vector.load %arg12[%c0_83, %c112_84] : memref<8x768xf32, #tpu.memory_space<vmem>>, vector<8x512xf32>
    %128 = vector.extract_strided_slice %13 {offsets = [1, 0], sizes = [1, 512], strides = [1, 1]} : vector<9x512xf32> to vector<1x512xf32>
    %129 = vector.broadcast %128 : vector<1x512xf32> to vector<8x512xf32>
    %130 = arith.mulf %127, %129 : vector<8x512xf32>
    %c1_85 = arith.constant 1 : index
    %c0_86 = arith.constant 0 : index
    %c0_87 = arith.constant 0 : index
    %131 = vector.load %arg7[%c1_85, %c0_86, %c0_87] : memref<9x8x8xf32, #tpu.memory_space<vmem>>, vector<1x8x8xf32>
    %132 = vector.shape_cast %131 : vector<1x8x8xf32> to vector<8x8xf32>
    %cst_88 = arith.constant dense<0.000000e+00> : vector<8x512xf32>
    %133 = tpu.matmul %132, %130, %cst_88 {dimension_numbers = #tpu.dot_dimension_numbers<[1], [0], [0], [1], [0, 0, 1, 1], [], []>} : vector<8x8xf32>, vector<8x512xf32>, vector<8x512xf32> -> vector<8x512xf32>
    %134 = arith.addf %126, %133 : vector<8x512xf32>
    %c0_89 = arith.constant 0 : index
    %c113_90 = arith.constant 113 : index
    %135 = vector.load %arg12[%c0_89, %c113_90] : memref<8x768xf32, #tpu.memory_space<vmem>>, vector<8x512xf32>
    %136 = vector.extract_strided_slice %13 {offsets = [2, 0], sizes = [1, 512], strides = [1, 1]} : vector<9x512xf32> to vector<1x512xf32>
    %137 = vector.broadcast %136 : vector<1x512xf32> to vector<8x512xf32>
    %138 = arith.mulf %135, %137 : vector<8x512xf32>
    %c2_91 = arith.constant 2 : index
    %c0_92 = arith.constant 0 : index
    %c0_93 = arith.constant 0 : index
    %139 = vector.load %arg7[%c2_91, %c0_92, %c0_93] : memref<9x8x8xf32, #tpu.memory_space<vmem>>, vector<1x8x8xf32>
    %140 = vector.shape_cast %139 : vector<1x8x8xf32> to vector<8x8xf32>
    %cst_94 = arith.constant dense<0.000000e+00> : vector<8x512xf32>
    %141 = tpu.matmul %140, %138, %cst_94 {dimension_numbers = #tpu.dot_dimension_numbers<[1], [0], [0], [1], [0, 0, 1, 1], [], []>} : vector<8x8xf32>, vector<8x512xf32>, vector<8x512xf32> -> vector<8x512xf32>
    %142 = arith.addf %134, %141 : vector<8x512xf32>
    %c0_95 = arith.constant 0 : index
    %c127_96 = arith.constant 127 : index
    %143 = vector.load %arg12[%c0_95, %c127_96] : memref<8x768xf32, #tpu.memory_space<vmem>>, vector<8x512xf32>
    %144 = vector.extract_strided_slice %13 {offsets = [3, 0], sizes = [1, 512], strides = [1, 1]} : vector<9x512xf32> to vector<1x512xf32>
    %145 = vector.broadcast %144 : vector<1x512xf32> to vector<8x512xf32>
    %146 = arith.mulf %143, %145 : vector<8x512xf32>
    %c3_97 = arith.constant 3 : index
    %c0_98 = arith.constant 0 : index
    %c0_99 = arith.constant 0 : index
    %147 = vector.load %arg7[%c3_97, %c0_98, %c0_99] : memref<9x8x8xf32, #tpu.memory_space<vmem>>, vector<1x8x8xf32>
    %148 = vector.shape_cast %147 : vector<1x8x8xf32> to vector<8x8xf32>
    %cst_100 = arith.constant dense<0.000000e+00> : vector<8x512xf32>
    %149 = tpu.matmul %148, %146, %cst_100 {dimension_numbers = #tpu.dot_dimension_numbers<[1], [0], [0], [1], [0, 0, 1, 1], [], []>} : vector<8x8xf32>, vector<8x512xf32>, vector<8x512xf32> -> vector<8x512xf32>
    %150 = arith.addf %142, %149 : vector<8x512xf32>
    %c0_101 = arith.constant 0 : index
    %c128_102 = arith.constant 128 : index
    %151 = vector.load %arg12[%c0_101, %c128_102] : memref<8x768xf32, #tpu.memory_space<vmem>>, vector<8x512xf32>
    %c4_103 = arith.constant 4 : index
    %c0_104 = arith.constant 0 : index
    %c0_105 = arith.constant 0 : index
    %152 = vector.load %arg7[%c4_103, %c0_104, %c0_105] : memref<9x8x8xf32, #tpu.memory_space<vmem>>, vector<1x8x8xf32>
    %153 = vector.shape_cast %152 : vector<1x8x8xf32> to vector<8x8xf32>
    %cst_106 = arith.constant dense<0.000000e+00> : vector<8x512xf32>
    %154 = tpu.matmul %153, %151, %cst_106 {dimension_numbers = #tpu.dot_dimension_numbers<[1], [0], [0], [1], [0, 0, 1, 1], [], []>} : vector<8x8xf32>, vector<8x512xf32>, vector<8x512xf32> -> vector<8x512xf32>
    %155 = arith.addf %150, %154 : vector<8x512xf32>
    %c0_107 = arith.constant 0 : index
    %c129_108 = arith.constant 129 : index
    %156 = vector.load %arg12[%c0_107, %c129_108] : memref<8x768xf32, #tpu.memory_space<vmem>>, vector<8x512xf32>
    %157 = vector.extract_strided_slice %13 {offsets = [5, 0], sizes = [1, 512], strides = [1, 1]} : vector<9x512xf32> to vector<1x512xf32>
    %158 = vector.broadcast %157 : vector<1x512xf32> to vector<8x512xf32>
    %159 = arith.mulf %156, %158 : vector<8x512xf32>
    %c5_109 = arith.constant 5 : index
    %c0_110 = arith.constant 0 : index
    %c0_111 = arith.constant 0 : index
    %160 = vector.load %arg7[%c5_109, %c0_110, %c0_111] : memref<9x8x8xf32, #tpu.memory_space<vmem>>, vector<1x8x8xf32>
    %161 = vector.shape_cast %160 : vector<1x8x8xf32> to vector<8x8xf32>
    %cst_112 = arith.constant dense<0.000000e+00> : vector<8x512xf32>
    %162 = tpu.matmul %161, %159, %cst_112 {dimension_numbers = #tpu.dot_dimension_numbers<[1], [0], [0], [1], [0, 0, 1, 1], [], []>} : vector<8x8xf32>, vector<8x512xf32>, vector<8x512xf32> -> vector<8x512xf32>
    %163 = arith.addf %155, %162 : vector<8x512xf32>
    %c0_113 = arith.constant 0 : index
    %c143_114 = arith.constant 143 : index
    %164 = vector.load %arg12[%c0_113, %c143_114] : memref<8x768xf32, #tpu.memory_space<vmem>>, vector<8x512xf32>
    %165 = vector.extract_strided_slice %13 {offsets = [6, 0], sizes = [1, 512], strides = [1, 1]} : vector<9x512xf32> to vector<1x512xf32>
    %166 = vector.broadcast %165 : vector<1x512xf32> to vector<8x512xf32>
    %167 = arith.mulf %164, %166 : vector<8x512xf32>
    %c6_115 = arith.constant 6 : index
    %c0_116 = arith.constant 0 : index
    %c0_117 = arith.constant 0 : index
    %168 = vector.load %arg7[%c6_115, %c0_116, %c0_117] : memref<9x8x8xf32, #tpu.memory_space<vmem>>, vector<1x8x8xf32>
    %169 = vector.shape_cast %168 : vector<1x8x8xf32> to vector<8x8xf32>
    %cst_118 = arith.constant dense<0.000000e+00> : vector<8x512xf32>
    %170 = tpu.matmul %169, %167, %cst_118 {dimension_numbers = #tpu.dot_dimension_numbers<[1], [0], [0], [1], [0, 0, 1, 1], [], []>} : vector<8x8xf32>, vector<8x512xf32>, vector<8x512xf32> -> vector<8x512xf32>
    %171 = arith.addf %163, %170 : vector<8x512xf32>
    %c0_119 = arith.constant 0 : index
    %c144_120 = arith.constant 144 : index
    %172 = vector.load %arg12[%c0_119, %c144_120] : memref<8x768xf32, #tpu.memory_space<vmem>>, vector<8x512xf32>
    %173 = vector.extract_strided_slice %13 {offsets = [7, 0], sizes = [1, 512], strides = [1, 1]} : vector<9x512xf32> to vector<1x512xf32>
    %174 = vector.broadcast %173 : vector<1x512xf32> to vector<8x512xf32>
    %175 = arith.mulf %172, %174 : vector<8x512xf32>
    %c7_121 = arith.constant 7 : index
    %c0_122 = arith.constant 0 : index
    %c0_123 = arith.constant 0 : index
    %176 = vector.load %arg7[%c7_121, %c0_122, %c0_123] : memref<9x8x8xf32, #tpu.memory_space<vmem>>, vector<1x8x8xf32>
    %177 = vector.shape_cast %176 : vector<1x8x8xf32> to vector<8x8xf32>
    %cst_124 = arith.constant dense<0.000000e+00> : vector<8x512xf32>
    %178 = tpu.matmul %177, %175, %cst_124 {dimension_numbers = #tpu.dot_dimension_numbers<[1], [0], [0], [1], [0, 0, 1, 1], [], []>} : vector<8x8xf32>, vector<8x512xf32>, vector<8x512xf32> -> vector<8x512xf32>
    %179 = arith.addf %171, %178 : vector<8x512xf32>
    %c0_125 = arith.constant 0 : index
    %c145_126 = arith.constant 145 : index
    %180 = vector.load %arg12[%c0_125, %c145_126] : memref<8x768xf32, #tpu.memory_space<vmem>>, vector<8x512xf32>
    %181 = vector.extract_strided_slice %13 {offsets = [8, 0], sizes = [1, 512], strides = [1, 1]} : vector<9x512xf32> to vector<1x512xf32>
    %182 = vector.broadcast %181 : vector<1x512xf32> to vector<8x512xf32>
    %183 = arith.mulf %180, %182 : vector<8x512xf32>
    %c8_127 = arith.constant 8 : index
    %c0_128 = arith.constant 0 : index
    %c0_129 = arith.constant 0 : index
    %184 = vector.load %arg7[%c8_127, %c0_128, %c0_129] : memref<9x8x8xf32, #tpu.memory_space<vmem>>, vector<1x8x8xf32>
    %185 = vector.shape_cast %184 : vector<1x8x8xf32> to vector<8x8xf32>
    %cst_130 = arith.constant dense<0.000000e+00> : vector<8x512xf32>
    %186 = tpu.matmul %185, %183, %cst_130 {dimension_numbers = #tpu.dot_dimension_numbers<[1], [0], [0], [1], [0, 0, 1, 1], [], []>} : vector<8x8xf32>, vector<8x512xf32>, vector<8x512xf32> -> vector<8x512xf32>
    %187 = arith.addf %179, %186 : vector<8x512xf32>
    %188 = vector.broadcast %115 : vector<8x1xf32> to vector<8x512xf32>
    %189 = arith.addf %187, %188 : vector<8x512xf32>
    %cst_131 = arith.constant dense<0.000000e+00> : vector<8xf32>
    %190 = vector.multi_reduction <add>, %189, %cst_131 [1] : vector<8x512xf32> to vector<8xf32>
    %191 = vector.shape_cast %190 : vector<8xf32> to vector<8x1xf32>
    %cst_132 = arith.constant 0.001953125 : f32
    %192 = vector.broadcast %cst_132 : f32 to vector<8x1xf32>
    %193 = arith.mulf %191, %192 : vector<8x1xf32>
    %194 = arith.mulf %189, %189 : vector<8x512xf32>
    %cst_133 = arith.constant dense<0.000000e+00> : vector<8xf32>
    %195 = vector.multi_reduction <add>, %194, %cst_133 [1] : vector<8x512xf32> to vector<8xf32>
    %196 = vector.shape_cast %195 : vector<8xf32> to vector<8x1xf32>
    %cst_134 = arith.constant 0.001953125 : f32
    %197 = vector.broadcast %cst_134 : f32 to vector<8x1xf32>
    %198 = arith.mulf %196, %197 : vector<8x1xf32>
    %199 = arith.mulf %193, %193 : vector<8x1xf32>
    %200 = arith.subf %198, %199 : vector<8x1xf32>
    %cst_135 = arith.constant 0.000000e+00 : f32
    %201 = vector.broadcast %cst_135 : f32 to vector<8x1xf32>
    %202 = arith.maximumf %200, %201 : vector<8x1xf32>
    %cst_136 = arith.constant 9.99999974E-6 : f32
    %203 = vector.broadcast %cst_136 : f32 to vector<8x1xf32>
    %204 = arith.addf %202, %203 : vector<8x1xf32>
    %205 = math.rsqrt %204 : vector<8x1xf32>
    %206 = arith.mulf %116, %205 : vector<8x1xf32>
    %207 = arith.mulf %193, %206 : vector<8x1xf32>
    %208 = arith.subf %117, %207 : vector<8x1xf32>
    %209 = vector.broadcast %206 : vector<8x1xf32> to vector<8x512xf32>
    %210 = arith.mulf %189, %209 : vector<8x512xf32>
    %211 = vector.broadcast %208 : vector<8x1xf32> to vector<8x512xf32>
    %212 = arith.addf %210, %211 : vector<8x512xf32>
    %cst_137 = arith.constant 0.000000e+00 : f32
    %213 = vector.broadcast %cst_137 : f32 to vector<8x512xf32>
    %214 = arith.maximumf %212, %213 : vector<8x512xf32>
    %215 = vector.extract_strided_slice %214 {offsets = [0, 0], sizes = [8, 256], strides = [1, 1]} : vector<8x512xf32> to vector<8x256xf32>
    %c0_138 = arith.constant 0 : index
    %c0_139 = arith.constant 0 : index
    %c0_140 = arith.constant 0 : index
    %216 = vector.load %arg11[%c0_138, %c0_139, %c0_140] : memref<2x8x256xf32, #tpu.memory_space<vmem>>, vector<1x8x256xf32>
    %217 = vector.shape_cast %216 : vector<1x8x256xf32> to vector<8x256xf32>
    %218 = vector.shape_cast %215 : vector<8x256xf32> to vector<1x8x256xf32>
    tpu.vector_store %arg11[%c0_138, %c0_139, %c0_140], %218 {strides = array<i32>} : memref<2x8x256xf32, #tpu.memory_space<vmem>>, vector<1x8x256xf32>,
    %219 = vector.extract_strided_slice %214 {offsets = [0, 256], sizes = [8, 256], strides = [1, 1]} : vector<8x512xf32> to vector<8x256xf32>
    %c1_141 = arith.constant 1 : index
    %c0_142 = arith.constant 0 : index
    %c0_143 = arith.constant 0 : index
    %220 = vector.load %arg11[%c1_141, %c0_142, %c0_143] : memref<2x8x256xf32, #tpu.memory_space<vmem>>, vector<1x8x256xf32>
    %221 = vector.shape_cast %220 : vector<1x8x256xf32> to vector<8x256xf32>
    %222 = vector.shape_cast %219 : vector<8x256xf32> to vector<1x8x256xf32>
    tpu.vector_store %arg11[%c1_141, %c0_142, %c0_143], %222 {strides = array<i32>} : memref<2x8x256xf32, #tpu.memory_space<vmem>>, vector<1x8x256xf32>,
    return
  }
  func.func @transform_0(%arg0: i32) -> (i32, i32, i32) {
    %c0_i32 = arith.constant 0 : i32
    %c0_i32_0 = arith.constant 0 : i32
    %c0_i32_1 = arith.constant 0 : i32
    %c0_i32_2 = arith.constant 0 : i32
    return %c0_i32, %c0_i32_0, %c0_i32_1 : i32, i32, i32
  }
  func.func @transform_1(%arg0: i32) -> (i32, i32) {
    %c0_i32 = arith.constant 0 : i32
    %c0_i32_0 = arith.constant 0 : i32
    %c0_i32_1 = arith.constant 0 : i32
    return %c0_i32, %c0_i32_0 : i32, i32
  }
  func.func @transform_2(%arg0: i32) -> (i32, i32, i32) {
    %c0_i32 = arith.constant 0 : i32
    %c0_i32_0 = arith.constant 0 : i32
    %c0_i32_1 = arith.constant 0 : i32
    %c0_i32_2 = arith.constant 0 : i32
    return %c0_i32, %c0_i32_0, %c0_i32_1 : i32, i32, i32
  }
  func.func @transform_3(%arg0: i32) -> (i32, i32) {
    %c0_i32 = arith.constant 0 : i32
    %c0_i32_0 = arith.constant 0 : i32
    %c0_i32_1 = arith.constant 0 : i32
    return %c0_i32, %c0_i32_0 : i32, i32
  }
  func.func @transform_4(%arg0: i32) -> (i32, i32) {
    %c0_i32 = arith.constant 0 : i32
    %c0_i32_0 = arith.constant 0 : i32
    %c0_i32_1 = arith.constant 0 : i32
    return %c0_i32, %c0_i32_0 : i32, i32
  }
  func.func @transform_5(%arg0: i32) -> (i32, i32) {
    %c0_i32 = arith.constant 0 : i32
    %c0_i32_0 = arith.constant 0 : i32
    %c0_i32_1 = arith.constant 0 : i32
    return %c0_i32, %c0_i32_0 : i32, i32
  }
  func.func @transform_6(%arg0: i32) -> (i32, i32, i32) {
    %c0_i32 = arith.constant 0 : i32
    %c0_i32_0 = arith.constant 0 : i32
    %c0_i32_1 = arith.constant 0 : i32
    %c0_i32_2 = arith.constant 0 : i32
    return %c0_i32, %c0_i32_0, %c0_i32_1 : i32, i32, i32
  }
  func.func @transform_7(%arg0: i32) -> (i32, i32) {
    %c0_i32 = arith.constant 0 : i32
    %c0_i32_0 = arith.constant 0 : i32
    %c0_i32_1 = arith.constant 0 : i32
    return %c0_i32, %c0_i32_0 : i32, i32
  }
  func.func @transform_8(%arg0: i32) -> (i32, i32) {
    %c0_i32 = arith.constant 0 : i32
    %c0_i32_0 = arith.constant 0 : i32
    %c0_i32_1 = arith.constant 0 : i32
    return %c0_i32, %c0_i32_0 : i32, i32
  }
  func.func @transform_9(%arg0: i32) -> (i32, i32) {
    %c0_i32 = arith.constant 0 : i32
    %c0_i32_0 = arith.constant 0 : i32
    %c0_i32_1 = arith.constant 0 : i32
    return %c0_i32, %c0_i32_0 : i32, i32
  }
  func.func @transform_10(%arg0: i32) -> (i32, i32, i32) {
    %c0_i32 = arith.constant 0 : i32
    %c0_i32_0 = arith.constant 0 : i32
    %c0_i32_1 = arith.constant 0 : i32
    %c0_i32_2 = arith.constant 0 : i32
    return %c0_i32, %c0_i32_0, %c0_i32_1 : i32, i32, i32
  }
}

</mosaic_0001>

<llo_original>
// kernel: conv_block_forward.1
$region0: #{conv_block_forward.1}
  #allocation0 [shape = 'u32[]', space=smem, size = 0x4, offset = 0x4, fixed_abs, tag = 'smem constant byte address 0x4 - core index']
  #allocation1 [shape = 'u32[144,128]{1,0:T(1,128)}', space=vmem, size = 0x12000, scoped, tag = 'internal scratch']
  #allocation2 [shape = 'f32[8,768]{1,0:T(8,128)}', space=vmem, size = 0x6000, scoped, tag = 'scratch operand']
  %s0 = inlined_call_operand.vmem [shape: f32[2,4,256], index: 0, kind: input, shape index: {}]
  %s1 = inlined_call_operand.vmem [shape: bf16[9,512], index: 1, kind: input, shape index: {}]
  %s2 = inlined_call_operand.vmem [shape: f32[9,8,8], index: 2, kind: input, shape index: {}]
  %s3 = inlined_call_operand.vmem [shape: f32[8,1], index: 3, kind: input, shape index: {}]
  %s4 = inlined_call_operand.vmem [shape: f32[8,1], index: 4, kind: input, shape index: {}]
  %s5 = inlined_call_operand.vmem [shape: f32[8,1], index: 5, kind: input, shape index: {}]
  %s6 = inlined_call_operand.vmem [shape: f32[9,8,8], index: 6, kind: input, shape index: {}]
  %s7 = inlined_call_operand.vmem [shape: f32[8,1], index: 7, kind: input, shape index: {}]
  %s8 = inlined_call_operand.vmem [shape: f32[8,1], index: 8, kind: input, shape index: {}]
  %s9 = inlined_call_operand.vmem [shape: f32[8,1], index: 9, kind: input, shape index: {}]
  %s10 = inlined_call_operand.vmem [shape: f32[2,8,256], index: 10, kind: output, shape index: {}]
  %s11 = sld [smem:[#allocation0]]
  $region50: #{conv_block_forward.1} parent=0
    _
  %s13 = ssub.s32 1, %s11
  %s14 = scalar_select 0, %s13, %s11
  // Predicated region
  $region2: #{conv_block_forward.1} parent=0 // pred_check
    _
  $region3: #{conv_block_forward.1} parent=0 // pred_check_branch
    %16 = sbr.rel (0) target = $region5
  $region4: #{conv_block_forward.1} parent=0 // pred_region
    _
  $region5: #{conv_block_forward.1} parent=0 // pred_fallthru
    _
  // Predicated region
  $region6: #{conv_block_forward.1} parent=0 // pred_check
    _
  $region7: #{conv_block_forward.1} parent=0 // pred_check_branch
    %18 = sbr.rel (0) target = $region9
  $region8: #{conv_block_forward.1} parent=0 // pred_region
    _
  $region9: #{conv_block_forward.1} parent=0 // pred_fallthru
    _
  // Predicated region
  $region10: #{conv_block_forward.1} parent=0 // pred_check
    _
  $region11: #{conv_block_forward.1} parent=0 // pred_check_branch
    %20 = sbr.rel (0) target = $region13
  $region12: #{conv_block_forward.1} parent=0 // pred_region
    _
  $region13: #{conv_block_forward.1} parent=0 // pred_fallthru
    _
  // Predicated region
  $region14: #{conv_block_forward.1} parent=0 // pred_check
    _
  $region15: #{conv_block_forward.1} parent=0 // pred_check_branch
    %22 = sbr.rel (0) target = $region17
  $region16: #{conv_block_forward.1} parent=0 // pred_region
    _
  $region17: #{conv_block_forward.1} parent=0 // pred_fallthru
    _
  // Predicated region
  $region18: #{conv_block_forward.1} parent=0 // pred_check
    _
  $region19: #{conv_block_forward.1} parent=0 // pred_check_branch
    %24 = sbr.rel (0) target = $region21
  $region20: #{conv_block_forward.1} parent=0 // pred_region
    _
  $region21: #{conv_block_forward.1} parent=0 // pred_fallthru
    _
  // Predicated region
  $region22: #{conv_block_forward.1} parent=0 // pred_check
    _
  $region23: #{conv_block_forward.1} parent=0 // pred_check_branch
    %26 = sbr.rel (0) target = $region25
  $region24: #{conv_block_forward.1} parent=0 // pred_region
    _
  $region25: #{conv_block_forward.1} parent=0 // pred_fallthru
    _
  // Predicated region
  $region26: #{conv_block_forward.1} parent=0 // pred_check
    _
  $region27: #{conv_block_forward.1} parent=0 // pred_check_branch
    %28 = sbr.rel (0) target = $region29
  $region28: #{conv_block_forward.1} parent=0 // pred_region
    _
  $region29: #{conv_block_forward.1} parent=0 // pred_fallthru
    _
  // Predicated region
  $region30: #{conv_block_forward.1} parent=0 // pred_check
    _
  $region31: #{conv_block_forward.1} parent=0 // pred_check_branch
    %30 = sbr.rel (0) target = $region33
  $region32: #{conv_block_forward.1} parent=0 // pred_region
    _
  $region33: #{conv_block_forward.1} parent=0 // pred_fallthru
    _
  // Predicated region
  $region34: #{conv_block_forward.1} parent=0 // pred_check
    _
  $region35: #{conv_block_forward.1} parent=0 // pred_check_branch
    %32 = sbr.rel (0) target = $region37
  $region36: #{conv_block_forward.1} parent=0 // pred_region
    _
  $region37: #{conv_block_forward.1} parent=0 // pred_fallthru
    _
  // Predicated region
  $region38: #{conv_block_forward.1} parent=0 // pred_check
    _
  $region39: #{conv_block_forward.1} parent=0 // pred_check_branch
    %34 = sbr.rel (0) target = $region41
  $region40: #{conv_block_forward.1} parent=0 // pred_region
    _
  $region41: #{conv_block_forward.1} parent=0 // pred_fallthru
    _
  %35 = vst [vmem:[#allocation2] sm:$0xff] 0.0
  %36 = vst [vmem:[#allocation2 + $0x28] sm:$0xff] 0.0
  %37 = vst [vmem:[#allocation2 + $0x8] sm:$0xf0] 0.0
  %38 = vst [vmem:[#allocation2 + $0x10] sm:$0xf0] 0.0
  %39 = vst [vmem:[#allocation2 + $0x18] sm:$0xf0] 0.0
  %40 = vst [vmem:[#allocation2 + $0x20] sm:$0xf0] 0.0
  %v41 = vld [vmem:[%s0] sm:$0xff]
  %v43 = vcombine.high %v41, %v41
  %45 = vst [vmem:[#allocation2 + $0x8] sm:$0xf] %v41
  %46 = vst [vmem:[#allocation2 + $0x10] sm:$0xf] %v43
  %s47 = scalar_lea.vmem %s0, 8
  %v48 = vld [vmem:[%s47] sm:$0xff]
  %v50 = vcombine.high %v48, %v48
  %52 = vst [vmem:[#allocation2 + $0x18] sm:$0xf] %v48
  %53 = vst [vmem:[#allocation2 + $0x20] sm:$0xf] %v50
  %v54 = vld [vmem:[%s1] sm:$0xff]
  %v55 = vld [vmem:[%s1 + $0x8] sm:$0xff]
  %v56 = vld [vmem:[%s1 + $0x10] sm:$0x11]
  %v57 = vld [vmem:[%s1 + $0x18] sm:$0x11]
  %v58 = vunpack.c.l.bf16 %v54
  %v59 = vunpack.c.h.bf16 %v54
  %v60 = vunpack.c.l.bf16 %v55
  %v61 = vunpack.c.h.bf16 %v55
  %v62 = vunpack.c.l.bf16 %v56
  %v63 = vunpack.c.h.bf16 %v56
  %v64 = vunpack.c.l.bf16 %v57
  %v65 = vunpack.c.h.bf16 %v57
  %v66 = vld [vmem:[%s3] sm:$0xff]
  %v67 = vld [vmem:[%s4] sm:$0xff]
  %v68 = vld [vmem:[%s5] sm:$0xff]
  %v69 = vld [vmem:[#allocation2] sm:$0xff]
  %v70 = vld [vmem:[#allocation2 + $0x8] sm:$0xff]
  %v71 = vld [vmem:[#allocation2 + $0x10] sm:$0xff]
  %v72 = vld [vmem:[#allocation2 + $0x18] sm:$0xff]
  %v73 = vld [vmem:[#allocation2 + $0x20] sm:$0xff]
  %v74 = vlaneseq
  %v75 = vshrl.u32 %v74, 7
  %v76 = vsub.s32 0, %v75
  %v77 = vrot.slane %v58, %v76
  %v78 = vlaneseq
  %v79 = vshrl.u32 %v78, 7
  %v80 = vsub.s32 0, %v79
  %v81 = vrot.slane %v59, %v80
  %v82 = vlaneseq
  %v83 = vshrl.u32 %v82, 7
  %v84 = vsub.s32 0, %v83
  %v85 = vrot.slane %v60, %v84
  %v86 = vlaneseq
  %v87 = vshrl.u32 %v86, 7
  %v88 = vsub.s32 0, %v87
  %v89 = vrot.slane %v61, %v88
  %94 = vrot.lane.b32.xlu0 %v77, 111
  %v95 = vpop.permute.xlu0 %94
  %96 = vrot.lane.b32.xlu0 %v81, 111
  %v97 = vpop.permute.xlu0 %96
  %98 = vrot.lane.b32.xlu0 %v85, 111
  %v99 = vpop.permute.xlu0 %98
  %100 = vrot.lane.b32.xlu0 %v89, 111
  %v101 = vpop.permute.xlu0 %100
  %vm102 = vcmask 908288
  %v103 = vsel %vm102, %v95, %v97
  %v104 = vsel %vm102, %v97, %v99
  %v105 = vsel %vm102, %v99, %v101
  %v111 = vmul.f32 %v69, %v95
  %v112 = vmul.f32 %v70, %v103
  %v113 = vmul.f32 %v71, %v104
  %v114 = vmul.f32 %v72, %v105
  %v115 = vmul.f32 %v73, %v101
  %v116 = vld [vmem:[%s2] sm:$0xff]
  %v117 = vlaneseq
  %v118 = vshrl.u32 %v117, 7
  %v119 = vsub.s32 1, %v118
  %v120 = vrot.slane %v58, %v119
  %v121 = vlaneseq
  %v122 = vshrl.u32 %v121, 7
  %v123 = vsub.s32 1, %v122
  %v124 = vrot.slane %v59, %v123
  %v125 = vlaneseq
  %v126 = vshrl.u32 %v125, 7
  %v127 = vsub.s32 1, %v126
  %v128 = vrot.slane %v60, %v127
  %v129 = vlaneseq
  %v130 = vshrl.u32 %v129, 7
  %v131 = vsub.s32 1, %v130
  %v132 = vrot.slane %v61, %v131
  %137 = vrot.lane.b32.xlu0 %v120, 112
  %v138 = vpop.permute.xlu0 %137
  %139 = vrot.lane.b32.xlu0 %v124, 112
  %v140 = vpop.permute.xlu0 %139
  %141 = vrot.lane.b32.xlu0 %v128, 112
  %v142 = vpop.permute.xlu0 %141
  %143 = vrot.lane.b32.xlu0 %v132, 112
  %v144 = vpop.permute.xlu0 %143
  %vm145 = vcmask 916480
  %v146 = vsel %vm145, %v138, %v140
  %v147 = vsel %vm145, %v140, %v142
  %v148 = vsel %vm145, %v142, %v144
  %v154 = vmul.f32 %v69, %v138
  %v155 = vmul.f32 %v70, %v146
  %v156 = vmul.f32 %v71, %v147
  %v157 = vmul.f32 %v72, %v148
  %v158 = vmul.f32 %v73, %v144
  %s159 = scalar_lea.vmem %s2, 8
  %v160 = vld [vmem:[%s159] sm:$0xff]
  %166 = vrot.lane.b32.xlu0 %v154, 16
  %v167 = vpop.permute.xlu0 %166
  %168 = vrot.lane.b32.xlu0 %v155, 16
  %v169 = vpop.permute.xlu0 %168
  %170 = vrot.lane.b32.xlu0 %v156, 16
  %v171 = vpop.permute.xlu0 %170
  %172 = vrot.lane.b32.xlu0 %v157, 16
  %v173 = vpop.permute.xlu0 %172
  %174 = vrot.lane.b32.xlu0 %v158, 16
  %v175 = vpop.permute.xlu0 %174
  %vm176 = vcmask 130048
  %v177 = vsel %vm176, %v167, %v169
  %v178 = vsel %vm176, %v169, %v171
  %v179 = vsel %vm176, %v171, %v173
  %v180 = vsel %vm176, %v173, %v175
  %vm185 = vcmask 64512
  %v187 = vsel %vm185, %v160, 0
  %189 = vmatprep.subr.mxu0 %v178
  %190 = vmatpush1.msra.mxu0 %v177
  %191 = vmatprep.subr.mxu0 0.0
  %192 = vmatpush1.msra.mxu0 0.0
  %193 = vmatprep.subr.mxu0 0.0
  %194 = vmatpush1.msra.mxu0 0.0
  %195 = vmatprep.subr.mxu0 0.0
  %196 = vmatpush1.msra.mxu0 0.0
  %197 = vmatprep.subr.mxu0 0.0
  %198 = vmatpush1.msra.mxu0 0.0
  %199 = vmatprep.subr.mxu0 0.0
  %200 = vmatpush1.msra.mxu0 0.0
  %201 = vmatprep.subr.mxu0 0.0
  %202 = vmatpush1.msra.mxu0 0.0
  %203 = vmatprep.subr.mxu0 0.0
  %204 = vmatpush1.msra.mxu0 0.0
  %205 = vmatprep.subr.mxu0 0.0
  %206 = vmatpush1.msra.mxu0 0.0
  %207 = vmatprep.subr.mxu0 0.0
  %208 = vmatpush1.msra.mxu0 0.0
  %209 = vmatprep.subr.mxu0 0.0
  %210 = vmatpush1.msra.mxu0 0.0
  %211 = vmatprep.subr.mxu0 0.0
  %212 = vmatpush1.msra.mxu0 0.0
  %213 = vmatprep.subr.mxu0 0.0
  %214 = vmatpush1.msra.mxu0 0.0
  %215 = vmatprep.subr.mxu0 0.0
  %216 = vmatpush1.msra.mxu0 0.0
  %217 = vmatprep.subr.mxu0 0.0
  %218 = vmatpush1.msra.mxu0 0.0
  %219 = vmatprep.subr.mxu0 0.0
  %220 = vmatpush1.msra.mxu0 0.0
  %221 = vmatprep.subr.mxu0 0.0
  %222 = vmatpush1.msra.mxu0 0.0
  %223 = vmatprep.subr.mxu0 0.0
  %224 = vmatpush1.msra.mxu0 0.0
  %225 = vmatprep.subr.mxu0 0.0
  %226 = vmatpush1.msra.mxu0 0.0
  %227 = vmatprep.subr.mxu0 0.0
  %228 = vmatpush1.msra.mxu0 0.0
  %229 = vmatprep.subr.mxu0 0.0
  %230 = vmatpush1.msra.mxu0 0.0
  %231 = vmatprep.subr.mxu0 0.0
  %232 = vmatpush1.msra.mxu0 0.0
  %233 = vmatprep.subr.mxu0 0.0
  %234 = vmatpush1.msra.mxu0 0.0
  %235 = vmatprep.subr.mxu0 0.0
  %236 = vmatpush1.msra.mxu0 0.0
  %237 = vmatprep.subr.mxu0 0.0
  %238 = vmatpush1.msra.mxu0 0.0
  %239 = vmatprep.subr.mxu0 0.0
  %240 = vmatpush1.msra.mxu0 0.0
  %241 = vmatprep.subr.mxu0 0.0
  %242 = vmatpush1.msra.mxu0 0.0
  %243 = vmatprep.subr.mxu0 0.0
  %244 = vmatpush1.msra.mxu0 0.0
  %245 = vmatprep.subr.mxu0 0.0
  %246 = vmatpush1.msra.mxu0 0.0
  %247 = vmatprep.subr.mxu0 0.0
  %248 = vmatpush1.msra.mxu0 0.0
  %249 = vmatprep.subr.mxu0 0.0
  %250 = vmatpush1.msra.mxu0 0.0
  %251 = vmatprep.subr.mxu0 0.0
  %252 = vmatpush1.msra.mxu0 0.0
  %253 = vmatprep.mubr.f32.mxu0 0.0
  %254 = vmatmul.mubr.f32.gmra.mrb[0].mxu0 %v187
  %v255 = vpop.f32.mrb[0].mxu0
  %v256 = vadd.f32 0.0, %v255
  %v257 = vpop.f32.mrb[0].mxu0
  %v258 = vadd.f32 0.0, %v257
  %259 = vdwg.mxu0
  %260 = vmatprep.subr.mxu0 %v180
  %261 = vmatpush1.msra.mxu0 %v179
  %262 = vmatprep.subr.mxu0 0.0
  %263 = vmatpush1.msra.mxu0 0.0
  %264 = vmatprep.subr.mxu0 0.0
  %265 = vmatpush1.msra.mxu0 0.0
  %266 = vmatprep.subr.mxu0 0.0
  %267 = vmatpush1.msra.mxu0 0.0
  %268 = vmatprep.subr.mxu0 0.0
  %269 = vmatpush1.msra.mxu0 0.0
  %270 = vmatprep.subr.mxu0 0.0
  %271 = vmatpush1.msra.mxu0 0.0
  %272 = vmatprep.subr.mxu0 0.0
  %273 = vmatpush1.msra.mxu0 0.0
  %274 = vmatprep.subr.mxu0 0.0
  %275 = vmatpush1.msra.mxu0 0.0
  %276 = vmatprep.subr.mxu0 0.0
  %277 = vmatpush1.msra.mxu0 0.0
  %278 = vmatprep.subr.mxu0 0.0
  %279 = vmatpush1.msra.mxu0 0.0
  %280 = vmatprep.subr.mxu0 0.0
  %281 = vmatpush1.msra.mxu0 0.0
  %282 = vmatprep.subr.mxu0 0.0
  %283 = vmatpush1.msra.mxu0 0.0
  %284 = vmatprep.subr.mxu0 0.0
  %285 = vmatpush1.msra.mxu0 0.0
  %286 = vmatprep.subr.mxu0 0.0
  %287 = vmatpush1.msra.mxu0 0.0
  %288 = vmatprep.subr.mxu0 0.0
  %289 = vmatpush1.msra.mxu0 0.0
  %290 = vmatprep.subr.mxu0 0.0
  %291 = vmatpush1.msra.mxu0 0.0
  %292 = vmatprep.subr.mxu0 0.0
  %293 = vmatpush1.msra.mxu0 0.0
  %294 = vmatprep.subr.mxu0 0.0
  %295 = vmatpush1.msra.mxu0 0.0
  %296 = vmatprep.subr.mxu0 0.0
  %297 = vmatpush1.msra.mxu0 0.0
  %298 = vmatprep.subr.mxu0 0.0
  %299 = vmatpush1.msra.mxu0 0.0
  %300 = vmatprep.subr.mxu0 0.0
  %301 = vmatpush1.msra.mxu0 0.0
  %302 = vmatprep.subr.mxu0 0.0
  %303 = vmatpush1.msra.mxu0 0.0
  %304 = vmatprep.subr.mxu0 0.0
  %305 = vmatpush1.msra.mxu0 0.0
  %306 = vmatprep.subr.mxu0 0.0
  %307 = vmatpush1.msra.mxu0 0.0
  %308 = vmatprep.subr.mxu0 0.0
  %309 = vmatpush1.msra.mxu0 0.0
  %310 = vmatprep.subr.mxu0 0.0
  %311 = vmatpush1.msra.mxu0 0.0
  %312 = vmatprep.subr.mxu0 0.0
  %313 = vmatpush1.msra.mxu0 0.0
  %314 = vmatprep.subr.mxu0 0.0
  %315 = vmatpush1.msra.mxu0 0.0
  %316 = vmatprep.subr.mxu0 0.0
  %317 = vmatpush1.msra.mxu0 0.0
  %318 = vmatprep.subr.mxu0 0.0
  %319 = vmatpush1.msra.mxu0 0.0
  %320 = vmatprep.subr.mxu0 0.0
  %321 = vmatpush1.msra.mxu0 0.0
  %322 = vmatprep.subr.mxu0 0.0
  %323 = vmatpush1.msra.mxu0 0.0
  %324 = vmatprep.mubr.f32.mxu0 0.0
  %325 = vmatmul.mubr.f32.gmra.mrb[0].mxu0 %v187
  %v326 = vpop.f32.mrb[0].mxu0
  %v327 = vadd.f32 0.0, %v326
  %v328 = vpop.f32.mrb[0].mxu0
  %v329 = vadd.f32 0.0, %v328
  %330 = vdwg.mxu0
  %336 = vrot.lane.b32.xlu0 %v111, 17
  %v337 = vpop.permute.xlu0 %336
  %338 = vrot.lane.b32.xlu0 %v112, 17
  %v339 = vpop.permute.xlu0 %338
  %340 = vrot.lane.b32.xlu0 %v113, 17
  %v341 = vpop.permute.xlu0 %340
  %342 = vrot.lane.b32.xlu0 %v114, 17
  %v343 = vpop.permute.xlu0 %342
  %344 = vrot.lane.b32.xlu0 %v115, 17
  %v345 = vpop.permute.xlu0 %344
  %vm346 = vcmask 138240
  %v347 = vsel %vm346, %v337, %v339
  %v348 = vsel %vm346, %v339, %v341
  %v349 = vsel %vm346, %v341, %v343
  %v350 = vsel %vm346, %v343, %v345
  %v356 = vsel %vm185, %v116, 0
  %358 = vmatprep.subr.mxu0 %v348
  %359 = vmatpush1.msra.mxu0 %v347
  %360 = vmatprep.subr.mxu0 0.0
  %361 = vmatpush1.msra.mxu0 0.0
  %362 = vmatprep.subr.mxu0 0.0
  %363 = vmatpush1.msra.mxu0 0.0
  %364 = vmatprep.subr.mxu0 0.0
  %365 = vmatpush1.msra.mxu0 0.0
  %366 = vmatprep.subr.mxu0 0.0
  %367 = vmatpush1.msra.mxu0 0.0
  %368 = vmatprep.subr.mxu0 0.0
  %369 = vmatpush1.msra.mxu0 0.0
  %370 = vmatprep.subr.mxu0 0.0
  %371 = vmatpush1.msra.mxu0 0.0
  %372 = vmatprep.subr.mxu0 0.0
  %373 = vmatpush1.msra.mxu0 0.0
  %374 = vmatprep.subr.mxu0 0.0
  %375 = vmatpush1.msra.mxu0 0.0
  %376 = vmatprep.subr.mxu0 0.0
  %377 = vmatpush1.msra.mxu0 0.0
  %378 = vmatprep.subr.mxu0 0.0
  %379 = vmatpush1.msra.mxu0 0.0
  %380 = vmatprep.subr.mxu0 0.0
  %381 = vmatpush1.msra.mxu0 0.0
  %382 = vmatprep.subr.mxu0 0.0
  %383 = vmatpush1.msra.mxu0 0.0
  %384 = vmatprep.subr.mxu0 0.0
  %385 = vmatpush1.msra.mxu0 0.0
  %386 = vmatprep.subr.mxu0 0.0
  %387 = vmatpush1.msra.mxu0 0.0
  %388 = vmatprep.subr.mxu0 0.0
  %389 = vmatpush1.msra.mxu0 0.0
  %390 = vmatprep.subr.mxu0 0.0
  %391 = vmatpush1.msra.mxu0 0.0
  %392 = vmatprep.subr.mxu0 0.0
  %393 = vmatpush1.msra.mxu0 0.0
  %394 = vmatprep.subr.mxu0 0.0
  %395 = vmatpush1.msra.mxu0 0.0
  %396 = vmatprep.subr.mxu0 0.0
  %397 = vmatpush1.msra.mxu0 0.0
  %398 = vmatprep.subr.mxu0 0.0
  %399 = vmatpush1.msra.mxu0 0.0
  %400 = vmatprep.subr.mxu0 0.0
  %401 = vmatpush1.msra.mxu0 0.0
  %402 = vmatprep.subr.mxu0 0.0
  %403 = vmatpush1.msra.mxu0 0.0
  %404 = vmatprep.subr.mxu0 0.0
  %405 = vmatpush1.msra.mxu0 0.0
  %406 = vmatprep.subr.mxu0 0.0
  %407 = vmatpush1.msra.mxu0 0.0
  %408 = vmatprep.subr.mxu0 0.0
  %409 = vmatpush1.msra.mxu0 0.0
  %410 = vmatprep.subr.mxu0 0.0
  %411 = vmatpush1.msra.mxu0 0.0
  %412 = vmatprep.subr.mxu0 0.0
  %413 = vmatpush1.msra.mxu0 0.0
  %414 = vmatprep.subr.mxu0 0.0
  %415 = vmatpush1.msra.mxu0 0.0
  %416 = vmatprep.subr.mxu0 0.0
  %417 = vmatpush1.msra.mxu0 0.0
  %418 = vmatprep.subr.mxu0 0.0
  %419 = vmatpush1.msra.mxu0 0.0
  %420 = vmatprep.subr.mxu0 0.0
  %421 = vmatpush1.msra.mxu0 0.0
  %422 = vmatprep.mubr.f32.mxu0 0.0
  %423 = vmatmul.mubr.f32.gmra.mrb[0].mxu0 %v356
  %v424 = vpop.f32.mrb[0].mxu0
  %v425 = vadd.f32 %v256, %v424
  %v426 = vpop.f32.mrb[0].mxu0
  %v427 = vadd.f32 %v258, %v426
  %428 = vdwg.mxu0
  %429 = vmatprep.subr.mxu0 %v350
  %430 = vmatpush1.msra.mxu0 %v349
  %431 = vmatprep.subr.mxu0 0.0
  %432 = vmatpush1.msra.mxu0 0.0
  %433 = vmatprep.subr.mxu0 0.0
  %434 = vmatpush1.msra.mxu0 0.0
  %435 = vmatprep.subr.mxu0 0.0
  %436 = vmatpush1.msra.mxu0 0.0
  %437 = vmatprep.subr.mxu0 0.0
  %438 = vmatpush1.msra.mxu0 0.0
  %439 = vmatprep.subr.mxu0 0.0
  %440 = vmatpush1.msra.mxu0 0.0
  %441 = vmatprep.subr.mxu0 0.0
  %442 = vmatpush1.msra.mxu0 0.0
  %443 = vmatprep.subr.mxu0 0.0
  %444 = vmatpush1.msra.mxu0 0.0
  %445 = vmatprep.subr.mxu0 0.0
  %446 = vmatpush1.msra.mxu0 0.0
  %447 = vmatprep.subr.mxu0 0.0
  %448 = vmatpush1.msra.mxu0 0.0
  %449 = vmatprep.subr.mxu0 0.0
  %450 = vmatpush1.msra.mxu0 0.0
  %451 = vmatprep.subr.mxu0 0.0
  %452 = vmatpush1.msra.mxu0 0.0
  %453 = vmatprep.subr.mxu0 0.0
  %454 = vmatpush1.msra.mxu0 0.0
  %455 = vmatprep.subr.mxu0 0.0
  %456 = vmatpush1.msra.mxu0 0.0
  %457 = vmatprep.subr.mxu0 0.0
  %458 = vmatpush1.msra.mxu0 0.0
  %459 = vmatprep.subr.mxu0 0.0
  %460 = vmatpush1.msra.mxu0 0.0
  %461 = vmatprep.subr.mxu0 0.0
  %462 = vmatpush1.msra.mxu0 0.0
  %463 = vmatprep.subr.mxu0 0.0
  %464 = vmatpush1.msra.mxu0 0.0
  %465 = vmatprep.subr.mxu0 0.0
  %466 = vmatpush1.msra.mxu0 0.0
  %467 = vmatprep.subr.mxu0 0.0
  %468 = vmatpush1.msra.mxu0 0.0
  %469 = vmatprep.subr.mxu0 0.0
  %470 = vmatpush1.msra.mxu0 0.0
  %471 = vmatprep.subr.mxu0 0.0
  %472 = vmatpush1.msra.mxu0 0.0
  %473 = vmatprep.subr.mxu0 0.0
  %474 = vmatpush1.msra.mxu0 0.0
  %475 = vmatprep.subr.mxu0 0.0
  %476 = vmatpush1.msra.mxu0 0.0
  %477 = vmatprep.subr.mxu0 0.0
  %478 = vmatpush1.msra.mxu0 0.0
  %479 = vmatprep.subr.mxu0 0.0
  %480 = vmatpush1.msra.mxu0 0.0
  %481 = vmatprep.subr.mxu0 0.0
  %482 = vmatpush1.msra.mxu0 0.0
  %483 = vmatprep.subr.mxu0 0.0
  %484 = vmatpush1.msra.mxu0 0.0
  %485 = vmatprep.subr.mxu0 0.0
  %486 = vmatpush1.msra.mxu0 0.0
  %487 = vmatprep.subr.mxu0 0.0
  %488 = vmatpush1.msra.mxu0 0.0
  %489 = vmatprep.subr.mxu0 0.0
  %490 = vmatpush1.msra.mxu0 0.0
  %491 = vmatprep.subr.mxu0 0.0
  %492 = vmatpush1.msra.mxu0 0.0
  %493 = vmatprep.mubr.f32.mxu0 0.0
  %494 = vmatmul.mubr.f32.gmra.mrb[0].mxu0 %v356
  %v495 = vpop.f32.mrb[0].mxu0
  %v496 = vadd.f32 %v327, %v495
  %v497 = vpop.f32.mrb[0].mxu0
  %v498 = vadd.f32 %v329, %v497
  %499 = vdwg.mxu0
  %v500 = vlaneseq
  %v501 = vshrl.u32 %v500, 7
  %v502 = vsub.s32 2, %v501
  %v503 = vrot.slane %v58, %v502
  %v504 = vlaneseq
  %v505 = vshrl.u32 %v504, 7
  %v506 = vsub.s32 2, %v505
  %v507 = vrot.slane %v59, %v506
  %v508 = vlaneseq
  %v509 = vshrl.u32 %v508, 7
  %v510 = vsub.s32 2, %v509
  %v511 = vrot.slane %v60, %v510
  %v512 = vlaneseq
  %v513 = vshrl.u32 %v512, 7
  %v514 = vsub.s32 2, %v513
  %v515 = vrot.slane %v61, %v514
  %520 = vrot.lane.b32.xlu0 %v503, 113
  %v521 = vpop.permute.xlu0 %520
  %522 = vrot.lane.b32.xlu0 %v507, 113
  %v523 = vpop.permute.xlu0 %522
  %524 = vrot.lane.b32.xlu0 %v511, 113
  %v525 = vpop.permute.xlu0 %524
  %526 = vrot.lane.b32.xlu0 %v515, 113
  %v527 = vpop.permute.xlu0 %526
  %vm528 = vcmask 924672
  %v529 = vsel %vm528, %v521, %v523
  %v530 = vsel %vm528, %v523, %v525
  %v531 = vsel %vm528, %v525, %v527
  %v537 = vmul.f32 %v69, %v521
  %v538 = vmul.f32 %v70, %v529
  %v539 = vmul.f32 %v71, %v530
  %v540 = vmul.f32 %v72, %v531
  %v541 = vmul.f32 %v73, %v527
  %s542 = scalar_lea.vmem %s2, 16
  %v543 = vld [vmem:[%s542] sm:$0xff]
  %549 = vrot.lane.b32.xlu0 %v537, 15
  %v550 = vpop.permute.xlu0 %549
  %551 = vrot.lane.b32.xlu0 %v538, 15
  %v552 = vpop.permute.xlu0 %551
  %553 = vrot.lane.b32.xlu0 %v539, 15
  %v554 = vpop.permute.xlu0 %553
  %555 = vrot.lane.b32.xlu0 %v540, 15
  %v556 = vpop.permute.xlu0 %555
  %557 = vrot.lane.b32.xlu0 %v541, 15
  %v558 = vpop.permute.xlu0 %557
  %vm559 = vcmask 121856
  %v560 = vsel %vm559, %v550, %v552
  %v561 = vsel %vm559, %v552, %v554
  %v562 = vsel %vm559, %v554, %v556
  %v563 = vsel %vm559, %v556, %v558
  %v569 = vsel %vm185, %v543, 0
  %571 = vmatprep.subr.mxu0 %v561
  %572 = vmatpush1.msra.mxu0 %v560
  %573 = vmatprep.subr.mxu0 0.0
  %574 = vmatpush1.msra.mxu0 0.0
  %575 = vmatprep.subr.mxu0 0.0
  %576 = vmatpush1.msra.mxu0 0.0
  %577 = vmatprep.subr.mxu0 0.0
  %578 = vmatpush1.msra.mxu0 0.0
  %579 = vmatprep.subr.mxu0 0.0
  %580 = vmatpush1.msra.mxu0 0.0
  %581 = vmatprep.subr.mxu0 0.0
  %582 = vmatpush1.msra.mxu0 0.0
  %583 = vmatprep.subr.mxu0 0.0
  %584 = vmatpush1.msra.mxu0 0.0
  %585 = vmatprep.subr.mxu0 0.0
  %586 = vmatpush1.msra.mxu0 0.0
  %587 = vmatprep.subr.mxu0 0.0
  %588 = vmatpush1.msra.mxu0 0.0
  %589 = vmatprep.subr.mxu0 0.0
  %590 = vmatpush1.msra.mxu0 0.0
  %591 = vmatprep.subr.mxu0 0.0
  %592 = vmatpush1.msra.mxu0 0.0
  %593 = vmatprep.subr.mxu0 0.0
  %594 = vmatpush1.msra.mxu0 0.0
  %595 = vmatprep.subr.mxu0 0.0
  %596 = vmatpush1.msra.mxu0 0.0
  %597 = vmatprep.subr.mxu0 0.0
  %598 = vmatpush1.msra.mxu0 0.0
  %599 = vmatprep.subr.mxu0 0.0
  %600 = vmatpush1.msra.mxu0 0.0
  %601 = vmatprep.subr.mxu0 0.0
  %602 = vmatpush1.msra.mxu0 0.0
  %603 = vmatprep.subr.mxu0 0.0
  %604 = vmatpush1.msra.mxu0 0.0
  %605 = vmatprep.subr.mxu0 0.0
  %606 = vmatpush1.msra.mxu0 0.0
  %607 = vmatprep.subr.mxu0 0.0
  %608 = vmatpush1.msra.mxu0 0.0
  %609 = vmatprep.subr.mxu0 0.0
  %610 = vmatpush1.msra.mxu0 0.0
  %611 = vmatprep.subr.mxu0 0.0
  %612 = vmatpush1.msra.mxu0 0.0
  %613 = vmatprep.subr.mxu0 0.0
  %614 = vmatpush1.msra.mxu0 0.0
  %615 = vmatprep.subr.mxu0 0.0
  %616 = vmatpush1.msra.mxu0 0.0
  %617 = vmatprep.subr.mxu0 0.0
  %618 = vmatpush1.msra.mxu0 0.0
  %619 = vmatprep.subr.mxu0 0.0
  %620 = vmatpush1.msra.mxu0 0.0
  %621 = vmatprep.subr.mxu0 0.0
  %622 = vmatpush1.msra.mxu0 0.0
  %623 = vmatprep.subr.mxu0 0.0
  %624 = vmatpush1.msra.mxu0 0.0
  %625 = vmatprep.subr.mxu0 0.0
  %626 = vmatpush1.msra.mxu0 0.0
  %627 = vmatprep.subr.mxu0 0.0
  %628 = vmatpush1.msra.mxu0 0.0
  %629 = vmatprep.subr.mxu0 0.0
  %630 = vmatpush1.msra.mxu0 0.0
  %631 = vmatprep.subr.mxu0 0.0
  %632 = vmatpush1.msra.mxu0 0.0
  %633 = vmatprep.subr.mxu0 0.0
  %634 = vmatpush1.msra.mxu0 0.0
  %635 = vmatprep.mubr.f32.mxu0 0.0
  %636 = vmatmul.mubr.f32.gmra.mrb[0].mxu0 %v569
  %v637 = vpop.f32.mrb[0].mxu0
  %v638 = vadd.f32 0.0, %v637
  %v639 = vpop.f32.mrb[0].mxu0
  %v640 = vadd.f32 0.0, %v639
  %641 = vdwg.mxu0
  %642 = vmatprep.subr.mxu0 %v563
  %643 = vmatpush1.msra.mxu0 %v562
  %644 = vmatprep.subr.mxu0 0.0
  %645 = vmatpush1.msra.mxu0 0.0
  %646 = vmatprep.subr.mxu0 0.0
  %647 = vmatpush1.msra.mxu0 0.0
  %648 = vmatprep.subr.mxu0 0.0
  %649 = vmatpush1.msra.mxu0 0.0
  %650 = vmatprep.subr.mxu0 0.0
  %651 = vmatpush1.msra.mxu0 0.0
  %652 = vmatprep.subr.mxu0 0.0
  %653 = vmatpush1.msra.mxu0 0.0
  %654 = vmatprep.subr.mxu0 0.0
  %655 = vmatpush1.msra.mxu0 0.0
  %656 = vmatprep.subr.mxu0 0.0
  %657 = vmatpush1.msra.mxu0 0.0
  %658 = vmatprep.subr.mxu0 0.0
  %659 = vmatpush1.msra.mxu0 0.0
  %660 = vmatprep.subr.mxu0 0.0
  %661 = vmatpush1.msra.mxu0 0.0
  %662 = vmatprep.subr.mxu0 0.0
  %663 = vmatpush1.msra.mxu0 0.0
  %664 = vmatprep.subr.mxu0 0.0
  %665 = vmatpush1.msra.mxu0 0.0
  %666 = vmatprep.subr.mxu0 0.0
  %667 = vmatpush1.msra.mxu0 0.0
  %668 = vmatprep.subr.mxu0 0.0
  %669 = vmatpush1.msra.mxu0 0.0
  %670 = vmatprep.subr.mxu0 0.0
  %671 = vmatpush1.msra.mxu0 0.0
  %672 = vmatprep.subr.mxu0 0.0
  %673 = vmatpush1.msra.mxu0 0.0
  %674 = vmatprep.subr.mxu0 0.0
  %675 = vmatpush1.msra.mxu0 0.0
  %676 = vmatprep.subr.mxu0 0.0
  %677 = vmatpush1.msra.mxu0 0.0
  %678 = vmatprep.subr.mxu0 0.0
  %679 = vmatpush1.msra.mxu0 0.0
  %680 = vmatprep.subr.mxu0 0.0
  %681 = vmatpush1.msra.mxu0 0.0
  %682 = vmatprep.subr.mxu0 0.0
  %683 = vmatpush1.msra.mxu0 0.0
  %684 = vmatprep.subr.mxu0 0.0
  %685 = vmatpush1.msra.mxu0 0.0
  %686 = vmatprep.subr.mxu0 0.0
  %687 = vmatpush1.msra.mxu0 0.0
  %688 = vmatprep.subr.mxu0 0.0
  %689 = vmatpush1.msra.mxu0 0.0
  %690 = vmatprep.subr.mxu0 0.0
  %691 = vmatpush1.msra.mxu0 0.0
  %692 = vmatprep.subr.mxu0 0.0
  %693 = vmatpush1.msra.mxu0 0.0
  %694 = vmatprep.subr.mxu0 0.0
  %695 = vmatpush1.msra.mxu0 0.0
  %696 = vmatprep.subr.mxu0 0.0
  %697 = vmatpush1.msra.mxu0 0.0
  %698 = vmatprep.subr.mxu0 0.0
  %699 = vmatpush1.msra.mxu0 0.0
  %700 = vmatprep.subr.mxu0 0.0
  %701 = vmatpush1.msra.mxu0 0.0
  %702 = vmatprep.subr.mxu0 0.0
  %703 = vmatpush1.msra.mxu0 0.0
  %704 = vmatprep.subr.mxu0 0.0
  %705 = vmatpush1.msra.mxu0 0.0
  %706 = vmatprep.mubr.f32.mxu0 0.0
  %707 = vmatmul.mubr.f32.gmra.mrb[0].mxu0 %v569
  %v708 = vpop.f32.mrb[0].mxu0
  %v709 = vadd.f32 0.0, %v708
  %v710 = vpop.f32.mrb[0].mxu0
  %v711 = vadd.f32 0.0, %v710
  %712 = vdwg.mxu0
  %v713 = vadd.f32 %v425, %v638
  %v714 = vadd.f32 %v427, %v640
  %v715 = vadd.f32 %v496, %v709
  %v716 = vadd.f32 %v498, %v711
  %v717 = vlaneseq
  %v718 = vshrl.u32 %v717, 7
  %v719 = vsub.s32 3, %v718
  %v720 = vrot.slane %v58, %v719
  %v721 = vlaneseq
  %v722 = vshrl.u32 %v721, 7
  %v723 = vsub.s32 3, %v722
  %v724 = vrot.slane %v59, %v723
  %v725 = vlaneseq
  %v726 = vshrl.u32 %v725, 7
  %v727 = vsub.s32 3, %v726
  %v728 = vrot.slane %v60, %v727
  %v729 = vlaneseq
  %v730 = vshrl.u32 %v729, 7
  %v731 = vsub.s32 3, %v730
  %v732 = vrot.slane %v61, %v731
  %737 = vrot.lane.b32.xlu0 %v720, 127
  %v738 = vpop.permute.xlu0 %737
  %739 = vrot.lane.b32.xlu0 %v724, 127
  %v740 = vpop.permute.xlu0 %739
  %741 = vrot.lane.b32.xlu0 %v728, 127
  %v742 = vpop.permute.xlu0 %741
  %743 = vrot.lane.b32.xlu0 %v732, 127
  %v744 = vpop.permute.xlu0 %743
  %vm745 = vcmask 1039360
  %v746 = vsel %vm745, %v738, %v740
  %v747 = vsel %vm745, %v740, %v742
  %v748 = vsel %vm745, %v742, %v744
  %v754 = vmul.f32 %v69, %v738
  %v755 = vmul.f32 %v70, %v746
  %v756 = vmul.f32 %v71, %v747
  %v757 = vmul.f32 %v72, %v748
  %v758 = vmul.f32 %v73, %v744
  %s759 = scalar_lea.vmem %s2, 24
  %v760 = vld [vmem:[%s759] sm:$0xff]
  %766 = vrot.lane.b32.xlu0 %v754, 1
  %v767 = vpop.permute.xlu0 %766
  %768 = vrot.lane.b32.xlu0 %v755, 1
  %v769 = vpop.permute.xlu0 %768
  %770 = vrot.lane.b32.xlu0 %v756, 1
  %v771 = vpop.permute.xlu0 %770
  %772 = vrot.lane.b32.xlu0 %v757, 1
  %v773 = vpop.permute.xlu0 %772
  %774 = vrot.lane.b32.xlu0 %v758, 1
  %v775 = vpop.permute.xlu0 %774
  %vm776 = vcmask 7168
  %v777 = vsel %vm776, %v767, %v769
  %v778 = vsel %vm776, %v769, %v771
  %v779 = vsel %vm776, %v771, %v773
  %v780 = vsel %vm776, %v773, %v775
  %v786 = vsel %vm185, %v760, 0
  %788 = vmatprep.subr.mxu0 %v778
  %789 = vmatpush1.msra.mxu0 %v777
  %790 = vmatprep.subr.mxu0 0.0
  %791 = vmatpush1.msra.mxu0 0.0
  %792 = vmatprep.subr.mxu0 0.0
  %793 = vmatpush1.msra.mxu0 0.0
  %794 = vmatprep.subr.mxu0 0.0
  %795 = vmatpush1.msra.mxu0 0.0
  %796 = vmatprep.subr.mxu0 0.0
  %797 = vmatpush1.msra.mxu0 0.0
  %798 = vmatprep.subr.mxu0 0.0
  %799 = vmatpush1.msra.mxu0 0.0
  %800 = vmatprep.subr.mxu0 0.0
  %801 = vmatpush1.msra.mxu0 0.0
  %802 = vmatprep.subr.mxu0 0.0
  %803 = vmatpush1.msra.mxu0 0.0
  %804 = vmatprep.subr.mxu0 0.0
  %805 = vmatpush1.msra.mxu0 0.0
  %806 = vmatprep.subr.mxu0 0.0
  %807 = vmatpush1.msra.mxu0 0.0
  %808 = vmatprep.subr.mxu0 0.0
  %809 = vmatpush1.msra.mxu0 0.0
  %810 = vmatprep.subr.mxu0 0.0
  %811 = vmatpush1.msra.mxu0 0.0
  %812 = vmatprep.subr.mxu0 0.0
  %813 = vmatpush1.msra.mxu0 0.0
  %814 = vmatprep.subr.mxu0 0.0
  %815 = vmatpush1.msra.mxu0 0.0
  %816 = vmatprep.subr.mxu0 0.0
  %817 = vmatpush1.msra.mxu0 0.0
  %818 = vmatprep.subr.mxu0 0.0
  %819 = vmatpush1.msra.mxu0 0.0
  %820 = vmatprep.subr.mxu0 0.0
  %821 = vmatpush1.msra.mxu0 0.0
  %822 = vmatprep.subr.mxu0 0.0
  %823 = vmatpush1.msra.mxu0 0.0
  %824 = vmatprep.subr.mxu0 0.0
  %825 = vmatpush1.msra.mxu0 0.0
  %826 = vmatprep.subr.mxu0 0.0
  %827 = vmatpush1.msra.mxu0 0.0
  %828 = vmatprep.subr.mxu0 0.0
  %829 = vmatpush1.msra.mxu0 0.0
  %830 = vmatprep.subr.mxu0 0.0
  %831 = vmatpush1.msra.mxu0 0.0
  %832 = vmatprep.subr.mxu0 0.0
  %833 = vmatpush1.msra.mxu0 0.0
  %834 = vmatprep.subr.mxu0 0.0
  %835 = vmatpush1.msra.mxu0 0.0
  %836 = vmatprep.subr.mxu0 0.0
  %837 = vmatpush1.msra.mxu0 0.0
  %838 = vmatprep.subr.mxu0 0.0
  %839 = vmatpush1.msra.mxu0 0.0
  %840 = vmatprep.subr.mxu0 0.0
  %841 = vmatpush1.msra.mxu0 0.0
  %842 = vmatprep.subr.mxu0 0.0
  %843 = vmatpush1.msra.mxu0 0.0
  %844 = vmatprep.subr.mxu0 0.0
  %845 = vmatpush1.msra.mxu0 0.0
  %846 = vmatprep.subr.mxu0 0.0
  %847 = vmatpush1.msra.mxu0 0.0
  %848 = vmatprep.subr.mxu0 0.0
  %849 = vmatpush1.msra.mxu0 0.0
  %850 = vmatprep.subr.mxu0 0.0
  %851 = vmatpush1.msra.mxu0 0.0
  %852 = vmatprep.mubr.f32.mxu0 0.0
  %853 = vmatmul.mubr.f32.gmra.mrb[0].mxu0 %v786
  %v854 = vpop.f32.mrb[0].mxu0
  %v855 = vadd.f32 0.0, %v854
  %v856 = vpop.f32.mrb[0].mxu0
  %v857 = vadd.f32 0.0, %v856
  %858 = vdwg.mxu0
  %859 = vmatprep.subr.mxu0 %v780
  %860 = vmatpush1.msra.mxu0 %v779
  %861 = vmatprep.subr.mxu0 0.0
  %862 = vmatpush1.msra.mxu0 0.0
  %863 = vmatprep.subr.mxu0 0.0
  %864 = vmatpush1.msra.mxu0 0.0
  %865 = vmatprep.subr.mxu0 0.0
  %866 = vmatpush1.msra.mxu0 0.0
  %867 = vmatprep.subr.mxu0 0.0
  %868 = vmatpush1.msra.mxu0 0.0
  %869 = vmatprep.subr.mxu0 0.0
  %870 = vmatpush1.msra.mxu0 0.0
  %871 = vmatprep.subr.mxu0 0.0
  %872 = vmatpush1.msra.mxu0 0.0
  %873 = vmatprep.subr.mxu0 0.0
  %874 = vmatpush1.msra.mxu0 0.0
  %875 = vmatprep.subr.mxu0 0.0
  %876 = vmatpush1.msra.mxu0 0.0
  %877 = vmatprep.subr.mxu0 0.0
  %878 = vmatpush1.msra.mxu0 0.0
  %879 = vmatprep.subr.mxu0 0.0
  %880 = vmatpush1.msra.mxu0 0.0
  %881 = vmatprep.subr.mxu0 0.0
  %882 = vmatpush1.msra.mxu0 0.0
  %883 = vmatprep.subr.mxu0 0.0
  %884 = vmatpush1.msra.mxu0 0.0
  %885 = vmatprep.subr.mxu0 0.0
  %886 = vmatpush1.msra.mxu0 0.0
  %887 = vmatprep.subr.mxu0 0.0
  %888 = vmatpush1.msra.mxu0 0.0
  %889 = vmatprep.subr.mxu0 0.0
  %890 = vmatpush1.msra.mxu0 0.0
  %891 = vmatprep.subr.mxu0 0.0
  %892 = vmatpush1.msra.mxu0 0.0
  %893 = vmatprep.subr.mxu0 0.0
  %894 = vmatpush1.msra.mxu0 0.0
  %895 = vmatprep.subr.mxu0 0.0
  %896 = vmatpush1.msra.mxu0 0.0
  %897 = vmatprep.subr.mxu0 0.0
  %898 = vmatpush1.msra.mxu0 0.0
  %899 = vmatprep.subr.mxu0 0.0
  %900 = vmatpush1.msra.mxu0 0.0
  %901 = vmatprep.subr.mxu0 0.0
  %902 = vmatpush1.msra.mxu0 0.0
  %903 = vmatprep.subr.mxu0 0.0
  %904 = vmatpush1.msra.mxu0 0.0
  %905 = vmatprep.subr.mxu0 0.0
  %906 = vmatpush1.msra.mxu0 0.0
  %907 = vmatprep.subr.mxu0 0.0
  %908 = vmatpush1.msra.mxu0 0.0
  %909 = vmatprep.subr.mxu0 0.0
  %910 = vmatpush1.msra.mxu0 0.0
  %911 = vmatprep.subr.mxu0 0.0
  %912 = vmatpush1.msra.mxu0 0.0
  %913 = vmatprep.subr.mxu0 0.0
  %914 = vmatpush1.msra.mxu0 0.0
  %915 = vmatprep.subr.mxu0 0.0
  %916 = vmatpush1.msra.mxu0 0.0
  %917 = vmatprep.subr.mxu0 0.0
  %918 = vmatpush1.msra.mxu0 0.0
  %919 = vmatprep.subr.mxu0 0.0
  %920 = vmatpush1.msra.mxu0 0.0
  %921 = vmatprep.subr.mxu0 0.0
  %922 = vmatpush1.msra.mxu0 0.0
  %923 = vmatprep.mubr.f32.mxu0 0.0
  %924 = vmatmul.mubr.f32.gmra.mrb[0].mxu0 %v786
  %v925 = vpop.f32.mrb[0].mxu0
  %v926 = vadd.f32 0.0, %v925
  %v927 = vpop.f32.mrb[0].mxu0
  %v928 = vadd.f32 0.0, %v927
  %929 = vdwg.mxu0
  %v930 = vadd.f32 %v713, %v855
  %v931 = vadd.f32 %v714, %v857
  %v932 = vadd.f32 %v715, %v926
  %v933 = vadd.f32 %v716, %v928
  %s934 = scalar_lea.vmem %s2, 32
  %v935 = vld [vmem:[%s934] sm:$0xff]
  %v937 = vsel %vm185, %v935, 0
  %939 = vmatprep.subr.mxu0 %v71
  %940 = vmatpush1.msra.mxu0 %v70
  %941 = vmatprep.subr.mxu0 0.0
  %942 = vmatpush1.msra.mxu0 0.0
  %943 = vmatprep.subr.mxu0 0.0
  %944 = vmatpush1.msra.mxu0 0.0
  %945 = vmatprep.subr.mxu0 0.0
  %946 = vmatpush1.msra.mxu0 0.0
  %947 = vmatprep.subr.mxu0 0.0
  %948 = vmatpush1.msra.mxu0 0.0
  %949 = vmatprep.subr.mxu0 0.0
  %950 = vmatpush1.msra.mxu0 0.0
  %951 = vmatprep.subr.mxu0 0.0
  %952 = vmatpush1.msra.mxu0 0.0
  %953 = vmatprep.subr.mxu0 0.0
  %954 = vmatpush1.msra.mxu0 0.0
  %955 = vmatprep.subr.mxu0 0.0
  %956 = vmatpush1.msra.mxu0 0.0
  %957 = vmatprep.subr.mxu0 0.0
  %958 = vmatpush1.msra.mxu0 0.0
  %959 = vmatprep.subr.mxu0 0.0
  %960 = vmatpush1.msra.mxu0 0.0
  %961 = vmatprep.subr.mxu0 0.0
  %962 = vmatpush1.msra.mxu0 0.0
  %963 = vmatprep.subr.mxu0 0.0
  %964 = vmatpush1.msra.mxu0 0.0
  %965 = vmatprep.subr.mxu0 0.0
  %966 = vmatpush1.msra.mxu0 0.0
  %967 = vmatprep.subr.mxu0 0.0
  %968 = vmatpush1.msra.mxu0 0.0
  %969 = vmatprep.subr.mxu0 0.0
  %970 = vmatpush1.msra.mxu0 0.0
  %971 = vmatprep.subr.mxu0 0.0
  %972 = vmatpush1.msra.mxu0 0.0
  %973 = vmatprep.subr.mxu0 0.0
  %974 = vmatpush1.msra.mxu0 0.0
  %975 = vmatprep.subr.mxu0 0.0
  %976 = vmatpush1.msra.mxu0 0.0
  %977 = vmatprep.subr.mxu0 0.0
  %978 = vmatpush1.msra.mxu0 0.0
  %979 = vmatprep.subr.mxu0 0.0
  %980 = vmatpush1.msra.mxu0 0.0
  %981 = vmatprep.subr.mxu0 0.0
  %982 = vmatpush1.msra.mxu0 0.0
  %983 = vmatprep.subr.mxu0 0.0
  %984 = vmatpush1.msra.mxu0 0.0
  %985 = vmatprep.subr.mxu0 0.0
  %986 = vmatpush1.msra.mxu0 0.0
  %987 = vmatprep.subr.mxu0 0.0
  %988 = vmatpush1.msra.mxu0 0.0
  %989 = vmatprep.subr.mxu0 0.0
  %990 = vmatpush1.msra.mxu0 0.0
  %991 = vmatprep.subr.mxu0 0.0
  %992 = vmatpush1.msra.mxu0 0.0
  %993 = vmatprep.subr.mxu0 0.0
  %994 = vmatpush1.msra.mxu0 0.0
  %995 = vmatprep.subr.mxu0 0.0
  %996 = vmatpush1.msra.mxu0 0.0
  %997 = vmatprep.subr.mxu0 0.0
  %998 = vmatpush1.msra.mxu0 0.0
  %999 = vmatprep.subr.mxu0 0.0
  %1000 = vmatpush1.msra.mxu0 0.0
  %1001 = vmatprep.subr.mxu0 0.0
  %1002 = vmatpush1.msra.mxu0 0.0
  %1003 = vmatprep.mubr.f32.mxu0 0.0
  %1004 = vmatmul.mubr.f32.gmra.mrb[0].mxu0 %v937
  %v1005 = vpop.f32.mrb[0].mxu0
  %v1006 = vadd.f32 0.0, %v1005
  %v1007 = vpop.f32.mrb[0].mxu0
  %v1008 = vadd.f32 0.0, %v1007
  %1009 = vdwg.mxu0
  %1010 = vmatprep.subr.mxu0 %v73
  %1011 = vmatpush1.msra.mxu0 %v72
  %1012 = vmatprep.subr.mxu0 0.0
  %1013 = vmatpush1.msra.mxu0 0.0
  %1014 = vmatprep.subr.mxu0 0.0
  %1015 = vmatpush1.msra.mxu0 0.0
  %1016 = vmatprep.subr.mxu0 0.0
  %1017 = vmatpush1.msra.mxu0 0.0
  %1018 = vmatprep.subr.mxu0 0.0
  %1019 = vmatpush1.msra.mxu0 0.0
  %1020 = vmatprep.subr.mxu0 0.0
  %1021 = vmatpush1.msra.mxu0 0.0
  %1022 = vmatprep.subr.mxu0 0.0
  %1023 = vmatpush1.msra.mxu0 0.0
  %1024 = vmatprep.subr.mxu0 0.0
  %1025 = vmatpush1.msra.mxu0 0.0
  %1026 = vmatprep.subr.mxu0 0.0
  %1027 = vmatpush1.msra.mxu0 0.0
  %1028 = vmatprep.subr.mxu0 0.0
  %1029 = vmatpush1.msra.mxu0 0.0
  %1030 = vmatprep.subr.mxu0 0.0
  %1031 = vmatpush1.msra.mxu0 0.0
  %1032 = vmatprep.subr.mxu0 0.0
  %1033 = vmatpush1.msra.mxu0 0.0
  %1034 = vmatprep.subr.mxu0 0.0
  %1035 = vmatpush1.msra.mxu0 0.0
  %1036 = vmatprep.subr.mxu0 0.0
  %1037 = vmatpush1.msra.mxu0 0.0
  %1038 = vmatprep.subr.mxu0 0.0
  %1039 = vmatpush1.msra.mxu0 0.0
  %1040 = vmatprep.subr.mxu0 0.0
  %1041 = vmatpush1.msra.mxu0 0.0
  %1042 = vmatprep.subr.mxu0 0.0
  %1043 = vmatpush1.msra.mxu0 0.0
  %1044 = vmatprep.subr.mxu0 0.0
  %1045 = vmatpush1.msra.mxu0 0.0
  %1046 = vmatprep.subr.mxu0 0.0
  %1047 = vmatpush1.msra.mxu0 0.0
  %1048 = vmatprep.subr.mxu0 0.0
  %1049 = vmatpush1.msra.mxu0 0.0
  %1050 = vmatprep.subr.mxu0 0.0
  %1051 = vmatpush1.msra.mxu0 0.0
  %1052 = vmatprep.subr.mxu0 0.0
  %1053 = vmatpush1.msra.mxu0 0.0
  %1054 = vmatprep.subr.mxu0 0.0
  %1055 = vmatpush1.msra.mxu0 0.0
  %1056 = vmatprep.subr.mxu0 0.0
  %1057 = vmatpush1.msra.mxu0 0.0
  %1058 = vmatprep.subr.mxu0 0.0
  %1059 = vmatpush1.msra.mxu0 0.0
  %1060 = vmatprep.subr.mxu0 0.0
  %1061 = vmatpush1.msra.mxu0 0.0
  %1062 = vmatprep.subr.mxu0 0.0
  %1063 = vmatpush1.msra.mxu0 0.0
  %1064 = vmatprep.subr.mxu0 0.0
  %1065 = vmatpush1.msra.mxu0 0.0
  %1066 = vmatprep.subr.mxu0 0.0
  %1067 = vmatpush1.msra.mxu0 0.0
  %1068 = vmatprep.subr.mxu0 0.0
  %1069 = vmatpush1.msra.mxu0 0.0
  %1070 = vmatprep.subr.mxu0 0.0
  %1071 = vmatpush1.msra.mxu0 0.0
  %1072 = vmatprep.subr.mxu0 0.0
  %1073 = vmatpush1.msra.mxu0 0.0
  %1074 = vmatprep.mubr.f32.mxu0 0.0
  %1075 = vmatmul.mubr.f32.gmra.mrb[0].mxu0 %v937
  %v1076 = vpop.f32.mrb[0].mxu0
  %v1077 = vadd.f32 0.0, %v1076
  %v1078 = vpop.f32.mrb[0].mxu0
  %v1079 = vadd.f32 0.0, %v1078
  %1080 = vdwg.mxu0
  %v1081 = vadd.f32 %v930, %v1006
  %v1082 = vadd.f32 %v931, %v1008
  %v1083 = vadd.f32 %v932, %v1077
  %v1084 = vadd.f32 %v933, %v1079
  %v1085 = vld [vmem:[#allocation2 + $0x8] sm:$0xff]
  %v1086 = vld [vmem:[#allocation2 + $0x10] sm:$0xff]
  %v1087 = vld [vmem:[#allocation2 + $0x18] sm:$0xff]
  %v1088 = vld [vmem:[#allocation2 + $0x20] sm:$0xff]
  %v1089 = vld [vmem:[#allocation2 + $0x28] sm:$0xff]
  %v1090 = vlaneseq
  %v1091 = vshrl.u32 %v1090, 7
  %v1092 = vsub.s32 5, %v1091
  %v1093 = vrot.slane %v58, %v1092
  %v1094 = vlaneseq
  %v1095 = vshrl.u32 %v1094, 7
  %v1096 = vsub.s32 5, %v1095
  %v1097 = vrot.slane %v59, %v1096
  %v1098 = vlaneseq
  %v1099 = vshrl.u32 %v1098, 7
  %v1100 = vsub.s32 5, %v1099
  %v1101 = vrot.slane %v60, %v1100
  %v1102 = vlaneseq
  %v1103 = vshrl.u32 %v1102, 7
  %v1104 = vsub.s32 5, %v1103
  %v1105 = vrot.slane %v61, %v1104
  %1110 = vrot.lane.b32.xlu0 %v1093, 1
  %v1111 = vpop.permute.xlu0 %1110
  %1112 = vrot.lane.b32.xlu0 %v1097, 1
  %v1113 = vpop.permute.xlu0 %1112
  %1114 = vrot.lane.b32.xlu0 %v1101, 1
  %v1115 = vpop.permute.xlu0 %1114
  %1116 = vrot.lane.b32.xlu0 %v1105, 1
  %v1117 = vpop.permute.xlu0 %1116
  %v1118 = vsel %vm776, %v1111, %v1113
  %v1119 = vsel %vm776, %v1113, %v1115
  %v1120 = vsel %vm776, %v1115, %v1117
  %v1126 = vmul.f32 %v1085, %v1111
  %v1127 = vmul.f32 %v1086, %v1118
  %v1128 = vmul.f32 %v1087, %v1119
  %v1129 = vmul.f32 %v1088, %v1120
  %v1130 = vmul.f32 %v1089, %v1117
  %s1131 = scalar_lea.vmem %s2, 40
  %v1132 = vld [vmem:[%s1131] sm:$0xff]
  %1138 = vrot.lane.b32.xlu0 %v1126, 127
  %v1139 = vpop.permute.xlu0 %1138
  %1140 = vrot.lane.b32.xlu0 %v1127, 127
  %v1141 = vpop.permute.xlu0 %1140
  %1142 = vrot.lane.b32.xlu0 %v1128, 127
  %v1143 = vpop.permute.xlu0 %1142
  %1144 = vrot.lane.b32.xlu0 %v1129, 127
  %v1145 = vpop.permute.xlu0 %1144
  %1146 = vrot.lane.b32.xlu0 %v1130, 127
  %v1147 = vpop.permute.xlu0 %1146
  %v1148 = vsel %vm745, %v1139, %v1141
  %v1149 = vsel %vm745, %v1141, %v1143
  %v1150 = vsel %vm745, %v1143, %v1145
  %v1151 = vsel %vm745, %v1145, %v1147
  %v1157 = vsel %vm185, %v1132, 0
  %1159 = vmatprep.subr.mxu0 %v1149
  %1160 = vmatpush1.msra.mxu0 %v1148
  %1161 = vmatprep.subr.mxu0 0.0
  %1162 = vmatpush1.msra.mxu0 0.0
  %1163 = vmatprep.subr.mxu0 0.0
  %1164 = vmatpush1.msra.mxu0 0.0
  %1165 = vmatprep.subr.mxu0 0.0
  %1166 = vmatpush1.msra.mxu0 0.0
  %1167 = vmatprep.subr.mxu0 0.0
  %1168 = vmatpush1.msra.mxu0 0.0
  %1169 = vmatprep.subr.mxu0 0.0
  %1170 = vmatpush1.msra.mxu0 0.0
  %1171 = vmatprep.subr.mxu0 0.0
  %1172 = vmatpush1.msra.mxu0 0.0
  %1173 = vmatprep.subr.mxu0 0.0
  %1174 = vmatpush1.msra.mxu0 0.0
  %1175 = vmatprep.subr.mxu0 0.0
  %1176 = vmatpush1.msra.mxu0 0.0
  %1177 = vmatprep.subr.mxu0 0.0
  %1178 = vmatpush1.msra.mxu0 0.0
  %1179 = vmatprep.subr.mxu0 0.0
  %1180 = vmatpush1.msra.mxu0 0.0
  %1181 = vmatprep.subr.mxu0 0.0
  %1182 = vmatpush1.msra.mxu0 0.0
  %1183 = vmatprep.subr.mxu0 0.0
  %1184 = vmatpush1.msra.mxu0 0.0
  %1185 = vmatprep.subr.mxu0 0.0
  %1186 = vmatpush1.msra.mxu0 0.0
  %1187 = vmatprep.subr.mxu0 0.0
  %1188 = vmatpush1.msra.mxu0 0.0
  %1189 = vmatprep.subr.mxu0 0.0
  %1190 = vmatpush1.msra.mxu0 0.0
  %1191 = vmatprep.subr.mxu0 0.0
  %1192 = vmatpush1.msra.mxu0 0.0
  %1193 = vmatprep.subr.mxu0 0.0
  %1194 = vmatpush1.msra.mxu0 0.0
  %1195 = vmatprep.subr.mxu0 0.0
  %1196 = vmatpush1.msra.mxu0 0.0
  %1197 = vmatprep.subr.mxu0 0.0
  %1198 = vmatpush1.msra.mxu0 0.0
  %1199 = vmatprep.subr.mxu0 0.0
  %1200 = vmatpush1.msra.mxu0 0.0
  %1201 = vmatprep.subr.mxu0 0.0
  %1202 = vmatpush1.msra.mxu0 0.0
  %1203 = vmatprep.subr.mxu0 0.0
  %1204 = vmatpush1.msra.mxu0 0.0
  %1205 = vmatprep.subr.mxu0 0.0
  %1206 = vmatpush1.msra.mxu0 0.0
  %1207 = vmatprep.subr.mxu0 0.0
  %1208 = vmatpush1.msra.mxu0 0.0
  %1209 = vmatprep.subr.mxu0 0.0
  %1210 = vmatpush1.msra.mxu0 0.0
  %1211 = vmatprep.subr.mxu0 0.0
  %1212 = vmatpush1.msra.mxu0 0.0
  %1213 = vmatprep.subr.mxu0 0.0
  %1214 = vmatpush1.msra.mxu0 0.0
  %1215 = vmatprep.subr.mxu0 0.0
  %1216 = vmatpush1.msra.mxu0 0.0
  %1217 = vmatprep.subr.mxu0 0.0
  %1218 = vmatpush1.msra.mxu0 0.0
  %1219 = vmatprep.subr.mxu0 0.0
  %1220 = vmatpush1.msra.mxu0 0.0
  %1221 = vmatprep.subr.mxu0 0.0
  %1222 = vmatpush1.msra.mxu0 0.0
  %1223 = vmatprep.mubr.f32.mxu0 0.0
  %1224 = vmatmul.mubr.f32.gmra.mrb[0].mxu0 %v1157
  %v1225 = vpop.f32.mrb[0].mxu0
  %v1226 = vadd.f32 0.0, %v1225
  %v1227 = vpop.f32.mrb[0].mxu0
  %v1228 = vadd.f32 0.0, %v1227
  %1229 = vdwg.mxu0
  %1230 = vmatprep.subr.mxu0 %v1151
  %1231 = vmatpush1.msra.mxu0 %v1150
  %1232 = vmatprep.subr.mxu0 0.0
  %1233 = vmatpush1.msra.mxu0 0.0
  %1234 = vmatprep.subr.mxu0 0.0
  %1235 = vmatpush1.msra.mxu0 0.0
  %1236 = vmatprep.subr.mxu0 0.0
  %1237 = vmatpush1.msra.mxu0 0.0
  %1238 = vmatprep.subr.mxu0 0.0
  %1239 = vmatpush1.msra.mxu0 0.0
  %1240 = vmatprep.subr.mxu0 0.0
  %1241 = vmatpush1.msra.mxu0 0.0
  %1242 = vmatprep.subr.mxu0 0.0
  %1243 = vmatpush1.msra.mxu0 0.0
  %1244 = vmatprep.subr.mxu0 0.0
  %1245 = vmatpush1.msra.mxu0 0.0
  %1246 = vmatprep.subr.mxu0 0.0
  %1247 = vmatpush1.msra.mxu0 0.0
  %1248 = vmatprep.subr.mxu0 0.0
  %1249 = vmatpush1.msra.mxu0 0.0
  %1250 = vmatprep.subr.mxu0 0.0
  %1251 = vmatpush1.msra.mxu0 0.0
  %1252 = vmatprep.subr.mxu0 0.0
  %1253 = vmatpush1.msra.mxu0 0.0
  %1254 = vmatprep.subr.mxu0 0.0
  %1255 = vmatpush1.msra.mxu0 0.0
  %1256 = vmatprep.subr.mxu0 0.0
  %1257 = vmatpush1.msra.mxu0 0.0
  %1258 = vmatprep.subr.mxu0 0.0
  %1259 = vmatpush1.msra.mxu0 0.0
  %1260 = vmatprep.subr.mxu0 0.0
  %1261 = vmatpush1.msra.mxu0 0.0
  %1262 = vmatprep.subr.mxu0 0.0
  %1263 = vmatpush1.msra.mxu0 0.0
  %1264 = vmatprep.subr.mxu0 0.0
  %1265 = vmatpush1.msra.mxu0 0.0
  %1266 = vmatprep.subr.mxu0 0.0
  %1267 = vmatpush1.msra.mxu0 0.0
  %1268 = vmatprep.subr.mxu0 0.0
  %1269 = vmatpush1.msra.mxu0 0.0
  %1270 = vmatprep.subr.mxu0 0.0
  %1271 = vmatpush1.msra.mxu0 0.0
  %1272 = vmatprep.subr.mxu0 0.0
  %1273 = vmatpush1.msra.mxu0 0.0
  %1274 = vmatprep.subr.mxu0 0.0
  %1275 = vmatpush1.msra.mxu0 0.0
  %1276 = vmatprep.subr.mxu0 0.0
  %1277 = vmatpush1.msra.mxu0 0.0
  %1278 = vmatprep.subr.mxu0 0.0
  %1279 = vmatpush1.msra.mxu0 0.0
  %1280 = vmatprep.subr.mxu0 0.0
  %1281 = vmatpush1.msra.mxu0 0.0
  %1282 = vmatprep.subr.mxu0 0.0
  %1283 = vmatpush1.msra.mxu0 0.0
  %1284 = vmatprep.subr.mxu0 0.0
  %1285 = vmatpush1.msra.mxu0 0.0
  %1286 = vmatprep.subr.mxu0 0.0
  %1287 = vmatpush1.msra.mxu0 0.0
  %1288 = vmatprep.subr.mxu0 0.0
  %1289 = vmatpush1.msra.mxu0 0.0
  %1290 = vmatprep.subr.mxu0 0.0
  %1291 = vmatpush1.msra.mxu0 0.0
  %1292 = vmatprep.subr.mxu0 0.0
  %1293 = vmatpush1.msra.mxu0 0.0
  %1294 = vmatprep.mubr.f32.mxu0 0.0
  %1295 = vmatmul.mubr.f32.gmra.mrb[0].mxu0 %v1157
  %v1296 = vpop.f32.mrb[0].mxu0
  %v1297 = vadd.f32 0.0, %v1296
  %v1298 = vpop.f32.mrb[0].mxu0
  %v1299 = vadd.f32 0.0, %v1298
  %1300 = vdwg.mxu0
  %v1301 = vadd.f32 %v1081, %v1226
  %v1302 = vadd.f32 %v1082, %v1228
  %v1303 = vadd.f32 %v1083, %v1297
  %v1304 = vadd.f32 %v1084, %v1299
  %v1305 = vlaneseq
  %v1306 = vshrl.u32 %v1305, 7
  %v1307 = vsub.s32 6, %v1306
  %v1308 = vrot.slane %v58, %v1307
  %v1309 = vlaneseq
  %v1310 = vshrl.u32 %v1309, 7
  %v1311 = vsub.s32 6, %v1310
  %v1312 = vrot.slane %v59, %v1311
  %v1313 = vlaneseq
  %v1314 = vshrl.u32 %v1313, 7
  %v1315 = vsub.s32 6, %v1314
  %v1316 = vrot.slane %v60, %v1315
  %v1317 = vlaneseq
  %v1318 = vshrl.u32 %v1317, 7
  %v1319 = vsub.s32 6, %v1318
  %v1320 = vrot.slane %v61, %v1319
  %1325 = vrot.lane.b32.xlu0 %v1308, 15
  %v1326 = vpop.permute.xlu0 %1325
  %1327 = vrot.lane.b32.xlu0 %v1312, 15
  %v1328 = vpop.permute.xlu0 %1327
  %1329 = vrot.lane.b32.xlu0 %v1316, 15
  %v1330 = vpop.permute.xlu0 %1329
  %1331 = vrot.lane.b32.xlu0 %v1320, 15
  %v1332 = vpop.permute.xlu0 %1331
  %v1333 = vsel %vm559, %v1326, %v1328
  %v1334 = vsel %vm559, %v1328, %v1330
  %v1335 = vsel %vm559, %v1330, %v1332
  %v1341 = vmul.f32 %v1085, %v1326
  %v1342 = vmul.f32 %v1086, %v1333
  %v1343 = vmul.f32 %v1087, %v1334
  %v1344 = vmul.f32 %v1088, %v1335
  %v1345 = vmul.f32 %v1089, %v1332
  %s1346 = scalar_lea.vmem %s2, 48
  %v1347 = vld [vmem:[%s1346] sm:$0xff]
  %1353 = vrot.lane.b32.xlu0 %v1341, 113
  %v1354 = vpop.permute.xlu0 %1353
  %1355 = vrot.lane.b32.xlu0 %v1342, 113
  %v1356 = vpop.permute.xlu0 %1355
  %1357 = vrot.lane.b32.xlu0 %v1343, 113
  %v1358 = vpop.permute.xlu0 %1357
  %1359 = vrot.lane.b32.xlu0 %v1344, 113
  %v1360 = vpop.permute.xlu0 %1359
  %1361 = vrot.lane.b32.xlu0 %v1345, 113
  %v1362 = vpop.permute.xlu0 %1361
  %v1363 = vsel %vm528, %v1354, %v1356
  %v1364 = vsel %vm528, %v1356, %v1358
  %v1365 = vsel %vm528, %v1358, %v1360
  %v1366 = vsel %vm528, %v1360, %v1362
  %v1372 = vsel %vm185, %v1347, 0
  %1374 = vmatprep.subr.mxu0 %v1364
  %1375 = vmatpush1.msra.mxu0 %v1363
  %1376 = vmatprep.subr.mxu0 0.0
  %1377 = vmatpush1.msra.mxu0 0.0
  %1378 = vmatprep.subr.mxu0 0.0
  %1379 = vmatpush1.msra.mxu0 0.0
  %1380 = vmatprep.subr.mxu0 0.0
  %1381 = vmatpush1.msra.mxu0 0.0
  %1382 = vmatprep.subr.mxu0 0.0
  %1383 = vmatpush1.msra.mxu0 0.0
  %1384 = vmatprep.subr.mxu0 0.0
  %1385 = vmatpush1.msra.mxu0 0.0
  %1386 = vmatprep.subr.mxu0 0.0
  %1387 = vmatpush1.msra.mxu0 0.0
  %1388 = vmatprep.subr.mxu0 0.0
  %1389 = vmatpush1.msra.mxu0 0.0
  %1390 = vmatprep.subr.mxu0 0.0
  %1391 = vmatpush1.msra.mxu0 0.0
  %1392 = vmatprep.subr.mxu0 0.0
  %1393 = vmatpush1.msra.mxu0 0.0
  %1394 = vmatprep.subr.mxu0 0.0
  %1395 = vmatpush1.msra.mxu0 0.0
  %1396 = vmatprep.subr.mxu0 0.0
  %1397 = vmatpush1.msra.mxu0 0.0
  %1398 = vmatprep.subr.mxu0 0.0
  %1399 = vmatpush1.msra.mxu0 0.0
  %1400 = vmatprep.subr.mxu0 0.0
  %1401 = vmatpush1.msra.mxu0 0.0
  %1402 = vmatprep.subr.mxu0 0.0
  %1403 = vmatpush1.msra.mxu0 0.0
  %1404 = vmatprep.subr.mxu0 0.0
  %1405 = vmatpush1.msra.mxu0 0.0
  %1406 = vmatprep.subr.mxu0 0.0
  %1407 = vmatpush1.msra.mxu0 0.0
  %1408 = vmatprep.subr.mxu0 0.0
  %1409 = vmatpush1.msra.mxu0 0.0
  %1410 = vmatprep.subr.mxu0 0.0
  %1411 = vmatpush1.msra.mxu0 0.0
  %1412 = vmatprep.subr.mxu0 0.0
  %1413 = vmatpush1.msra.mxu0 0.0
  %1414 = vmatprep.subr.mxu0 0.0
  %1415 = vmatpush1.msra.mxu0 0.0
  %1416 = vmatprep.subr.mxu0 0.0
  %1417 = vmatpush1.msra.mxu0 0.0
  %1418 = vmatprep.subr.mxu0 0.0
  %1419 = vmatpush1.msra.mxu0 0.0
  %1420 = vmatprep.subr.mxu0 0.0
  %1421 = vmatpush1.msra.mxu0 0.0
  %1422 = vmatprep.subr.mxu0 0.0
  %1423 = vmatpush1.msra.mxu0 0.0
  %1424 = vmatprep.subr.mxu0 0.0
  %1425 = vmatpush1.msra.mxu0 0.0
  %1426 = vmatprep.subr.mxu0 0.0
  %1427 = vmatpush1.msra.mxu0 0.0
  %1428 = vmatprep.subr.mxu0 0.0
  %1429 = vmatpush1.msra.mxu0 0.0
  %1430 = vmatprep.subr.mxu0 0.0
  %1431 = vmatpush1.msra.mxu0 0.0
  %1432 = vmatprep.subr.mxu0 0.0
  %1433 = vmatpush1.msra.mxu0 0.0
  %1434 = vmatprep.subr.mxu0 0.0
  %1435 = vmatpush1.msra.mxu0 0.0
  %1436 = vmatprep.subr.mxu0 0.0
  %1437 = vmatpush1.msra.mxu0 0.0
  %1438 = vmatprep.mubr.f32.mxu0 0.0
  %1439 = vmatmul.mubr.f32.gmra.mrb[0].mxu0 %v1372
  %v1440 = vpop.f32.mrb[0].mxu0
  %v1441 = vadd.f32 0.0, %v1440
  %v1442 = vpop.f32.mrb[0].mxu0
  %v1443 = vadd.f32 0.0, %v1442
  %1444 = vdwg.mxu0
  %1445 = vmatprep.subr.mxu0 %v1366
  %1446 = vmatpush1.msra.mxu0 %v1365
  %1447 = vmatprep.subr.mxu0 0.0
  %1448 = vmatpush1.msra.mxu0 0.0
  %1449 = vmatprep.subr.mxu0 0.0
  %1450 = vmatpush1.msra.mxu0 0.0
  %1451 = vmatprep.subr.mxu0 0.0
  %1452 = vmatpush1.msra.mxu0 0.0
  %1453 = vmatprep.subr.mxu0 0.0
  %1454 = vmatpush1.msra.mxu0 0.0
  %1455 = vmatprep.subr.mxu0 0.0
  %1456 = vmatpush1.msra.mxu0 0.0
  %1457 = vmatprep.subr.mxu0 0.0
  %1458 = vmatpush1.msra.mxu0 0.0
  %1459 = vmatprep.subr.mxu0 0.0
  %1460 = vmatpush1.msra.mxu0 0.0
  %1461 = vmatprep.subr.mxu0 0.0
  %1462 = vmatpush1.msra.mxu0 0.0
  %1463 = vmatprep.subr.mxu0 0.0
  %1464 = vmatpush1.msra.mxu0 0.0
  %1465 = vmatprep.subr.mxu0 0.0
  %1466 = vmatpush1.msra.mxu0 0.0
  %1467 = vmatprep.subr.mxu0 0.0
  %1468 = vmatpush1.msra.mxu0 0.0
  %1469 = vmatprep.subr.mxu0 0.0
  %1470 = vmatpush1.msra.mxu0 0.0
  %1471 = vmatprep.subr.mxu0 0.0
  %1472 = vmatpush1.msra.mxu0 0.0
  %1473 = vmatprep.subr.mxu0 0.0
  %1474 = vmatpush1.msra.mxu0 0.0
  %1475 = vmatprep.subr.mxu0 0.0
  %1476 = vmatpush1.msra.mxu0 0.0
  %1477 = vmatprep.subr.mxu0 0.0
  %1478 = vmatpush1.msra.mxu0 0.0
  %1479 = vmatprep.subr.mxu0 0.0
  %1480 = vmatpush1.msra.mxu0 0.0
  %1481 = vmatprep.subr.mxu0 0.0
  %1482 = vmatpush1.msra.mxu0 0.0
  %1483 = vmatprep.subr.mxu0 0.0
  %1484 = vmatpush1.msra.mxu0 0.0
  %1485 = vmatprep.subr.mxu0 0.0
  %1486 = vmatpush1.msra.mxu0 0.0
  %1487 = vmatprep.subr.mxu0 0.0
  %1488 = vmatpush1.msra.mxu0 0.0
  %1489 = vmatprep.subr.mxu0 0.0
  %1490 = vmatpush1.msra.mxu0 0.0
  %1491 = vmatprep.subr.mxu0 0.0
  %1492 = vmatpush1.msra.mxu0 0.0
  %1493 = vmatprep.subr.mxu0 0.0
  %1494 = vmatpush1.msra.mxu0 0.0
  %1495 = vmatprep.subr.mxu0 0.0
  %1496 = vmatpush1.msra.mxu0 0.0
  %1497 = vmatprep.subr.mxu0 0.0
  %1498 = vmatpush1.msra.mxu0 0.0
  %1499 = vmatprep.subr.mxu0 0.0
  %1500 = vmatpush1.msra.mxu0 0.0
  %1501 = vmatprep.subr.mxu0 0.0
  %1502 = vmatpush1.msra.mxu0 0.0
  %1503 = vmatprep.subr.mxu0 0.0
  %1504 = vmatpush1.msra.mxu0 0.0
  %1505 = vmatprep.subr.mxu0 0.0
  %1506 = vmatpush1.msra.mxu0 0.0
  %1507 = vmatprep.subr.mxu0 0.0
  %1508 = vmatpush1.msra.mxu0 0.0
  %1509 = vmatprep.mubr.f32.mxu0 0.0
  %1510 = vmatmul.mubr.f32.gmra.mrb[0].mxu0 %v1372
  %v1511 = vpop.f32.mrb[0].mxu0
  %v1512 = vadd.f32 0.0, %v1511
  %v1513 = vpop.f32.mrb[0].mxu0
  %v1514 = vadd.f32 0.0, %v1513
  %1515 = vdwg.mxu0
  %v1516 = vadd.f32 %v1301, %v1441
  %v1517 = vadd.f32 %v1302, %v1443
  %v1518 = vadd.f32 %v1303, %v1512
  %v1519 = vadd.f32 %v1304, %v1514
  %v1520 = vlaneseq
  %v1521 = vshrl.u32 %v1520, 7
  %v1522 = vsub.s32 7, %v1521
  %v1523 = vrot.slane %v58, %v1522
  %v1524 = vlaneseq
  %v1525 = vshrl.u32 %v1524, 7
  %v1526 = vsub.s32 7, %v1525
  %v1527 = vrot.slane %v59, %v1526
  %v1528 = vlaneseq
  %v1529 = vshrl.u32 %v1528, 7
  %v1530 = vsub.s32 7, %v1529
  %v1531 = vrot.slane %v60, %v1530
  %v1532 = vlaneseq
  %v1533 = vshrl.u32 %v1532, 7
  %v1534 = vsub.s32 7, %v1533
  %v1535 = vrot.slane %v61, %v1534
  %1540 = vrot.lane.b32.xlu0 %v1523, 16
  %v1541 = vpop.permute.xlu0 %1540
  %1542 = vrot.lane.b32.xlu0 %v1527, 16
  %v1543 = vpop.permute.xlu0 %1542
  %1544 = vrot.lane.b32.xlu0 %v1531, 16
  %v1545 = vpop.permute.xlu0 %1544
  %1546 = vrot.lane.b32.xlu0 %v1535, 16
  %v1547 = vpop.permute.xlu0 %1546
  %v1548 = vsel %vm176, %v1541, %v1543
  %v1549 = vsel %vm176, %v1543, %v1545
  %v1550 = vsel %vm176, %v1545, %v1547
  %v1556 = vmul.f32 %v1085, %v1541
  %v1557 = vmul.f32 %v1086, %v1548
  %v1558 = vmul.f32 %v1087, %v1549
  %v1559 = vmul.f32 %v1088, %v1550
  %v1560 = vmul.f32 %v1089, %v1547
  %s1561 = scalar_lea.vmem %s2, 56
  %v1562 = vld [vmem:[%s1561] sm:$0xff]
  %1568 = vrot.lane.b32.xlu0 %v1556, 112
  %v1569 = vpop.permute.xlu0 %1568
  %1570 = vrot.lane.b32.xlu0 %v1557, 112
  %v1571 = vpop.permute.xlu0 %1570
  %1572 = vrot.lane.b32.xlu0 %v1558, 112
  %v1573 = vpop.permute.xlu0 %1572
  %1574 = vrot.lane.b32.xlu0 %v1559, 112
  %v1575 = vpop.permute.xlu0 %1574
  %1576 = vrot.lane.b32.xlu0 %v1560, 112
  %v1577 = vpop.permute.xlu0 %1576
  %v1578 = vsel %vm145, %v1569, %v1571
  %v1579 = vsel %vm145, %v1571, %v1573
  %v1580 = vsel %vm145, %v1573, %v1575
  %v1581 = vsel %vm145, %v1575, %v1577
  %v1587 = vsel %vm185, %v1562, 0
  %1589 = vmatprep.subr.mxu0 %v1579
  %1590 = vmatpush1.msra.mxu0 %v1578
  %1591 = vmatprep.subr.mxu0 0.0
  %1592 = vmatpush1.msra.mxu0 0.0
  %1593 = vmatprep.subr.mxu0 0.0
  %1594 = vmatpush1.msra.mxu0 0.0
  %1595 = vmatprep.subr.mxu0 0.0
  %1596 = vmatpush1.msra.mxu0 0.0
  %1597 = vmatprep.subr.mxu0 0.0
  %1598 = vmatpush1.msra.mxu0 0.0
  %1599 = vmatprep.subr.mxu0 0.0
  %1600 = vmatpush1.msra.mxu0 0.0
  %1601 = vmatprep.subr.mxu0 0.0
  %1602 = vmatpush1.msra.mxu0 0.0
  %1603 = vmatprep.subr.mxu0 0.0
  %1604 = vmatpush1.msra.mxu0 0.0
  %1605 = vmatprep.subr.mxu0 0.0
  %1606 = vmatpush1.msra.mxu0 0.0
  %1607 = vmatprep.subr.mxu0 0.0
  %1608 = vmatpush1.msra.mxu0 0.0
  %1609 = vmatprep.subr.mxu0 0.0
  %1610 = vmatpush1.msra.mxu0 0.0
  %1611 = vmatprep.subr.mxu0 0.0
  %1612 = vmatpush1.msra.mxu0 0.0
  %1613 = vmatprep.subr.mxu0 0.0
  %1614 = vmatpush1.msra.mxu0 0.0
  %1615 = vmatprep.subr.mxu0 0.0
  %1616 = vmatpush1.msra.mxu0 0.0
  %1617 = vmatprep.subr.mxu0 0.0
  %1618 = vmatpush1.msra.mxu0 0.0
  %1619 = vmatprep.subr.mxu0 0.0
  %1620 = vmatpush1.msra.mxu0 0.0
  %1621 = vmatprep.subr.mxu0 0.0
  %1622 = vmatpush1.msra.mxu0 0.0
  %1623 = vmatprep.subr.mxu0 0.0
  %1624 = vmatpush1.msra.mxu0 0.0
  %1625 = vmatprep.subr.mxu0 0.0
  %1626 = vmatpush1.msra.mxu0 0.0
  %1627 = vmatprep.subr.mxu0 0.0
  %1628 = vmatpush1.msra.mxu0 0.0
  %1629 = vmatprep.subr.mxu0 0.0
  %1630 = vmatpush1.msra.mxu0 0.0
  %1631 = vmatprep.subr.mxu0 0.0
  %1632 = vmatpush1.msra.mxu0 0.0
  %1633 = vmatprep.subr.mxu0 0.0
  %1634 = vmatpush1.msra.mxu0 0.0
  %1635 = vmatprep.subr.mxu0 0.0
  %1636 = vmatpush1.msra.mxu0 0.0
  %1637 = vmatprep.subr.mxu0 0.0
  %1638 = vmatpush1.msra.mxu0 0.0
  %1639 = vmatprep.subr.mxu0 0.0
  %1640 = vmatpush1.msra.mxu0 0.0
  %1641 = vmatprep.subr.mxu0 0.0
  %1642 = vmatpush1.msra.mxu0 0.0
  %1643 = vmatprep.subr.mxu0 0.0
  %1644 = vmatpush1.msra.mxu0 0.0
  %1645 = vmatprep.subr.mxu0 0.0
  %1646 = vmatpush1.msra.mxu0 0.0
  %1647 = vmatprep.subr.mxu0 0.0
  %1648 = vmatpush1.msra.mxu0 0.0
  %1649 = vmatprep.subr.mxu0 0.0
  %1650 = vmatpush1.msra.mxu0 0.0
  %1651 = vmatprep.subr.mxu0 0.0
  %1652 = vmatpush1.msra.mxu0 0.0
  %1653 = vmatprep.mubr.f32.mxu0 0.0
  %1654 = vmatmul.mubr.f32.gmra.mrb[0].mxu0 %v1587
  %v1655 = vpop.f32.mrb[0].mxu0
  %v1656 = vadd.f32 0.0, %v1655
  %v1657 = vpop.f32.mrb[0].mxu0
  %v1658 = vadd.f32 0.0, %v1657
  %1659 = vdwg.mxu0
  %1660 = vmatprep.subr.mxu0 %v1581
  %1661 = vmatpush1.msra.mxu0 %v1580
  %1662 = vmatprep.subr.mxu0 0.0
  %1663 = vmatpush1.msra.mxu0 0.0
  %1664 = vmatprep.subr.mxu0 0.0
  %1665 = vmatpush1.msra.mxu0 0.0
  %1666 = vmatprep.subr.mxu0 0.0
  %1667 = vmatpush1.msra.mxu0 0.0
  %1668 = vmatprep.subr.mxu0 0.0
  %1669 = vmatpush1.msra.mxu0 0.0
  %1670 = vmatprep.subr.mxu0 0.0
  %1671 = vmatpush1.msra.mxu0 0.0
  %1672 = vmatprep.subr.mxu0 0.0
  %1673 = vmatpush1.msra.mxu0 0.0
  %1674 = vmatprep.subr.mxu0 0.0
  %1675 = vmatpush1.msra.mxu0 0.0
  %1676 = vmatprep.subr.mxu0 0.0
  %1677 = vmatpush1.msra.mxu0 0.0
  %1678 = vmatprep.subr.mxu0 0.0
  %1679 = vmatpush1.msra.mxu0 0.0
  %1680 = vmatprep.subr.mxu0 0.0
  %1681 = vmatpush1.msra.mxu0 0.0
  %1682 = vmatprep.subr.mxu0 0.0
  %1683 = vmatpush1.msra.mxu0 0.0
  %1684 = vmatprep.subr.mxu0 0.0
  %1685 = vmatpush1.msra.mxu0 0.0
  %1686 = vmatprep.subr.mxu0 0.0
  %1687 = vmatpush1.msra.mxu0 0.0
  %1688 = vmatprep.subr.mxu0 0.0
  %1689 = vmatpush1.msra.mxu0 0.0
  %1690 = vmatprep.subr.mxu0 0.0
  %1691 = vmatpush1.msra.mxu0 0.0
  %1692 = vmatprep.subr.mxu0 0.0
  %1693 = vmatpush1.msra.mxu0 0.0
  %1694 = vmatprep.subr.mxu0 0.0
  %1695 = vmatpush1.msra.mxu0 0.0
  %1696 = vmatprep.subr.mxu0 0.0
  %1697 = vmatpush1.msra.mxu0 0.0
  %1698 = vmatprep.subr.mxu0 0.0
  %1699 = vmatpush1.msra.mxu0 0.0
  %1700 = vmatprep.subr.mxu0 0.0
  %1701 = vmatpush1.msra.mxu0 0.0
  %1702 = vmatprep.subr.mxu0 0.0
  %1703 = vmatpush1.msra.mxu0 0.0
  %1704 = vmatprep.subr.mxu0 0.0
  %1705 = vmatpush1.msra.mxu0 0.0
  %1706 = vmatprep.subr.mxu0 0.0
  %1707 = vmatpush1.msra.mxu0 0.0
  %1708 = vmatprep.subr.mxu0 0.0
  %1709 = vmatpush1.msra.mxu0 0.0
  %1710 = vmatprep.subr.mxu0 0.0
  %1711 = vmatpush1.msra.mxu0 0.0
  %1712 = vmatprep.subr.mxu0 0.0
  %1713 = vmatpush1.msra.mxu0 0.0
  %1714 = vmatprep.subr.mxu0 0.0
  %1715 = vmatpush1.msra.mxu0 0.0
  %1716 = vmatprep.subr.mxu0 0.0
  %1717 = vmatpush1.msra.mxu0 0.0
  %1718 = vmatprep.subr.mxu0 0.0
  %1719 = vmatpush1.msra.mxu0 0.0
  %1720 = vmatprep.subr.mxu0 0.0
  %1721 = vmatpush1.msra.mxu0 0.0
  %1722 = vmatprep.subr.mxu0 0.0
  %1723 = vmatpush1.msra.mxu0 0.0
  %1724 = vmatprep.mubr.f32.mxu0 0.0
  %1725 = vmatmul.mubr.f32.gmra.mrb[0].mxu0 %v1587
  %v1726 = vpop.f32.mrb[0].mxu0
  %v1727 = vadd.f32 0.0, %v1726
  %v1728 = vpop.f32.mrb[0].mxu0
  %v1729 = vadd.f32 0.0, %v1728
  %1730 = vdwg.mxu0
  %v1731 = vadd.f32 %v1516, %v1656
  %v1732 = vadd.f32 %v1517, %v1658
  %v1733 = vadd.f32 %v1518, %v1727
  %v1734 = vadd.f32 %v1519, %v1729
  %v1735 = vlaneseq
  %v1736 = vshrl.u32 %v1735, 7
  %v1737 = vsub.s32 0, %v1736
  %v1738 = vrot.slane %v62, %v1737
  %v1739 = vlaneseq
  %v1740 = vshrl.u32 %v1739, 7
  %v1741 = vsub.s32 0, %v1740
  %v1742 = vrot.slane %v63, %v1741
  %v1743 = vlaneseq
  %v1744 = vshrl.u32 %v1743, 7
  %v1745 = vsub.s32 0, %v1744
  %v1746 = vrot.slane %v64, %v1745
  %v1747 = vlaneseq
  %v1748 = vshrl.u32 %v1747, 7
  %v1749 = vsub.s32 0, %v1748
  %v1750 = vrot.slane %v65, %v1749
  %1755 = vrot.lane.b32.xlu0 %v1738, 17
  %v1756 = vpop.permute.xlu0 %1755
  %1757 = vrot.lane.b32.xlu0 %v1742, 17
  %v1758 = vpop.permute.xlu0 %1757
  %1759 = vrot.lane.b32.xlu0 %v1746, 17
  %v1760 = vpop.permute.xlu0 %1759
  %1761 = vrot.lane.b32.xlu0 %v1750, 17
  %v1762 = vpop.permute.xlu0 %1761
  %v1763 = vsel %vm346, %v1756, %v1758
  %v1764 = vsel %vm346, %v1758, %v1760
  %v1765 = vsel %vm346, %v1760, %v1762
  %v1771 = vmul.f32 %v1085, %v1756
  %v1772 = vmul.f32 %v1086, %v1763
  %v1773 = vmul.f32 %v1087, %v1764
  %v1774 = vmul.f32 %v1088, %v1765
  %v1775 = vmul.f32 %v1089, %v1762
  %s1776 = scalar_lea.vmem %s2, 64
  %v1777 = vld [vmem:[%s1776] sm:$0xff]
  %1783 = vrot.lane.b32.xlu0 %v1771, 111
  %v1784 = vpop.permute.xlu0 %1783
  %1785 = vrot.lane.b32.xlu0 %v1772, 111
  %v1786 = vpop.permute.xlu0 %1785
  %1787 = vrot.lane.b32.xlu0 %v1773, 111
  %v1788 = vpop.permute.xlu0 %1787
  %1789 = vrot.lane.b32.xlu0 %v1774, 111
  %v1790 = vpop.permute.xlu0 %1789
  %1791 = vrot.lane.b32.xlu0 %v1775, 111
  %v1792 = vpop.permute.xlu0 %1791
  %v1793 = vsel %vm102, %v1784, %v1786
  %v1794 = vsel %vm102, %v1786, %v1788
  %v1795 = vsel %vm102, %v1788, %v1790
  %v1796 = vsel %vm102, %v1790, %v1792
  %v1802 = vsel %vm185, %v1777, 0
  %1804 = vmatprep.subr.mxu0 %v1794
  %1805 = vmatpush1.msra.mxu0 %v1793
  %1806 = vmatprep.subr.mxu0 0.0
  %1807 = vmatpush1.msra.mxu0 0.0
  %1808 = vmatprep.subr.mxu0 0.0
  %1809 = vmatpush1.msra.mxu0 0.0
  %1810 = vmatprep.subr.mxu0 0.0
  %1811 = vmatpush1.msra.mxu0 0.0
  %1812 = vmatprep.subr.mxu0 0.0
  %1813 = vmatpush1.msra.mxu0 0.0
  %1814 = vmatprep.subr.mxu0 0.0
  %1815 = vmatpush1.msra.mxu0 0.0
  %1816 = vmatprep.subr.mxu0 0.0
  %1817 = vmatpush1.msra.mxu0 0.0
  %1818 = vmatprep.subr.mxu0 0.0
  %1819 = vmatpush1.msra.mxu0 0.0
  %1820 = vmatprep.subr.mxu0 0.0
  %1821 = vmatpush1.msra.mxu0 0.0
  %1822 = vmatprep.subr.mxu0 0.0
  %1823 = vmatpush1.msra.mxu0 0.0
  %1824 = vmatprep.subr.mxu0 0.0
  %1825 = vmatpush1.msra.mxu0 0.0
  %1826 = vmatprep.subr.mxu0 0.0
  %1827 = vmatpush1.msra.mxu0 0.0
  %1828 = vmatprep.subr.mxu0 0.0
  %1829 = vmatpush1.msra.mxu0 0.0
  %1830 = vmatprep.subr.mxu0 0.0
  %1831 = vmatpush1.msra.mxu0 0.0
  %1832 = vmatprep.subr.mxu0 0.0
  %1833 = vmatpush1.msra.mxu0 0.0
  %1834 = vmatprep.subr.mxu0 0.0
  %1835 = vmatpush1.msra.mxu0 0.0
  %1836 = vmatprep.subr.mxu0 0.0
  %1837 = vmatpush1.msra.mxu0 0.0
  %1838 = vmatprep.subr.mxu0 0.0
  %1839 = vmatpush1.msra.mxu0 0.0
  %1840 = vmatprep.subr.mxu0 0.0
  %1841 = vmatpush1.msra.mxu0 0.0
  %1842 = vmatprep.subr.mxu0 0.0
  %1843 = vmatpush1.msra.mxu0 0.0
  %1844 = vmatprep.subr.mxu0 0.0
  %1845 = vmatpush1.msra.mxu0 0.0
  %1846 = vmatprep.subr.mxu0 0.0
  %1847 = vmatpush1.msra.mxu0 0.0
  %1848 = vmatprep.subr.mxu0 0.0
  %1849 = vmatpush1.msra.mxu0 0.0
  %1850 = vmatprep.subr.mxu0 0.0
  %1851 = vmatpush1.msra.mxu0 0.0
  %1852 = vmatprep.subr.mxu0 0.0
  %1853 = vmatpush1.msra.mxu0 0.0
  %1854 = vmatprep.subr.mxu0 0.0
  %1855 = vmatpush1.msra.mxu0 0.0
  %1856 = vmatprep.subr.mxu0 0.0
  %1857 = vmatpush1.msra.mxu0 0.0
  %1858 = vmatprep.subr.mxu0 0.0
  %1859 = vmatpush1.msra.mxu0 0.0
  %1860 = vmatprep.subr.mxu0 0.0
  %1861 = vmatpush1.msra.mxu0 0.0
  %1862 = vmatprep.subr.mxu0 0.0
  %1863 = vmatpush1.msra.mxu0 0.0
  %1864 = vmatprep.subr.mxu0 0.0
  %1865 = vmatpush1.msra.mxu0 0.0
  %1866 = vmatprep.subr.mxu0 0.0
  %1867 = vmatpush1.msra.mxu0 0.0
  %1868 = vmatprep.mubr.f32.mxu0 0.0
  %1869 = vmatmul.mubr.f32.gmra.mrb[0].mxu0 %v1802
  %v1870 = vpop.f32.mrb[0].mxu0
  %v1871 = vadd.f32 0.0, %v1870
  %v1872 = vpop.f32.mrb[0].mxu0
  %v1873 = vadd.f32 0.0, %v1872
  %1874 = vdwg.mxu0
  %1875 = vmatprep.subr.mxu0 %v1796
  %1876 = vmatpush1.msra.mxu0 %v1795
  %1877 = vmatprep.subr.mxu0 0.0
  %1878 = vmatpush1.msra.mxu0 0.0
  %1879 = vmatprep.subr.mxu0 0.0
  %1880 = vmatpush1.msra.mxu0 0.0
  %1881 = vmatprep.subr.mxu0 0.0
  %1882 = vmatpush1.msra.mxu0 0.0
  %1883 = vmatprep.subr.mxu0 0.0
  %1884 = vmatpush1.msra.mxu0 0.0
  %1885 = vmatprep.subr.mxu0 0.0
  %1886 = vmatpush1.msra.mxu0 0.0
  %1887 = vmatprep.subr.mxu0 0.0
  %1888 = vmatpush1.msra.mxu0 0.0
  %1889 = vmatprep.subr.mxu0 0.0
  %1890 = vmatpush1.msra.mxu0 0.0
  %1891 = vmatprep.subr.mxu0 0.0
  %1892 = vmatpush1.msra.mxu0 0.0
  %1893 = vmatprep.subr.mxu0 0.0
  %1894 = vmatpush1.msra.mxu0 0.0
  %1895 = vmatprep.subr.mxu0 0.0
  %1896 = vmatpush1.msra.mxu0 0.0
  %1897 = vmatprep.subr.mxu0 0.0
  %1898 = vmatpush1.msra.mxu0 0.0
  %1899 = vmatprep.subr.mxu0 0.0
  %1900 = vmatpush1.msra.mxu0 0.0
  %1901 = vmatprep.subr.mxu0 0.0
  %1902 = vmatpush1.msra.mxu0 0.0
  %1903 = vmatprep.subr.mxu0 0.0
  %1904 = vmatpush1.msra.mxu0 0.0
  %1905 = vmatprep.subr.mxu0 0.0
  %1906 = vmatpush1.msra.mxu0 0.0
  %1907 = vmatprep.subr.mxu0 0.0
  %1908 = vmatpush1.msra.mxu0 0.0
  %1909 = vmatprep.subr.mxu0 0.0
  %1910 = vmatpush1.msra.mxu0 0.0
  %1911 = vmatprep.subr.mxu0 0.0
  %1912 = vmatpush1.msra.mxu0 0.0
  %1913 = vmatprep.subr.mxu0 0.0
  %1914 = vmatpush1.msra.mxu0 0.0
  %1915 = vmatprep.subr.mxu0 0.0
  %1916 = vmatpush1.msra.mxu0 0.0
  %1917 = vmatprep.subr.mxu0 0.0
  %1918 = vmatpush1.msra.mxu0 0.0
  %1919 = vmatprep.subr.mxu0 0.0
  %1920 = vmatpush1.msra.mxu0 0.0
  %1921 = vmatprep.subr.mxu0 0.0
  %1922 = vmatpush1.msra.mxu0 0.0
  %1923 = vmatprep.subr.mxu0 0.0
  %1924 = vmatpush1.msra.mxu0 0.0
  %1925 = vmatprep.subr.mxu0 0.0
  %1926 = vmatpush1.msra.mxu0 0.0
  %1927 = vmatprep.subr.mxu0 0.0
  %1928 = vmatpush1.msra.mxu0 0.0
  %1929 = vmatprep.subr.mxu0 0.0
  %1930 = vmatpush1.msra.mxu0 0.0
  %1931 = vmatprep.subr.mxu0 0.0
  %1932 = vmatpush1.msra.mxu0 0.0
  %1933 = vmatprep.subr.mxu0 0.0
  %1934 = vmatpush1.msra.mxu0 0.0
  %1935 = vmatprep.subr.mxu0 0.0
  %1936 = vmatpush1.msra.mxu0 0.0
  %1937 = vmatprep.subr.mxu0 0.0
  %1938 = vmatpush1.msra.mxu0 0.0
  %1939 = vmatprep.mubr.f32.mxu0 0.0
  %1940 = vmatmul.mubr.f32.gmra.mrb[0].mxu0 %v1802
  %v1941 = vpop.f32.mrb[0].mxu0
  %v1942 = vadd.f32 0.0, %v1941
  %v1943 = vpop.f32.mrb[0].mxu0
  %v1944 = vadd.f32 0.0, %v1943
  %1945 = vdwg.mxu0
  %v1946 = vadd.f32 %v1731, %v1871
  %v1947 = vadd.f32 %v1732, %v1873
  %v1948 = vadd.f32 %v1733, %v1942
  %v1949 = vadd.f32 %v1734, %v1944
  %1951 = vset.pattern.permute.xlu0 0
  %1952 = vperm.xlu0 %1951, %v66
  %v1953 = vpop.permute.xlu0 %1952
  %v1955 = vadd.f32 %v1946, %v1953
  %v1956 = vadd.f32 %v1947, %v1953
  %v1957 = vadd.f32 %v1948, %v1953
  %v1958 = vadd.f32 %v1949, %v1953
  %v1959 = vadd.f32 %v1955, %v1956
  %v1960 = vadd.f32 %v1959, %v1957
  %v1961 = vadd.f32 %v1960, %v1958
  %1962 = vadd.xlane.f32.xlu0 %v1961
  %v1963 = vpop.xlane.xlu0 %1962
  %v1964 = vmul.f32 %v1963, 0.001953125
  %v1965 = vmul.f32 %v1955, %v1955
  %v1966 = vmul.f32 %v1956, %v1956
  %v1967 = vmul.f32 %v1957, %v1957
  %v1968 = vmul.f32 %v1958, %v1958
  %v1969 = vadd.f32 %v1965, %v1966
  %v1970 = vadd.f32 %v1969, %v1967
  %v1971 = vadd.f32 %v1970, %v1968
  %1972 = vadd.xlane.f32.xlu0 %v1971
  %v1973 = vpop.xlane.xlu0 %1972
  %v1974 = vmul.f32 %v1973, 0.001953125
  %v1975 = vmul.f32 %v1964, %v1964
  %v1976 = vsub.f32 %v1974, %v1975
  %v1977 = vmax.f32 %v1976, 0.0
  %v1978 = vadd.f32 %v1977, 1e-05
  %v1979 = vrsqrt.pop %v1978
  %v1980 = vmul.f32 %v67, %v1979
  %v1981 = vmul.f32 %v1964, %v1980
  %v1982 = vsub.f32 %v68, %v1981
  %1984 = vset.pattern.permute.xlu0 0
  %1985 = vperm.xlu0 %1984, %v1980
  %v1986 = vpop.permute.xlu0 %1985
  %v1988 = vmul.f32 %v1955, %v1986
  %v1989 = vmul.f32 %v1956, %v1986
  %v1990 = vmul.f32 %v1957, %v1986
  %v1991 = vmul.f32 %v1958, %v1986
  %1993 = vset.pattern.permute.xlu0 0
  %1994 = vperm.xlu0 %1993, %v1982
  %v1995 = vpop.permute.xlu0 %1994
  %v1997 = vadd.f32 %v1988, %v1995
  %v1998 = vadd.f32 %v1989, %v1995
  %v1999 = vadd.f32 %v1990, %v1995
  %v2000 = vadd.f32 %v1991, %v1995
  %v2001 = vmax.f32 %v1997, 0.0
  %v2002 = vmax.f32 %v1998, 0.0
  %v2003 = vmax.f32 %v1999, 0.0
  %v2004 = vmax.f32 %v2000, 0.0
  %2005 = vst [vmem:[#allocation2 + $0x8] sm:$0xff] %v2001
  %2006 = vst [vmem:[#allocation2 + $0x10] sm:$0xff] %v2002
  %2007 = vst [vmem:[#allocation2 + $0x18] sm:$0xff] %v2003
  %2008 = vst [vmem:[#allocation2 + $0x20] sm:$0xff] %v2004
  %v2009 = vld [vmem:[%s7] sm:$0xff]
  %v2010 = vld [vmem:[%s8] sm:$0xff]
  %v2011 = vld [vmem:[%s9] sm:$0xff]
  %v2012 = vld [vmem:[#allocation2] sm:$0xff]
  %v2013 = vld [vmem:[#allocation2 + $0x8] sm:$0xff]
  %v2014 = vld [vmem:[#allocation2 + $0x10] sm:$0xff]
  %v2015 = vld [vmem:[#allocation2 + $0x18] sm:$0xff]
  %v2016 = vld [vmem:[#allocation2 + $0x20] sm:$0xff]
  %v2017 = vmul.f32 %v2012, %v95
  %v2018 = vmul.f32 %v2013, %v103
  %v2019 = vmul.f32 %v2014, %v104
  %v2020 = vmul.f32 %v2015, %v105
  %v2021 = vmul.f32 %v2016, %v101
  %v2022 = vld [vmem:[%s6] sm:$0xff]
  %v2023 = vmul.f32 %v2012, %v138
  %v2024 = vmul.f32 %v2013, %v146
  %v2025 = vmul.f32 %v2014, %v147
  %v2026 = vmul.f32 %v2015, %v148
  %v2027 = vmul.f32 %v2016, %v144
  %s2028 = scalar_lea.vmem %s6, 8
  %v2029 = vld [vmem:[%s2028] sm:$0xff]
  %2035 = vrot.lane.b32.xlu0 %v2023, 16
  %v2036 = vpop.permute.xlu0 %2035
  %2037 = vrot.lane.b32.xlu0 %v2024, 16
  %v2038 = vpop.permute.xlu0 %2037
  %2039 = vrot.lane.b32.xlu0 %v2025, 16
  %v2040 = vpop.permute.xlu0 %2039
  %2041 = vrot.lane.b32.xlu0 %v2026, 16
  %v2042 = vpop.permute.xlu0 %2041
  %2043 = vrot.lane.b32.xlu0 %v2027, 16
  %v2044 = vpop.permute.xlu0 %2043
  %v2045 = vsel %vm176, %v2036, %v2038
  %v2046 = vsel %vm176, %v2038, %v2040
  %v2047 = vsel %vm176, %v2040, %v2042
  %v2048 = vsel %vm176, %v2042, %v2044
  %v2054 = vsel %vm185, %v2029, 0
  %2056 = vmatprep.subr.mxu0 %v2046
  %2057 = vmatpush1.msra.mxu0 %v2045
  %2058 = vmatprep.subr.mxu0 0.0
  %2059 = vmatpush1.msra.mxu0 0.0
  %2060 = vmatprep.subr.mxu0 0.0
  %2061 = vmatpush1.msra.mxu0 0.0
  %2062 = vmatprep.subr.mxu0 0.0
  %2063 = vmatpush1.msra.mxu0 0.0
  %2064 = vmatprep.subr.mxu0 0.0
  %2065 = vmatpush1.msra.mxu0 0.0
  %2066 = vmatprep.subr.mxu0 0.0
  %2067 = vmatpush1.msra.mxu0 0.0
  %2068 = vmatprep.subr.mxu0 0.0
  %2069 = vmatpush1.msra.mxu0 0.0
  %2070 = vmatprep.subr.mxu0 0.0
  %2071 = vmatpush1.msra.mxu0 0.0
  %2072 = vmatprep.subr.mxu0 0.0
  %2073 = vmatpush1.msra.mxu0 0.0
  %2074 = vmatprep.subr.mxu0 0.0
  %2075 = vmatpush1.msra.mxu0 0.0
  %2076 = vmatprep.subr.mxu0 0.0
  %2077 = vmatpush1.msra.mxu0 0.0
  %2078 = vmatprep.subr.mxu0 0.0
  %2079 = vmatpush1.msra.mxu0 0.0
  %2080 = vmatprep.subr.mxu0 0.0
  %2081 = vmatpush1.msra.mxu0 0.0
  %2082 = vmatprep.subr.mxu0 0.0
  %2083 = vmatpush1.msra.mxu0 0.0
  %2084 = vmatprep.subr.mxu0 0.0
  %2085 = vmatpush1.msra.mxu0 0.0
  %2086 = vmatprep.subr.mxu0 0.0
  %2087 = vmatpush1.msra.mxu0 0.0
  %2088 = vmatprep.subr.mxu0 0.0
  %2089 = vmatpush1.msra.mxu0 0.0
  %2090 = vmatprep.subr.mxu0 0.0
  %2091 = vmatpush1.msra.mxu0 0.0
  %2092 = vmatprep.subr.mxu0 0.0
  %2093 = vmatpush1.msra.mxu0 0.0
  %2094 = vmatprep.subr.mxu0 0.0
  %2095 = vmatpush1.msra.mxu0 0.0
  %2096 = vmatprep.subr.mxu0 0.0
  %2097 = vmatpush1.msra.mxu0 0.0
  %2098 = vmatprep.subr.mxu0 0.0
  %2099 = vmatpush1.msra.mxu0 0.0
  %2100 = vmatprep.subr.mxu0 0.0
  %2101 = vmatpush1.msra.mxu0 0.0
  %2102 = vmatprep.subr.mxu0 0.0
  %2103 = vmatpush1.msra.mxu0 0.0
  %2104 = vmatprep.subr.mxu0 0.0
  %2105 = vmatpush1.msra.mxu0 0.0
  %2106 = vmatprep.subr.mxu0 0.0
  %2107 = vmatpush1.msra.mxu0 0.0
  %2108 = vmatprep.subr.mxu0 0.0
  %2109 = vmatpush1.msra.mxu0 0.0
  %2110 = vmatprep.subr.mxu0 0.0
  %2111 = vmatpush1.msra.mxu0 0.0
  %2112 = vmatprep.subr.mxu0 0.0
  %2113 = vmatpush1.msra.mxu0 0.0
  %2114 = vmatprep.subr.mxu0 0.0
  %2115 = vmatpush1.msra.mxu0 0.0
  %2116 = vmatprep.subr.mxu0 0.0
  %2117 = vmatpush1.msra.mxu0 0.0
  %2118 = vmatprep.subr.mxu0 0.0
  %2119 = vmatpush1.msra.mxu0 0.0
  %2120 = vmatprep.mubr.f32.mxu0 0.0
  %2121 = vmatmul.mubr.f32.gmra.mrb[0].mxu0 %v2054
  %v2122 = vpop.f32.mrb[0].mxu0
  %v2123 = vadd.f32 0.0, %v2122
  %v2124 = vpop.f32.mrb[0].mxu0
  %v2125 = vadd.f32 0.0, %v2124
  %2126 = vdwg.mxu0
  %2127 = vmatprep.subr.mxu0 %v2048
  %2128 = vmatpush1.msra.mxu0 %v2047
  %2129 = vmatprep.subr.mxu0 0.0
  %2130 = vmatpush1.msra.mxu0 0.0
  %2131 = vmatprep.subr.mxu0 0.0
  %2132 = vmatpush1.msra.mxu0 0.0
  %2133 = vmatprep.subr.mxu0 0.0
  %2134 = vmatpush1.msra.mxu0 0.0
  %2135 = vmatprep.subr.mxu0 0.0
  %2136 = vmatpush1.msra.mxu0 0.0
  %2137 = vmatprep.subr.mxu0 0.0
  %2138 = vmatpush1.msra.mxu0 0.0
  %2139 = vmatprep.subr.mxu0 0.0
  %2140 = vmatpush1.msra.mxu0 0.0
  %2141 = vmatprep.subr.mxu0 0.0
  %2142 = vmatpush1.msra.mxu0 0.0
  %2143 = vmatprep.subr.mxu0 0.0
  %2144 = vmatpush1.msra.mxu0 0.0
  %2145 = vmatprep.subr.mxu0 0.0
  %2146 = vmatpush1.msra.mxu0 0.0
  %2147 = vmatprep.subr.mxu0 0.0
  %2148 = vmatpush1.msra.mxu0 0.0
  %2149 = vmatprep.subr.mxu0 0.0
  %2150 = vmatpush1.msra.mxu0 0.0
  %2151 = vmatprep.subr.mxu0 0.0
  %2152 = vmatpush1.msra.mxu0 0.0
  %2153 = vmatprep.subr.mxu0 0.0
  %2154 = vmatpush1.msra.mxu0 0.0
  %2155 = vmatprep.subr.mxu0 0.0
  %2156 = vmatpush1.msra.mxu0 0.0
  %2157 = vmatprep.subr.mxu0 0.0
  %2158 = vmatpush1.msra.mxu0 0.0
  %2159 = vmatprep.subr.mxu0 0.0
  %2160 = vmatpush1.msra.mxu0 0.0
  %2161 = vmatprep.subr.mxu0 0.0
  %2162 = vmatpush1.msra.mxu0 0.0
  %2163 = vmatprep.subr.mxu0 0.0
  %2164 = vmatpush1.msra.mxu0 0.0
  %2165 = vmatprep.subr.mxu0 0.0
  %2166 = vmatpush1.msra.mxu0 0.0
  %2167 = vmatprep.subr.mxu0 0.0
  %2168 = vmatpush1.msra.mxu0 0.0
  %2169 = vmatprep.subr.mxu0 0.0
  %2170 = vmatpush1.msra.mxu0 0.0
  %2171 = vmatprep.subr.mxu0 0.0
  %2172 = vmatpush1.msra.mxu0 0.0
  %2173 = vmatprep.subr.mxu0 0.0
  %2174 = vmatpush1.msra.mxu0 0.0
  %2175 = vmatprep.subr.mxu0 0.0
  %2176 = vmatpush1.msra.mxu0 0.0
  %2177 = vmatprep.subr.mxu0 0.0
  %2178 = vmatpush1.msra.mxu0 0.0
  %2179 = vmatprep.subr.mxu0 0.0
  %2180 = vmatpush1.msra.mxu0 0.0
  %2181 = vmatprep.subr.mxu0 0.0
  %2182 = vmatpush1.msra.mxu0 0.0
  %2183 = vmatprep.subr.mxu0 0.0
  %2184 = vmatpush1.msra.mxu0 0.0
  %2185 = vmatprep.subr.mxu0 0.0
  %2186 = vmatpush1.msra.mxu0 0.0
  %2187 = vmatprep.subr.mxu0 0.0
  %2188 = vmatpush1.msra.mxu0 0.0
  %2189 = vmatprep.subr.mxu0 0.0
  %2190 = vmatpush1.msra.mxu0 0.0
  %2191 = vmatprep.mubr.f32.mxu0 0.0
  %2192 = vmatmul.mubr.f32.gmra.mrb[0].mxu0 %v2054
  %v2193 = vpop.f32.mrb[0].mxu0
  %v2194 = vadd.f32 0.0, %v2193
  %v2195 = vpop.f32.mrb[0].mxu0
  %v2196 = vadd.f32 0.0, %v2195
  %2197 = vdwg.mxu0
  %2203 = vrot.lane.b32.xlu0 %v2017, 17
  %v2204 = vpop.permute.xlu0 %2203
  %2205 = vrot.lane.b32.xlu0 %v2018, 17
  %v2206 = vpop.permute.xlu0 %2205
  %2207 = vrot.lane.b32.xlu0 %v2019, 17
  %v2208 = vpop.permute.xlu0 %2207
  %2209 = vrot.lane.b32.xlu0 %v2020, 17
  %v2210 = vpop.permute.xlu0 %2209
  %2211 = vrot.lane.b32.xlu0 %v2021, 17
  %v2212 = vpop.permute.xlu0 %2211
  %v2213 = vsel %vm346, %v2204, %v2206
  %v2214 = vsel %vm346, %v2206, %v2208
  %v2215 = vsel %vm346, %v2208, %v2210
  %v2216 = vsel %vm346, %v2210, %v2212
  %v2222 = vsel %vm185, %v2022, 0
  %2224 = vmatprep.subr.mxu0 %v2214
  %2225 = vmatpush1.msra.mxu0 %v2213
  %2226 = vmatprep.subr.mxu0 0.0
  %2227 = vmatpush1.msra.mxu0 0.0
  %2228 = vmatprep.subr.mxu0 0.0
  %2229 = vmatpush1.msra.mxu0 0.0
  %2230 = vmatprep.subr.mxu0 0.0
  %2231 = vmatpush1.msra.mxu0 0.0
  %2232 = vmatprep.subr.mxu0 0.0
  %2233 = vmatpush1.msra.mxu0 0.0
  %2234 = vmatprep.subr.mxu0 0.0
  %2235 = vmatpush1.msra.mxu0 0.0
  %2236 = vmatprep.subr.mxu0 0.0
  %2237 = vmatpush1.msra.mxu0 0.0
  %2238 = vmatprep.subr.mxu0 0.0
  %2239 = vmatpush1.msra.mxu0 0.0
  %2240 = vmatprep.subr.mxu0 0.0
  %2241 = vmatpush1.msra.mxu0 0.0
  %2242 = vmatprep.subr.mxu0 0.0
  %2243 = vmatpush1.msra.mxu0 0.0
  %2244 = vmatprep.subr.mxu0 0.0
  %2245 = vmatpush1.msra.mxu0 0.0
  %2246 = vmatprep.subr.mxu0 0.0
  %2247 = vmatpush1.msra.mxu0 0.0
  %2248 = vmatprep.subr.mxu0 0.0
  %2249 = vmatpush1.msra.mxu0 0.0
  %2250 = vmatprep.subr.mxu0 0.0
  %2251 = vmatpush1.msra.mxu0 0.0
  %2252 = vmatprep.subr.mxu0 0.0
  %2253 = vmatpush1.msra.mxu0 0.0
  %2254 = vmatprep.subr.mxu0 0.0
  %2255 = vmatpush1.msra.mxu0 0.0
  %2256 = vmatprep.subr.mxu0 0.0
  %2257 = vmatpush1.msra.mxu0 0.0
  %2258 = vmatprep.subr.mxu0 0.0
  %2259 = vmatpush1.msra.mxu0 0.0
  %2260 = vmatprep.subr.mxu0 0.0
  %2261 = vmatpush1.msra.mxu0 0.0
  %2262 = vmatprep.subr.mxu0 0.0
  %2263 = vmatpush1.msra.mxu0 0.0
  %2264 = vmatprep.subr.mxu0 0.0
  %2265 = vmatpush1.msra.mxu0 0.0
  %2266 = vmatprep.subr.mxu0 0.0
  %2267 = vmatpush1.msra.mxu0 0.0
  %2268 = vmatprep.subr.mxu0 0.0
  %2269 = vmatpush1.msra.mxu0 0.0
  %2270 = vmatprep.subr.mxu0 0.0
  %2271 = vmatpush1.msra.mxu0 0.0
  %2272 = vmatprep.subr.mxu0 0.0
  %2273 = vmatpush1.msra.mxu0 0.0
  %2274 = vmatprep.subr.mxu0 0.0
  %2275 = vmatpush1.msra.mxu0 0.0
  %2276 = vmatprep.subr.mxu0 0.0
  %2277 = vmatpush1.msra.mxu0 0.0
  %2278 = vmatprep.subr.mxu0 0.0
  %2279 = vmatpush1.msra.mxu0 0.0
  %2280 = vmatprep.subr.mxu0 0.0
  %2281 = vmatpush1.msra.mxu0 0.0
  %2282 = vmatprep.subr.mxu0 0.0
  %2283 = vmatpush1.msra.mxu0 0.0
  %2284 = vmatprep.subr.mxu0 0.0
  %2285 = vmatpush1.msra.mxu0 0.0
  %2286 = vmatprep.subr.mxu0 0.0
  %2287 = vmatpush1.msra.mxu0 0.0
  %2288 = vmatprep.mubr.f32.mxu0 0.0
  %2289 = vmatmul.mubr.f32.gmra.mrb[0].mxu0 %v2222
  %v2290 = vpop.f32.mrb[0].mxu0
  %v2291 = vadd.f32 %v2123, %v2290
  %v2292 = vpop.f32.mrb[0].mxu0
  %v2293 = vadd.f32 %v2125, %v2292
  %2294 = vdwg.mxu0
  %2295 = vmatprep.subr.mxu0 %v2216
  %2296 = vmatpush1.msra.mxu0 %v2215
  %2297 = vmatprep.subr.mxu0 0.0
  %2298 = vmatpush1.msra.mxu0 0.0
  %2299 = vmatprep.subr.mxu0 0.0
  %2300 = vmatpush1.msra.mxu0 0.0
  %2301 = vmatprep.subr.mxu0 0.0
  %2302 = vmatpush1.msra.mxu0 0.0
  %2303 = vmatprep.subr.mxu0 0.0
  %2304 = vmatpush1.msra.mxu0 0.0
  %2305 = vmatprep.subr.mxu0 0.0
  %2306 = vmatpush1.msra.mxu0 0.0
  %2307 = vmatprep.subr.mxu0 0.0
  %2308 = vmatpush1.msra.mxu0 0.0
  %2309 = vmatprep.subr.mxu0 0.0
  %2310 = vmatpush1.msra.mxu0 0.0
  %2311 = vmatprep.subr.mxu0 0.0
  %2312 = vmatpush1.msra.mxu0 0.0
  %2313 = vmatprep.subr.mxu0 0.0
  %2314 = vmatpush1.msra.mxu0 0.0
  %2315 = vmatprep.subr.mxu0 0.0
  %2316 = vmatpush1.msra.mxu0 0.0
  %2317 = vmatprep.subr.mxu0 0.0
  %2318 = vmatpush1.msra.mxu0 0.0
  %2319 = vmatprep.subr.mxu0 0.0
  %2320 = vmatpush1.msra.mxu0 0.0
  %2321 = vmatprep.subr.mxu0 0.0
  %2322 = vmatpush1.msra.mxu0 0.0
  %2323 = vmatprep.subr.mxu0 0.0
  %2324 = vmatpush1.msra.mxu0 0.0
  %2325 = vmatprep.subr.mxu0 0.0
  %2326 = vmatpush1.msra.mxu0 0.0
  %2327 = vmatprep.subr.mxu0 0.0
  %2328 = vmatpush1.msra.mxu0 0.0
  %2329 = vmatprep.subr.mxu0 0.0
  %2330 = vmatpush1.msra.mxu0 0.0
  %2331 = vmatprep.subr.mxu0 0.0
  %2332 = vmatpush1.msra.mxu0 0.0
  %2333 = vmatprep.subr.mxu0 0.0
  %2334 = vmatpush1.msra.mxu0 0.0
  %2335 = vmatprep.subr.mxu0 0.0
  %2336 = vmatpush1.msra.mxu0 0.0
  %2337 = vmatprep.subr.mxu0 0.0
  %2338 = vmatpush1.msra.mxu0 0.0
  %2339 = vmatprep.subr.mxu0 0.0
  %2340 = vmatpush1.msra.mxu0 0.0
  %2341 = vmatprep.subr.mxu0 0.0
  %2342 = vmatpush1.msra.mxu0 0.0
  %2343 = vmatprep.subr.mxu0 0.0
  %2344 = vmatpush1.msra.mxu0 0.0
  %2345 = vmatprep.subr.mxu0 0.0
  %2346 = vmatpush1.msra.mxu0 0.0
  %2347 = vmatprep.subr.mxu0 0.0
  %2348 = vmatpush1.msra.mxu0 0.0
  %2349 = vmatprep.subr.mxu0 0.0
  %2350 = vmatpush1.msra.mxu0 0.0
  %2351 = vmatprep.subr.mxu0 0.0
  %2352 = vmatpush1.msra.mxu0 0.0
  %2353 = vmatprep.subr.mxu0 0.0
  %2354 = vmatpush1.msra.mxu0 0.0
  %2355 = vmatprep.subr.mxu0 0.0
  %2356 = vmatpush1.msra.mxu0 0.0
  %2357 = vmatprep.subr.mxu0 0.0
  %2358 = vmatpush1.msra.mxu0 0.0
  %2359 = vmatprep.mubr.f32.mxu0 0.0
  %2360 = vmatmul.mubr.f32.gmra.mrb[0].mxu0 %v2222
  %v2361 = vpop.f32.mrb[0].mxu0
  %v2362 = vadd.f32 %v2194, %v2361
  %v2363 = vpop.f32.mrb[0].mxu0
  %v2364 = vadd.f32 %v2196, %v2363
  %2365 = vdwg.mxu0
  %v2366 = vmul.f32 %v2012, %v521
  %v2367 = vmul.f32 %v2013, %v529
  %v2368 = vmul.f32 %v2014, %v530
  %v2369 = vmul.f32 %v2015, %v531
  %v2370 = vmul.f32 %v2016, %v527
  %s2371 = scalar_lea.vmem %s6, 16
  %v2372 = vld [vmem:[%s2371] sm:$0xff]
  %2378 = vrot.lane.b32.xlu0 %v2366, 15
  %v2379 = vpop.permute.xlu0 %2378
  %2380 = vrot.lane.b32.xlu0 %v2367, 15
  %v2381 = vpop.permute.xlu0 %2380
  %2382 = vrot.lane.b32.xlu0 %v2368, 15
  %v2383 = vpop.permute.xlu0 %2382
  %2384 = vrot.lane.b32.xlu0 %v2369, 15
  %v2385 = vpop.permute.xlu0 %2384
  %2386 = vrot.lane.b32.xlu0 %v2370, 15
  %v2387 = vpop.permute.xlu0 %2386
  %v2388 = vsel %vm559, %v2379, %v2381
  %v2389 = vsel %vm559, %v2381, %v2383
  %v2390 = vsel %vm559, %v2383, %v2385
  %v2391 = vsel %vm559, %v2385, %v2387
  %v2397 = vsel %vm185, %v2372, 0
  %2399 = vmatprep.subr.mxu0 %v2389
  %2400 = vmatpush1.msra.mxu0 %v2388
  %2401 = vmatprep.subr.mxu0 0.0
  %2402 = vmatpush1.msra.mxu0 0.0
  %2403 = vmatprep.subr.mxu0 0.0
  %2404 = vmatpush1.msra.mxu0 0.0
  %2405 = vmatprep.subr.mxu0 0.0
  %2406 = vmatpush1.msra.mxu0 0.0
  %2407 = vmatprep.subr.mxu0 0.0
  %2408 = vmatpush1.msra.mxu0 0.0
  %2409 = vmatprep.subr.mxu0 0.0
  %2410 = vmatpush1.msra.mxu0 0.0
  %2411 = vmatprep.subr.mxu0 0.0
  %2412 = vmatpush1.msra.mxu0 0.0
  %2413 = vmatprep.subr.mxu0 0.0
  %2414 = vmatpush1.msra.mxu0 0.0
  %2415 = vmatprep.subr.mxu0 0.0
  %2416 = vmatpush1.msra.mxu0 0.0
  %2417 = vmatprep.subr.mxu0 0.0
  %2418 = vmatpush1.msra.mxu0 0.0
  %2419 = vmatprep.subr.mxu0 0.0
  %2420 = vmatpush1.msra.mxu0 0.0
  %2421 = vmatprep.subr.mxu0 0.0
  %2422 = vmatpush1.msra.mxu0 0.0
  %2423 = vmatprep.subr.mxu0 0.0
  %2424 = vmatpush1.msra.mxu0 0.0
  %2425 = vmatprep.subr.mxu0 0.0
  %2426 = vmatpush1.msra.mxu0 0.0
  %2427 = vmatprep.subr.mxu0 0.0
  %2428 = vmatpush1.msra.mxu0 0.0
  %2429 = vmatprep.subr.mxu0 0.0
  %2430 = vmatpush1.msra.mxu0 0.0
  %2431 = vmatprep.subr.mxu0 0.0
  %2432 = vmatpush1.msra.mxu0 0.0
  %2433 = vmatprep.subr.mxu0 0.0
  %2434 = vmatpush1.msra.mxu0 0.0
  %2435 = vmatprep.subr.mxu0 0.0
  %2436 = vmatpush1.msra.mxu0 0.0
  %2437 = vmatprep.subr.mxu0 0.0
  %2438 = vmatpush1.msra.mxu0 0.0
  %2439 = vmatprep.subr.mxu0 0.0
  %2440 = vmatpush1.msra.mxu0 0.0
  %2441 = vmatprep.subr.mxu0 0.0
  %2442 = vmatpush1.msra.mxu0 0.0
  %2443 = vmatprep.subr.mxu0 0.0
  %2444 = vmatpush1.msra.mxu0 0.0
  %2445 = vmatprep.subr.mxu0 0.0
  %2446 = vmatpush1.msra.mxu0 0.0
  %2447 = vmatprep.subr.mxu0 0.0
  %2448 = vmatpush1.msra.mxu0 0.0
  %2449 = vmatprep.subr.mxu0 0.0
  %2450 = vmatpush1.msra.mxu0 0.0
  %2451 = vmatprep.subr.mxu0 0.0
  %2452 = vmatpush1.msra.mxu0 0.0
  %2453 = vmatprep.subr.mxu0 0.0
  %2454 = vmatpush1.msra.mxu0 0.0
  %2455 = vmatprep.subr.mxu0 0.0
  %2456 = vmatpush1.msra.mxu0 0.0
  %2457 = vmatprep.subr.mxu0 0.0
  %2458 = vmatpush1.msra.mxu0 0.0
  %2459 = vmatprep.subr.mxu0 0.0
  %2460 = vmatpush1.msra.mxu0 0.0
  %2461 = vmatprep.subr.mxu0 0.0
  %2462 = vmatpush1.msra.mxu0 0.0
  %2463 = vmatprep.mubr.f32.mxu0 0.0
  %2464 = vmatmul.mubr.f32.gmra.mrb[0].mxu0 %v2397
  %v2465 = vpop.f32.mrb[0].mxu0
  %v2466 = vadd.f32 0.0, %v2465
  %v2467 = vpop.f32.mrb[0].mxu0
  %v2468 = vadd.f32 0.0, %v2467
  %2469 = vdwg.mxu0
  %2470 = vmatprep.subr.mxu0 %v2391
  %2471 = vmatpush1.msra.mxu0 %v2390
  %2472 = vmatprep.subr.mxu0 0.0
  %2473 = vmatpush1.msra.mxu0 0.0
  %2474 = vmatprep.subr.mxu0 0.0
  %2475 = vmatpush1.msra.mxu0 0.0
  %2476 = vmatprep.subr.mxu0 0.0
  %2477 = vmatpush1.msra.mxu0 0.0
  %2478 = vmatprep.subr.mxu0 0.0
  %2479 = vmatpush1.msra.mxu0 0.0
  %2480 = vmatprep.subr.mxu0 0.0
  %2481 = vmatpush1.msra.mxu0 0.0
  %2482 = vmatprep.subr.mxu0 0.0
  %2483 = vmatpush1.msra.mxu0 0.0
  %2484 = vmatprep.subr.mxu0 0.0
  %2485 = vmatpush1.msra.mxu0 0.0
  %2486 = vmatprep.subr.mxu0 0.0
  %2487 = vmatpush1.msra.mxu0 0.0
  %2488 = vmatprep.subr.mxu0 0.0
  %2489 = vmatpush1.msra.mxu0 0.0
  %2490 = vmatprep.subr.mxu0 0.0
  %2491 = vmatpush1.msra.mxu0 0.0
  %2492 = vmatprep.subr.mxu0 0.0
  %2493 = vmatpush1.msra.mxu0 0.0
  %2494 = vmatprep.subr.mxu0 0.0
  %2495 = vmatpush1.msra.mxu0 0.0
  %2496 = vmatprep.subr.mxu0 0.0
  %2497 = vmatpush1.msra.mxu0 0.0
  %2498 = vmatprep.subr.mxu0 0.0
  %2499 = vmatpush1.msra.mxu0 0.0
  %2500 = vmatprep.subr.mxu0 0.0
  %2501 = vmatpush1.msra.mxu0 0.0
  %2502 = vmatprep.subr.mxu0 0.0
  %2503 = vmatpush1.msra.mxu0 0.0
  %2504 = vmatprep.subr.mxu0 0.0
  %2505 = vmatpush1.msra.mxu0 0.0
  %2506 = vmatprep.subr.mxu0 0.0
  %2507 = vmatpush1.msra.mxu0 0.0
  %2508 = vmatprep.subr.mxu0 0.0
  %2509 = vmatpush1.msra.mxu0 0.0
  %2510 = vmatprep.subr.mxu0 0.0
  %2511 = vmatpush1.msra.mxu0 0.0
  %2512 = vmatprep.subr.mxu0 0.0
  %2513 = vmatpush1.msra.mxu0 0.0
  %2514 = vmatprep.subr.mxu0 0.0
  %2515 = vmatpush1.msra.mxu0 0.0
  %2516 = vmatprep.subr.mxu0 0.0
  %2517 = vmatpush1.msra.mxu0 0.0
  %2518 = vmatprep.subr.mxu0 0.0
  %2519 = vmatpush1.msra.mxu0 0.0
  %2520 = vmatprep.subr.mxu0 0.0
  %2521 = vmatpush1.msra.mxu0 0.0
  %2522 = vmatprep.subr.mxu0 0.0
  %2523 = vmatpush1.msra.mxu0 0.0
  %2524 = vmatprep.subr.mxu0 0.0
  %2525 = vmatpush1.msra.mxu0 0.0
  %2526 = vmatprep.subr.mxu0 0.0
  %2527 = vmatpush1.msra.mxu0 0.0
  %2528 = vmatprep.subr.mxu0 0.0
  %2529 = vmatpush1.msra.mxu0 0.0
  %2530 = vmatprep.subr.mxu0 0.0
  %2531 = vmatpush1.msra.mxu0 0.0
  %2532 = vmatprep.subr.mxu0 0.0
  %2533 = vmatpush1.msra.mxu0 0.0
  %2534 = vmatprep.mubr.f32.mxu0 0.0
  %2535 = vmatmul.mubr.f32.gmra.mrb[0].mxu0 %v2397
  %v2536 = vpop.f32.mrb[0].mxu0
  %v2537 = vadd.f32 0.0, %v2536
  %v2538 = vpop.f32.mrb[0].mxu0
  %v2539 = vadd.f32 0.0, %v2538
  %2540 = vdwg.mxu0
  %v2541 = vadd.f32 %v2291, %v2466
  %v2542 = vadd.f32 %v2293, %v2468
  %v2543 = vadd.f32 %v2362, %v2537
  %v2544 = vadd.f32 %v2364, %v2539
  %v2545 = vmul.f32 %v2012, %v738
  %v2546 = vmul.f32 %v2013, %v746
  %v2547 = vmul.f32 %v2014, %v747
  %v2548 = vmul.f32 %v2015, %v748
  %v2549 = vmul.f32 %v2016, %v744
  %s2550 = scalar_lea.vmem %s6, 24
  %v2551 = vld [vmem:[%s2550] sm:$0xff]
  %2557 = vrot.lane.b32.xlu0 %v2545, 1
  %v2558 = vpop.permute.xlu0 %2557
  %2559 = vrot.lane.b32.xlu0 %v2546, 1
  %v2560 = vpop.permute.xlu0 %2559
  %2561 = vrot.lane.b32.xlu0 %v2547, 1
  %v2562 = vpop.permute.xlu0 %2561
  %2563 = vrot.lane.b32.xlu0 %v2548, 1
  %v2564 = vpop.permute.xlu0 %2563
  %2565 = vrot.lane.b32.xlu0 %v2549, 1
  %v2566 = vpop.permute.xlu0 %2565
  %v2567 = vsel %vm776, %v2558, %v2560
  %v2568 = vsel %vm776, %v2560, %v2562
  %v2569 = vsel %vm776, %v2562, %v2564
  %v2570 = vsel %vm776, %v2564, %v2566
  %v2576 = vsel %vm185, %v2551, 0
  %2578 = vmatprep.subr.mxu0 %v2568
  %2579 = vmatpush1.msra.mxu0 %v2567
  %2580 = vmatprep.subr.mxu0 0.0
  %2581 = vmatpush1.msra.mxu0 0.0
  %2582 = vmatprep.subr.mxu0 0.0
  %2583 = vmatpush1.msra.mxu0 0.0
  %2584 = vmatprep.subr.mxu0 0.0
  %2585 = vmatpush1.msra.mxu0 0.0
  %2586 = vmatprep.subr.mxu0 0.0
  %2587 = vmatpush1.msra.mxu0 0.0
  %2588 = vmatprep.subr.mxu0 0.0
  %2589 = vmatpush1.msra.mxu0 0.0
  %2590 = vmatprep.subr.mxu0 0.0
  %2591 = vmatpush1.msra.mxu0 0.0
  %2592 = vmatprep.subr.mxu0 0.0
  %2593 = vmatpush1.msra.mxu0 0.0
  %2594 = vmatprep.subr.mxu0 0.0
  %2595 = vmatpush1.msra.mxu0 0.0
  %2596 = vmatprep.subr.mxu0 0.0
  %2597 = vmatpush1.msra.mxu0 0.0
  %2598 = vmatprep.subr.mxu0 0.0
  %2599 = vmatpush1.msra.mxu0 0.0
  %2600 = vmatprep.subr.mxu0 0.0
  %2601 = vmatpush1.msra.mxu0 0.0
  %2602 = vmatprep.subr.mxu0 0.0
  %2603 = vmatpush1.msra.mxu0 0.0
  %2604 = vmatprep.subr.mxu0 0.0
  %2605 = vmatpush1.msra.mxu0 0.0
  %2606 = vmatprep.subr.mxu0 0.0
  %2607 = vmatpush1.msra.mxu0 0.0
  %2608 = vmatprep.subr.mxu0 0.0
  %2609 = vmatpush1.msra.mxu0 0.0
  %2610 = vmatprep.subr.mxu0 0.0
  %2611 = vmatpush1.msra.mxu0 0.0
  %2612 = vmatprep.subr.mxu0 0.0
  %2613 = vmatpush1.msra.mxu0 0.0
  %2614 = vmatprep.subr.mxu0 0.0
  %2615 = vmatpush1.msra.mxu0 0.0
  %2616 = vmatprep.subr.mxu0 0.0
  %2617 = vmatpush1.msra.mxu0 0.0
  %2618 = vmatprep.subr.mxu0 0.0
  %2619 = vmatpush1.msra.mxu0 0.0
  %2620 = vmatprep.subr.mxu0 0.0
  %2621 = vmatpush1.msra.mxu0 0.0
  %2622 = vmatprep.subr.mxu0 0.0
  %2623 = vmatpush1.msra.mxu0 0.0
  %2624 = vmatprep.subr.mxu0 0.0
  %2625 = vmatpush1.msra.mxu0 0.0
  %2626 = vmatprep.subr.mxu0 0.0
  %2627 = vmatpush1.msra.mxu0 0.0
  %2628 = vmatprep.subr.mxu0 0.0
  %2629 = vmatpush1.msra.mxu0 0.0
  %2630 = vmatprep.subr.mxu0 0.0
  %2631 = vmatpush1.msra.mxu0 0.0
  %2632 = vmatprep.subr.mxu0 0.0
  %2633 = vmatpush1.msra.mxu0 0.0
  %2634 = vmatprep.subr.mxu0 0.0
  %2635 = vmatpush1.msra.mxu0 0.0
  %2636 = vmatprep.subr.mxu0 0.0
  %2637 = vmatpush1.msra.mxu0 0.0
  %2638 = vmatprep.subr.mxu0 0.0
  %2639 = vmatpush1.msra.mxu0 0.0
  %2640 = vmatprep.subr.mxu0 0.0
  %2641 = vmatpush1.msra.mxu0 0.0
  %2642 = vmatprep.mubr.f32.mxu0 0.0
  %2643 = vmatmul.mubr.f32.gmra.mrb[0].mxu0 %v2576
  %v2644 = vpop.f32.mrb[0].mxu0
  %v2645 = vadd.f32 0.0, %v2644
  %v2646 = vpop.f32.mrb[0].mxu0
  %v2647 = vadd.f32 0.0, %v2646
  %2648 = vdwg.mxu0
  %2649 = vmatprep.subr.mxu0 %v2570
  %2650 = vmatpush1.msra.mxu0 %v2569
  %2651 = vmatprep.subr.mxu0 0.0
  %2652 = vmatpush1.msra.mxu0 0.0
  %2653 = vmatprep.subr.mxu0 0.0
  %2654 = vmatpush1.msra.mxu0 0.0
  %2655 = vmatprep.subr.mxu0 0.0
  %2656 = vmatpush1.msra.mxu0 0.0
  %2657 = vmatprep.subr.mxu0 0.0
  %2658 = vmatpush1.msra.mxu0 0.0
  %2659 = vmatprep.subr.mxu0 0.0
  %2660 = vmatpush1.msra.mxu0 0.0
  %2661 = vmatprep.subr.mxu0 0.0
  %2662 = vmatpush1.msra.mxu0 0.0
  %2663 = vmatprep.subr.mxu0 0.0
  %2664 = vmatpush1.msra.mxu0 0.0
  %2665 = vmatprep.subr.mxu0 0.0
  %2666 = vmatpush1.msra.mxu0 0.0
  %2667 = vmatprep.subr.mxu0 0.0
  %2668 = vmatpush1.msra.mxu0 0.0
  %2669 = vmatprep.subr.mxu0 0.0
  %2670 = vmatpush1.msra.mxu0 0.0
  %2671 = vmatprep.subr.mxu0 0.0
  %2672 = vmatpush1.msra.mxu0 0.0
  %2673 = vmatprep.subr.mxu0 0.0
  %2674 = vmatpush1.msra.mxu0 0.0
  %2675 = vmatprep.subr.mxu0 0.0
  %2676 = vmatpush1.msra.mxu0 0.0
  %2677 = vmatprep.subr.mxu0 0.0
  %2678 = vmatpush1.msra.mxu0 0.0
  %2679 = vmatprep.subr.mxu0 0.0
  %2680 = vmatpush1.msra.mxu0 0.0
  %2681 = vmatprep.subr.mxu0 0.0
  %2682 = vmatpush1.msra.mxu0 0.0
  %2683 = vmatprep.subr.mxu0 0.0
  %2684 = vmatpush1.msra.mxu0 0.0
  %2685 = vmatprep.subr.mxu0 0.0
  %2686 = vmatpush1.msra.mxu0 0.0
  %2687 = vmatprep.subr.mxu0 0.0
  %2688 = vmatpush1.msra.mxu0 0.0
  %2689 = vmatprep.subr.mxu0 0.0
  %2690 = vmatpush1.msra.mxu0 0.0
  %2691 = vmatprep.subr.mxu0 0.0
  %2692 = vmatpush1.msra.mxu0 0.0
  %2693 = vmatprep.subr.mxu0 0.0
  %2694 = vmatpush1.msra.mxu0 0.0
  %2695 = vmatprep.subr.mxu0 0.0
  %2696 = vmatpush1.msra.mxu0 0.0
  %2697 = vmatprep.subr.mxu0 0.0
  %2698 = vmatpush1.msra.mxu0 0.0
  %2699 = vmatprep.subr.mxu0 0.0
  %2700 = vmatpush1.msra.mxu0 0.0
  %2701 = vmatprep.subr.mxu0 0.0
  %2702 = vmatpush1.msra.mxu0 0.0
  %2703 = vmatprep.subr.mxu0 0.0
  %2704 = vmatpush1.msra.mxu0 0.0
  %2705 = vmatprep.subr.mxu0 0.0
  %2706 = vmatpush1.msra.mxu0 0.0
  %2707 = vmatprep.subr.mxu0 0.0
  %2708 = vmatpush1.msra.mxu0 0.0
  %2709 = vmatprep.subr.mxu0 0.0
  %2710 = vmatpush1.msra.mxu0 0.0
  %2711 = vmatprep.subr.mxu0 0.0
  %2712 = vmatpush1.msra.mxu0 0.0
  %2713 = vmatprep.mubr.f32.mxu0 0.0
  %2714 = vmatmul.mubr.f32.gmra.mrb[0].mxu0 %v2576
  %v2715 = vpop.f32.mrb[0].mxu0
  %v2716 = vadd.f32 0.0, %v2715
  %v2717 = vpop.f32.mrb[0].mxu0
  %v2718 = vadd.f32 0.0, %v2717
  %2719 = vdwg.mxu0
  %v2720 = vadd.f32 %v2541, %v2645
  %v2721 = vadd.f32 %v2542, %v2647
  %v2722 = vadd.f32 %v2543, %v2716
  %v2723 = vadd.f32 %v2544, %v2718
  %s2724 = scalar_lea.vmem %s6, 32
  %v2725 = vld [vmem:[%s2724] sm:$0xff]
  %v2727 = vsel %vm185, %v2725, 0
  %2729 = vmatprep.subr.mxu0 %v2014
  %2730 = vmatpush1.msra.mxu0 %v2013
  %2731 = vmatprep.subr.mxu0 0.0
  %2732 = vmatpush1.msra.mxu0 0.0
  %2733 = vmatprep.subr.mxu0 0.0
  %2734 = vmatpush1.msra.mxu0 0.0
  %2735 = vmatprep.subr.mxu0 0.0
  %2736 = vmatpush1.msra.mxu0 0.0
  %2737 = vmatprep.subr.mxu0 0.0
  %2738 = vmatpush1.msra.mxu0 0.0
  %2739 = vmatprep.subr.mxu0 0.0
  %2740 = vmatpush1.msra.mxu0 0.0
  %2741 = vmatprep.subr.mxu0 0.0
  %2742 = vmatpush1.msra.mxu0 0.0
  %2743 = vmatprep.subr.mxu0 0.0
  %2744 = vmatpush1.msra.mxu0 0.0
  %2745 = vmatprep.subr.mxu0 0.0
  %2746 = vmatpush1.msra.mxu0 0.0
  %2747 = vmatprep.subr.mxu0 0.0
  %2748 = vmatpush1.msra.mxu0 0.0
  %2749 = vmatprep.subr.mxu0 0.0
  %2750 = vmatpush1.msra.mxu0 0.0
  %2751 = vmatprep.subr.mxu0 0.0
  %2752 = vmatpush1.msra.mxu0 0.0
  %2753 = vmatprep.subr.mxu0 0.0
  %2754 = vmatpush1.msra.mxu0 0.0
  %2755 = vmatprep.subr.mxu0 0.0
  %2756 = vmatpush1.msra.mxu0 0.0
  %2757 = vmatprep.subr.mxu0 0.0
  %2758 = vmatpush1.msra.mxu0 0.0
  %2759 = vmatprep.subr.mxu0 0.0
  %2760 = vmatpush1.msra.mxu0 0.0
  %2761 = vmatprep.subr.mxu0 0.0
  %2762 = vmatpush1.msra.mxu0 0.0
  %2763 = vmatprep.subr.mxu0 0.0
  %2764 = vmatpush1.msra.mxu0 0.0
  %2765 = vmatprep.subr.mxu0 0.0
  %2766 = vmatpush1.msra.mxu0 0.0
  %2767 = vmatprep.subr.mxu0 0.0
  %2768 = vmatpush1.msra.mxu0 0.0
  %2769 = vmatprep.subr.mxu0 0.0
  %2770 = vmatpush1.msra.mxu0 0.0
  %2771 = vmatprep.subr.mxu0 0.0
  %2772 = vmatpush1.msra.mxu0 0.0
  %2773 = vmatprep.subr.mxu0 0.0
  %2774 = vmatpush1.msra.mxu0 0.0
  %2775 = vmatprep.subr.mxu0 0.0
  %2776 = vmatpush1.msra.mxu0 0.0
  %2777 = vmatprep.subr.mxu0 0.0
  %2778 = vmatpush1.msra.mxu0 0.0
  %2779 = vmatprep.subr.mxu0 0.0
  %2780 = vmatpush1.msra.mxu0 0.0
  %2781 = vmatprep.subr.mxu0 0.0
  %2782 = vmatpush1.msra.mxu0 0.0
  %2783 = vmatprep.subr.mxu0 0.0
  %2784 = vmatpush1.msra.mxu0 0.0
  %2785 = vmatprep.subr.mxu0 0.0
  %2786 = vmatpush1.msra.mxu0 0.0
  %2787 = vmatprep.subr.mxu0 0.0
  %2788 = vmatpush1.msra.mxu0 0.0
  %2789 = vmatprep.subr.mxu0 0.0
  %2790 = vmatpush1.msra.mxu0 0.0
  %2791 = vmatprep.subr.mxu0 0.0
  %2792 = vmatpush1.msra.mxu0 0.0
  %2793 = vmatprep.mubr.f32.mxu0 0.0
  %2794 = vmatmul.mubr.f32.gmra.mrb[0].mxu0 %v2727
  %v2795 = vpop.f32.mrb[0].mxu0
  %v2796 = vadd.f32 0.0, %v2795
  %v2797 = vpop.f32.mrb[0].mxu0
  %v2798 = vadd.f32 0.0, %v2797
  %2799 = vdwg.mxu0
  %2800 = vmatprep.subr.mxu0 %v2016
  %2801 = vmatpush1.msra.mxu0 %v2015
  %2802 = vmatprep.subr.mxu0 0.0
  %2803 = vmatpush1.msra.mxu0 0.0
  %2804 = vmatprep.subr.mxu0 0.0
  %2805 = vmatpush1.msra.mxu0 0.0
  %2806 = vmatprep.subr.mxu0 0.0
  %2807 = vmatpush1.msra.mxu0 0.0
  %2808 = vmatprep.subr.mxu0 0.0
  %2809 = vmatpush1.msra.mxu0 0.0
  %2810 = vmatprep.subr.mxu0 0.0
  %2811 = vmatpush1.msra.mxu0 0.0
  %2812 = vmatprep.subr.mxu0 0.0
  %2813 = vmatpush1.msra.mxu0 0.0
  %2814 = vmatprep.subr.mxu0 0.0
  %2815 = vmatpush1.msra.mxu0 0.0
  %2816 = vmatprep.subr.mxu0 0.0
  %2817 = vmatpush1.msra.mxu0 0.0
  %2818 = vmatprep.subr.mxu0 0.0
  %2819 = vmatpush1.msra.mxu0 0.0
  %2820 = vmatprep.subr.mxu0 0.0
  %2821 = vmatpush1.msra.mxu0 0.0
  %2822 = vmatprep.subr.mxu0 0.0
  %2823 = vmatpush1.msra.mxu0 0.0
  %2824 = vmatprep.subr.mxu0 0.0
  %2825 = vmatpush1.msra.mxu0 0.0
  %2826 = vmatprep.subr.mxu0 0.0
  %2827 = vmatpush1.msra.mxu0 0.0
  %2828 = vmatprep.subr.mxu0 0.0
  %2829 = vmatpush1.msra.mxu0 0.0
  %2830 = vmatprep.subr.mxu0 0.0
  %2831 = vmatpush1.msra.mxu0 0.0
  %2832 = vmatprep.subr.mxu0 0.0
  %2833 = vmatpush1.msra.mxu0 0.0
  %2834 = vmatprep.subr.mxu0 0.0
  %2835 = vmatpush1.msra.mxu0 0.0
  %2836 = vmatprep.subr.mxu0 0.0
  %2837 = vmatpush1.msra.mxu0 0.0
  %2838 = vmatprep.subr.mxu0 0.0
  %2839 = vmatpush1.msra.mxu0 0.0
  %2840 = vmatprep.subr.mxu0 0.0
  %2841 = vmatpush1.msra.mxu0 0.0
  %2842 = vmatprep.subr.mxu0 0.0
  %2843 = vmatpush1.msra.mxu0 0.0
  %2844 = vmatprep.subr.mxu0 0.0
  %2845 = vmatpush1.msra.mxu0 0.0
  %2846 = vmatprep.subr.mxu0 0.0
  %2847 = vmatpush1.msra.mxu0 0.0
  %2848 = vmatprep.subr.mxu0 0.0
  %2849 = vmatpush1.msra.mxu0 0.0
  %2850 = vmatprep.subr.mxu0 0.0
  %2851 = vmatpush1.msra.mxu0 0.0
  %2852 = vmatprep.subr.mxu0 0.0
  %2853 = vmatpush1.msra.mxu0 0.0
  %2854 = vmatprep.subr.mxu0 0.0
  %2855 = vmatpush1.msra.mxu0 0.0
  %2856 = vmatprep.subr.mxu0 0.0
  %2857 = vmatpush1.msra.mxu0 0.0
  %2858 = vmatprep.subr.mxu0 0.0
  %2859 = vmatpush1.msra.mxu0 0.0
  %2860 = vmatprep.subr.mxu0 0.0
  %2861 = vmatpush1.msra.mxu0 0.0
  %2862 = vmatprep.subr.mxu0 0.0
  %2863 = vmatpush1.msra.mxu0 0.0
  %2864 = vmatprep.mubr.f32.mxu0 0.0
  %2865 = vmatmul.mubr.f32.gmra.mrb[0].mxu0 %v2727
  %v2866 = vpop.f32.mrb[0].mxu0
  %v2867 = vadd.f32 0.0, %v2866
  %v2868 = vpop.f32.mrb[0].mxu0
  %v2869 = vadd.f32 0.0, %v2868
  %2870 = vdwg.mxu0
  %v2871 = vadd.f32 %v2720, %v2796
  %v2872 = vadd.f32 %v2721, %v2798
  %v2873 = vadd.f32 %v2722, %v2867
  %v2874 = vadd.f32 %v2723, %v2869
  %v2875 = vld [vmem:[#allocation2 + $0x8] sm:$0xff]
  %v2876 = vld [vmem:[#allocation2 + $0x10] sm:$0xff]
  %v2877 = vld [vmem:[#allocation2 + $0x18] sm:$0xff]
  %v2878 = vld [vmem:[#allocation2 + $0x20] sm:$0xff]
  %v2879 = vld [vmem:[#allocation2 + $0x28] sm:$0xff]
  %v2880 = vmul.f32 %v2875, %v1111
  %v2881 = vmul.f32 %v2876, %v1118
  %v2882 = vmul.f32 %v2877, %v1119
  %v2883 = vmul.f32 %v2878, %v1120
  %v2884 = vmul.f32 %v2879, %v1117
  %s2885 = scalar_lea.vmem %s6, 40
  %v2886 = vld [vmem:[%s2885] sm:$0xff]
  %2892 = vrot.lane.b32.xlu0 %v2880, 127
  %v2893 = vpop.permute.xlu0 %2892
  %2894 = vrot.lane.b32.xlu0 %v2881, 127
  %v2895 = vpop.permute.xlu0 %2894
  %2896 = vrot.lane.b32.xlu0 %v2882, 127
  %v2897 = vpop.permute.xlu0 %2896
  %2898 = vrot.lane.b32.xlu0 %v2883, 127
  %v2899 = vpop.permute.xlu0 %2898
  %2900 = vrot.lane.b32.xlu0 %v2884, 127
  %v2901 = vpop.permute.xlu0 %2900
  %v2902 = vsel %vm745, %v2893, %v2895
  %v2903 = vsel %vm745, %v2895, %v2897
  %v2904 = vsel %vm745, %v2897, %v2899
  %v2905 = vsel %vm745, %v2899, %v2901
  %v2911 = vsel %vm185, %v2886, 0
  %2913 = vmatprep.subr.mxu0 %v2903
  %2914 = vmatpush1.msra.mxu0 %v2902
  %2915 = vmatprep.subr.mxu0 0.0
  %2916 = vmatpush1.msra.mxu0 0.0
  %2917 = vmatprep.subr.mxu0 0.0
  %2918 = vmatpush1.msra.mxu0 0.0
  %2919 = vmatprep.subr.mxu0 0.0
  %2920 = vmatpush1.msra.mxu0 0.0
  %2921 = vmatprep.subr.mxu0 0.0
  %2922 = vmatpush1.msra.mxu0 0.0
  %2923 = vmatprep.subr.mxu0 0.0
  %2924 = vmatpush1.msra.mxu0 0.0
  %2925 = vmatprep.subr.mxu0 0.0
  %2926 = vmatpush1.msra.mxu0 0.0
  %2927 = vmatprep.subr.mxu0 0.0
  %2928 = vmatpush1.msra.mxu0 0.0
  %2929 = vmatprep.subr.mxu0 0.0
  %2930 = vmatpush1.msra.mxu0 0.0
  %2931 = vmatprep.subr.mxu0 0.0
  %2932 = vmatpush1.msra.mxu0 0.0
  %2933 = vmatprep.subr.mxu0 0.0
  %2934 = vmatpush1.msra.mxu0 0.0
  %2935 = vmatprep.subr.mxu0 0.0
  %2936 = vmatpush1.msra.mxu0 0.0
  %2937 = vmatprep.subr.mxu0 0.0
  %2938 = vmatpush1.msra.mxu0 0.0
  %2939 = vmatprep.subr.mxu0 0.0
  %2940 = vmatpush1.msra.mxu0 0.0
  %2941 = vmatprep.subr.mxu0 0.0
  %2942 = vmatpush1.msra.mxu0 0.0
  %2943 = vmatprep.subr.mxu0 0.0
  %2944 = vmatpush1.msra.mxu0 0.0
  %2945 = vmatprep.subr.mxu0 0.0
  %2946 = vmatpush1.msra.mxu0 0.0
  %2947 = vmatprep.subr.mxu0 0.0
  %2948 = vmatpush1.msra.mxu0 0.0
  %2949 = vmatprep.subr.mxu0 0.0
  %2950 = vmatpush1.msra.mxu0 0.0
  %2951 = vmatprep.subr.mxu0 0.0
  %2952 = vmatpush1.msra.mxu0 0.0
  %2953 = vmatprep.subr.mxu0 0.0
  %2954 = vmatpush1.msra.mxu0 0.0
  %2955 = vmatprep.subr.mxu0 0.0
  %2956 = vmatpush1.msra.mxu0 0.0
  %2957 = vmatprep.subr.mxu0 0.0
  %2958 = vmatpush1.msra.mxu0 0.0
  %2959 = vmatprep.subr.mxu0 0.0
  %2960 = vmatpush1.msra.mxu0 0.0
  %2961 = vmatprep.subr.mxu0 0.0
  %2962 = vmatpush1.msra.mxu0 0.0
  %2963 = vmatprep.subr.mxu0 0.0
  %2964 = vmatpush1.msra.mxu0 0.0
  %2965 = vmatprep.subr.mxu0 0.0
  %2966 = vmatpush1.msra.mxu0 0.0
  %2967 = vmatprep.subr.mxu0 0.0
  %2968 = vmatpush1.msra.mxu0 0.0
  %2969 = vmatprep.subr.mxu0 0.0
  %2970 = vmatpush1.msra.mxu0 0.0
  %2971 = vmatprep.subr.mxu0 0.0
  %2972 = vmatpush1.msra.mxu0 0.0
  %2973 = vmatprep.subr.mxu0 0.0
  %2974 = vmatpush1.msra.mxu0 0.0
  %2975 = vmatprep.subr.mxu0 0.0
  %2976 = vmatpush1.msra.mxu0 0.0
  %2977 = vmatprep.mubr.f32.mxu0 0.0
  %2978 = vmatmul.mubr.f32.gmra.mrb[0].mxu0 %v2911
  %v2979 = vpop.f32.mrb[0].mxu0
  %v2980 = vadd.f32 0.0, %v2979
  %v2981 = vpop.f32.mrb[0].mxu0
  %v2982 = vadd.f32 0.0, %v2981
  %2983 = vdwg.mxu0
  %2984 = vmatprep.subr.mxu0 %v2905
  %2985 = vmatpush1.msra.mxu0 %v2904
  %2986 = vmatprep.subr.mxu0 0.0
  %2987 = vmatpush1.msra.mxu0 0.0
  %2988 = vmatprep.subr.mxu0 0.0
  %2989 = vmatpush1.msra.mxu0 0.0
  %2990 = vmatprep.subr.mxu0 0.0
  %2991 = vmatpush1.msra.mxu0 0.0
  %2992 = vmatprep.subr.mxu0 0.0
  %2993 = vmatpush1.msra.mxu0 0.0
  %2994 = vmatprep.subr.mxu0 0.0
  %2995 = vmatpush1.msra.mxu0 0.0
  %2996 = vmatprep.subr.mxu0 0.0
  %2997 = vmatpush1.msra.mxu0 0.0
  %2998 = vmatprep.subr.mxu0 0.0
  %2999 = vmatpush1.msra.mxu0 0.0
  %3000 = vmatprep.subr.mxu0 0.0
  %3001 = vmatpush1.msra.mxu0 0.0
  %3002 = vmatprep.subr.mxu0 0.0
  %3003 = vmatpush1.msra.mxu0 0.0
  %3004 = vmatprep.subr.mxu0 0.0
  %3005 = vmatpush1.msra.mxu0 0.0
  %3006 = vmatprep.subr.mxu0 0.0
  %3007 = vmatpush1.msra.mxu0 0.0
  %3008 = vmatprep.subr.mxu0 0.0
  %3009 = vmatpush1.msra.mxu0 0.0
  %3010 = vmatprep.subr.mxu0 0.0
  %3011 = vmatpush1.msra.mxu0 0.0
  %3012 = vmatprep.subr.mxu0 0.0
  %3013 = vmatpush1.msra.mxu0 0.0
  %3014 = vmatprep.subr.mxu0 0.0
  %3015 = vmatpush1.msra.mxu0 0.0
  %3016 = vmatprep.subr.mxu0 0.0
  %3017 = vmatpush1.msra.mxu0 0.0
  %3018 = vmatprep.subr.mxu0 0.0
  %3019 = vmatpush1.msra.mxu0 0.0
  %3020 = vmatprep.subr.mxu0 0.0
  %3021 = vmatpush1.msra.mxu0 0.0
  %3022 = vmatprep.subr.mxu0 0.0
  %3023 = vmatpush1.msra.mxu0 0.0
  %3024 = vmatprep.subr.mxu0 0.0
  %3025 = vmatpush1.msra.mxu0 0.0
  %3026 = vmatprep.subr.mxu0 0.0
  %3027 = vmatpush1.msra.mxu0 0.0
  %3028 = vmatprep.subr.mxu0 0.0
  %3029 = vmatpush1.msra.mxu0 0.0
  %3030 = vmatprep.subr.mxu0 0.0
  %3031 = vmatpush1.msra.mxu0 0.0
  %3032 = vmatprep.subr.mxu0 0.0
  %3033 = vmatpush1.msra.mxu0 0.0
  %3034 = vmatprep.subr.mxu0 0.0
  %3035 = vmatpush1.msra.mxu0 0.0
  %3036 = vmatprep.subr.mxu0 0.0
  %3037 = vmatpush1.msra.mxu0 0.0
  %3038 = vmatprep.subr.mxu0 0.0
  %3039 = vmatpush1.msra.mxu0 0.0
  %3040 = vmatprep.subr.mxu0 0.0
  %3041 = vmatpush1.msra.mxu0 0.0
  %3042 = vmatprep.subr.mxu0 0.0
  %3043 = vmatpush1.msra.mxu0 0.0
  %3044 = vmatprep.subr.mxu0 0.0
  %3045 = vmatpush1.msra.mxu0 0.0
  %3046 = vmatprep.subr.mxu0 0.0
  %3047 = vmatpush1.msra.mxu0 0.0
  %3048 = vmatprep.mubr.f32.mxu0 0.0
  %3049 = vmatmul.mubr.f32.gmra.mrb[0].mxu0 %v2911
  %v3050 = vpop.f32.mrb[0].mxu0
  %v3051 = vadd.f32 0.0, %v3050
  %v3052 = vpop.f32.mrb[0].mxu0
  %v3053 = vadd.f32 0.0, %v3052
  %3054 = vdwg.mxu0
  %v3055 = vadd.f32 %v2871, %v2980
  %v3056 = vadd.f32 %v2872, %v2982
  %v3057 = vadd.f32 %v2873, %v3051
  %v3058 = vadd.f32 %v2874, %v3053
  %v3059 = vmul.f32 %v2875, %v1326
  %v3060 = vmul.f32 %v2876, %v1333
  %v3061 = vmul.f32 %v2877, %v1334
  %v3062 = vmul.f32 %v2878, %v1335
  %v3063 = vmul.f32 %v2879, %v1332
  %s3064 = scalar_lea.vmem %s6, 48
  %v3065 = vld [vmem:[%s3064] sm:$0xff]
  %3071 = vrot.lane.b32.xlu0 %v3059, 113
  %v3072 = vpop.permute.xlu0 %3071
  %3073 = vrot.lane.b32.xlu0 %v3060, 113
  %v3074 = vpop.permute.xlu0 %3073
  %3075 = vrot.lane.b32.xlu0 %v3061, 113
  %v3076 = vpop.permute.xlu0 %3075
  %3077 = vrot.lane.b32.xlu0 %v3062, 113
  %v3078 = vpop.permute.xlu0 %3077
  %3079 = vrot.lane.b32.xlu0 %v3063, 113
  %v3080 = vpop.permute.xlu0 %3079
  %v3081 = vsel %vm528, %v3072, %v3074
  %v3082 = vsel %vm528, %v3074, %v3076
  %v3083 = vsel %vm528, %v3076, %v3078
  %v3084 = vsel %vm528, %v3078, %v3080
  %v3090 = vsel %vm185, %v3065, 0
  %3092 = vmatprep.subr.mxu0 %v3082
  %3093 = vmatpush1.msra.mxu0 %v3081
  %3094 = vmatprep.subr.mxu0 0.0
  %3095 = vmatpush1.msra.mxu0 0.0
  %3096 = vmatprep.subr.mxu0 0.0
  %3097 = vmatpush1.msra.mxu0 0.0
  %3098 = vmatprep.subr.mxu0 0.0
  %3099 = vmatpush1.msra.mxu0 0.0
  %3100 = vmatprep.subr.mxu0 0.0
  %3101 = vmatpush1.msra.mxu0 0.0
  %3102 = vmatprep.subr.mxu0 0.0
  %3103 = vmatpush1.msra.mxu0 0.0
  %3104 = vmatprep.subr.mxu0 0.0
  %3105 = vmatpush1.msra.mxu0 0.0
  %3106 = vmatprep.subr.mxu0 0.0
  %3107 = vmatpush1.msra.mxu0 0.0
  %3108 = vmatprep.subr.mxu0 0.0
  %3109 = vmatpush1.msra.mxu0 0.0
  %3110 = vmatprep.subr.mxu0 0.0
  %3111 = vmatpush1.msra.mxu0 0.0
  %3112 = vmatprep.subr.mxu0 0.0
  %3113 = vmatpush1.msra.mxu0 0.0
  %3114 = vmatprep.subr.mxu0 0.0
  %3115 = vmatpush1.msra.mxu0 0.0
  %3116 = vmatprep.subr.mxu0 0.0
  %3117 = vmatpush1.msra.mxu0 0.0
  %3118 = vmatprep.subr.mxu0 0.0
  %3119 = vmatpush1.msra.mxu0 0.0
  %3120 = vmatprep.subr.mxu0 0.0
  %3121 = vmatpush1.msra.mxu0 0.0
  %3122 = vmatprep.subr.mxu0 0.0
  %3123 = vmatpush1.msra.mxu0 0.0
  %3124 = vmatprep.subr.mxu0 0.0
  %3125 = vmatpush1.msra.mxu0 0.0
  %3126 = vmatprep.subr.mxu0 0.0
  %3127 = vmatpush1.msra.mxu0 0.0
  %3128 = vmatprep.subr.mxu0 0.0
  %3129 = vmatpush1.msra.mxu0 0.0
  %3130 = vmatprep.subr.mxu0 0.0
  %3131 = vmatpush1.msra.mxu0 0.0
  %3132 = vmatprep.subr.mxu0 0.0
  %3133 = vmatpush1.msra.mxu0 0.0
  %3134 = vmatprep.subr.mxu0 0.0
  %3135 = vmatpush1.msra.mxu0 0.0
  %3136 = vmatprep.subr.mxu0 0.0
  %3137 = vmatpush1.msra.mxu0 0.0
  %3138 = vmatprep.subr.mxu0 0.0
  %3139 = vmatpush1.msra.mxu0 0.0
  %3140 = vmatprep.subr.mxu0 0.0
  %3141 = vmatpush1.msra.mxu0 0.0
  %3142 = vmatprep.subr.mxu0 0.0
  %3143 = vmatpush1.msra.mxu0 0.0
  %3144 = vmatprep.subr.mxu0 0.0
  %3145 = vmatpush1.msra.mxu0 0.0
  %3146 = vmatprep.subr.mxu0 0.0
  %3147 = vmatpush1.msra.mxu0 0.0
  %3148 = vmatprep.subr.mxu0 0.0
  %3149 = vmatpush1.msra.mxu0 0.0
  %3150 = vmatprep.subr.mxu0 0.0
  %3151 = vmatpush1.msra.mxu0 0.0
  %3152 = vmatprep.subr.mxu0 0.0
  %3153 = vmatpush1.msra.mxu0 0.0
  %3154 = vmatprep.subr.mxu0 0.0
  %3155 = vmatpush1.msra.mxu0 0.0
  %3156 = vmatprep.mubr.f32.mxu0 0.0
  %3157 = vmatmul.mubr.f32.gmra.mrb[0].mxu0 %v3090
  %v3158 = vpop.f32.mrb[0].mxu0
  %v3159 = vadd.f32 0.0, %v3158
  %v3160 = vpop.f32.mrb[0].mxu0
  %v3161 = vadd.f32 0.0, %v3160
  %3162 = vdwg.mxu0
  %3163 = vmatprep.subr.mxu0 %v3084
  %3164 = vmatpush1.msra.mxu0 %v3083
  %3165 = vmatprep.subr.mxu0 0.0
  %3166 = vmatpush1.msra.mxu0 0.0
  %3167 = vmatprep.subr.mxu0 0.0
  %3168 = vmatpush1.msra.mxu0 0.0
  %3169 = vmatprep.subr.mxu0 0.0
  %3170 = vmatpush1.msra.mxu0 0.0
  %3171 = vmatprep.subr.mxu0 0.0
  %3172 = vmatpush1.msra.mxu0 0.0
  %3173 = vmatprep.subr.mxu0 0.0
  %3174 = vmatpush1.msra.mxu0 0.0
  %3175 = vmatprep.subr.mxu0 0.0
  %3176 = vmatpush1.msra.mxu0 0.0
  %3177 = vmatprep.subr.mxu0 0.0
  %3178 = vmatpush1.msra.mxu0 0.0
  %3179 = vmatprep.subr.mxu0 0.0
  %3180 = vmatpush1.msra.mxu0 0.0
  %3181 = vmatprep.subr.mxu0 0.0
  %3182 = vmatpush1.msra.mxu0 0.0
  %3183 = vmatprep.subr.mxu0 0.0
  %3184 = vmatpush1.msra.mxu0 0.0
  %3185 = vmatprep.subr.mxu0 0.0
  %3186 = vmatpush1.msra.mxu0 0.0
  %3187 = vmatprep.subr.mxu0 0.0
  %3188 = vmatpush1.msra.mxu0 0.0
  %3189 = vmatprep.subr.mxu0 0.0
  %3190 = vmatpush1.msra.mxu0 0.0
  %3191 = vmatprep.subr.mxu0 0.0
  %3192 = vmatpush1.msra.mxu0 0.0
  %3193 = vmatprep.subr.mxu0 0.0
  %3194 = vmatpush1.msra.mxu0 0.0
  %3195 = vmatprep.subr.mxu0 0.0
  %3196 = vmatpush1.msra.mxu0 0.0
  %3197 = vmatprep.subr.mxu0 0.0
  %3198 = vmatpush1.msra.mxu0 0.0
  %3199 = vmatprep.subr.mxu0 0.0
  %3200 = vmatpush1.msra.mxu0 0.0
  %3201 = vmatprep.subr.mxu0 0.0
  %3202 = vmatpush1.msra.mxu0 0.0
  %3203 = vmatprep.subr.mxu0 0.0
  %3204 = vmatpush1.msra.mxu0 0.0
  %3205 = vmatprep.subr.mxu0 0.0
  %3206 = vmatpush1.msra.mxu0 0.0
  %3207 = vmatprep.subr.mxu0 0.0
  %3208 = vmatpush1.msra.mxu0 0.0
  %3209 = vmatprep.subr.mxu0 0.0
  %3210 = vmatpush1.msra.mxu0 0.0
  %3211 = vmatprep.subr.mxu0 0.0
  %3212 = vmatpush1.msra.mxu0 0.0
  %3213 = vmatprep.subr.mxu0 0.0
  %3214 = vmatpush1.msra.mxu0 0.0
  %3215 = vmatprep.subr.mxu0 0.0
  %3216 = vmatpush1.msra.mxu0 0.0
  %3217 = vmatprep.subr.mxu0 0.0
  %3218 = vmatpush1.msra.mxu0 0.0
  %3219 = vmatprep.subr.mxu0 0.0
  %3220 = vmatpush1.msra.mxu0 0.0
  %3221 = vmatprep.subr.mxu0 0.0
  %3222 = vmatpush1.msra.mxu0 0.0
  %3223 = vmatprep.subr.mxu0 0.0
  %3224 = vmatpush1.msra.mxu0 0.0
  %3225 = vmatprep.subr.mxu0 0.0
  %3226 = vmatpush1.msra.mxu0 0.0
  %3227 = vmatprep.mubr.f32.mxu0 0.0
  %3228 = vmatmul.mubr.f32.gmra.mrb[0].mxu0 %v3090
  %v3229 = vpop.f32.mrb[0].mxu0
  %v3230 = vadd.f32 0.0, %v3229
  %v3231 = vpop.f32.mrb[0].mxu0
  %v3232 = vadd.f32 0.0, %v3231
  %3233 = vdwg.mxu0
  %v3234 = vadd.f32 %v3055, %v3159
  %v3235 = vadd.f32 %v3056, %v3161
  %v3236 = vadd.f32 %v3057, %v3230
  %v3237 = vadd.f32 %v3058, %v3232
  %v3238 = vmul.f32 %v2875, %v1541
  %v3239 = vmul.f32 %v2876, %v1548
  %v3240 = vmul.f32 %v2877, %v1549
  %v3241 = vmul.f32 %v2878, %v1550
  %v3242 = vmul.f32 %v2879, %v1547
  %s3243 = scalar_lea.vmem %s6, 56
  %v3244 = vld [vmem:[%s3243] sm:$0xff]
  %3250 = vrot.lane.b32.xlu0 %v3238, 112
  %v3251 = vpop.permute.xlu0 %3250
  %3252 = vrot.lane.b32.xlu0 %v3239, 112
  %v3253 = vpop.permute.xlu0 %3252
  %3254 = vrot.lane.b32.xlu0 %v3240, 112
  %v3255 = vpop.permute.xlu0 %3254
  %3256 = vrot.lane.b32.xlu0 %v3241, 112
  %v3257 = vpop.permute.xlu0 %3256
  %3258 = vrot.lane.b32.xlu0 %v3242, 112
  %v3259 = vpop.permute.xlu0 %3258
  %v3260 = vsel %vm145, %v3251, %v3253
  %v3261 = vsel %vm145, %v3253, %v3255
  %v3262 = vsel %vm145, %v3255, %v3257
  %v3263 = vsel %vm145, %v3257, %v3259
  %v3269 = vsel %vm185, %v3244, 0
  %3271 = vmatprep.subr.mxu0 %v3261
  %3272 = vmatpush1.msra.mxu0 %v3260
  %3273 = vmatprep.subr.mxu0 0.0
  %3274 = vmatpush1.msra.mxu0 0.0
  %3275 = vmatprep.subr.mxu0 0.0
  %3276 = vmatpush1.msra.mxu0 0.0
  %3277 = vmatprep.subr.mxu0 0.0
  %3278 = vmatpush1.msra.mxu0 0.0
  %3279 = vmatprep.subr.mxu0 0.0
  %3280 = vmatpush1.msra.mxu0 0.0
  %3281 = vmatprep.subr.mxu0 0.0
  %3282 = vmatpush1.msra.mxu0 0.0
  %3283 = vmatprep.subr.mxu0 0.0
  %3284 = vmatpush1.msra.mxu0 0.0
  %3285 = vmatprep.subr.mxu0 0.0
  %3286 = vmatpush1.msra.mxu0 0.0
  %3287 = vmatprep.subr.mxu0 0.0
  %3288 = vmatpush1.msra.mxu0 0.0
  %3289 = vmatprep.subr.mxu0 0.0
  %3290 = vmatpush1.msra.mxu0 0.0
  %3291 = vmatprep.subr.mxu0 0.0
  %3292 = vmatpush1.msra.mxu0 0.0
  %3293 = vmatprep.subr.mxu0 0.0
  %3294 = vmatpush1.msra.mxu0 0.0
  %3295 = vmatprep.subr.mxu0 0.0
  %3296 = vmatpush1.msra.mxu0 0.0
  %3297 = vmatprep.subr.mxu0 0.0
  %3298 = vmatpush1.msra.mxu0 0.0
  %3299 = vmatprep.subr.mxu0 0.0
  %3300 = vmatpush1.msra.mxu0 0.0
  %3301 = vmatprep.subr.mxu0 0.0
  %3302 = vmatpush1.msra.mxu0 0.0
  %3303 = vmatprep.subr.mxu0 0.0
  %3304 = vmatpush1.msra.mxu0 0.0
  %3305 = vmatprep.subr.mxu0 0.0
  %3306 = vmatpush1.msra.mxu0 0.0
  %3307 = vmatprep.subr.mxu0 0.0
  %3308 = vmatpush1.msra.mxu0 0.0
  %3309 = vmatprep.subr.mxu0 0.0
  %3310 = vmatpush1.msra.mxu0 0.0
  %3311 = vmatprep.subr.mxu0 0.0
  %3312 = vmatpush1.msra.mxu0 0.0
  %3313 = vmatprep.subr.mxu0 0.0
  %3314 = vmatpush1.msra.mxu0 0.0
  %3315 = vmatprep.subr.mxu0 0.0
  %3316 = vmatpush1.msra.mxu0 0.0
  %3317 = vmatprep.subr.mxu0 0.0
  %3318 = vmatpush1.msra.mxu0 0.0
  %3319 = vmatprep.subr.mxu0 0.0
  %3320 = vmatpush1.msra.mxu0 0.0
  %3321 = vmatprep.subr.mxu0 0.0
  %3322 = vmatpush1.msra.mxu0 0.0
  %3323 = vmatprep.subr.mxu0 0.0
  %3324 = vmatpush1.msra.mxu0 0.0
  %3325 = vmatprep.subr.mxu0 0.0
  %3326 = vmatpush1.msra.mxu0 0.0
  %3327 = vmatprep.subr.mxu0 0.0
  %3328 = vmatpush1.msra.mxu0 0.0
  %3329 = vmatprep.subr.mxu0 0.0
  %3330 = vmatpush1.msra.mxu0 0.0
  %3331 = vmatprep.subr.mxu0 0.0
  %3332 = vmatpush1.msra.mxu0 0.0
  %3333 = vmatprep.subr.mxu0 0.0
  %3334 = vmatpush1.msra.mxu0 0.0
  %3335 = vmatprep.mubr.f32.mxu0 0.0
  %3336 = vmatmul.mubr.f32.gmra.mrb[0].mxu0 %v3269
  %v3337 = vpop.f32.mrb[0].mxu0
  %v3338 = vadd.f32 0.0, %v3337
  %v3339 = vpop.f32.mrb[0].mxu0
  %v3340 = vadd.f32 0.0, %v3339
  %3341 = vdwg.mxu0
  %3342 = vmatprep.subr.mxu0 %v3263
  %3343 = vmatpush1.msra.mxu0 %v3262
  %3344 = vmatprep.subr.mxu0 0.0
  %3345 = vmatpush1.msra.mxu0 0.0
  %3346 = vmatprep.subr.mxu0 0.0
  %3347 = vmatpush1.msra.mxu0 0.0
  %3348 = vmatprep.subr.mxu0 0.0
  %3349 = vmatpush1.msra.mxu0 0.0
  %3350 = vmatprep.subr.mxu0 0.0
  %3351 = vmatpush1.msra.mxu0 0.0
  %3352 = vmatprep.subr.mxu0 0.0
  %3353 = vmatpush1.msra.mxu0 0.0
  %3354 = vmatprep.subr.mxu0 0.0
  %3355 = vmatpush1.msra.mxu0 0.0
  %3356 = vmatprep.subr.mxu0 0.0
  %3357 = vmatpush1.msra.mxu0 0.0
  %3358 = vmatprep.subr.mxu0 0.0
  %3359 = vmatpush1.msra.mxu0 0.0
  %3360 = vmatprep.subr.mxu0 0.0
  %3361 = vmatpush1.msra.mxu0 0.0
  %3362 = vmatprep.subr.mxu0 0.0
  %3363 = vmatpush1.msra.mxu0 0.0
  %3364 = vmatprep.subr.mxu0 0.0
  %3365 = vmatpush1.msra.mxu0 0.0
  %3366 = vmatprep.subr.mxu0 0.0
  %3367 = vmatpush1.msra.mxu0 0.0
  %3368 = vmatprep.subr.mxu0 0.0
  %3369 = vmatpush1.msra.mxu0 0.0
  %3370 = vmatprep.subr.mxu0 0.0
  %3371 = vmatpush1.msra.mxu0 0.0
  %3372 = vmatprep.subr.mxu0 0.0
  %3373 = vmatpush1.msra.mxu0 0.0
  %3374 = vmatprep.subr.mxu0 0.0
  %3375 = vmatpush1.msra.mxu0 0.0
  %3376 = vmatprep.subr.mxu0 0.0
  %3377 = vmatpush1.msra.mxu0 0.0
  %3378 = vmatprep.subr.mxu0 0.0
  %3379 = vmatpush1.msra.mxu0 0.0
  %3380 = vmatprep.subr.mxu0 0.0
  %3381 = vmatpush1.msra.mxu0 0.0
  %3382 = vmatprep.subr.mxu0 0.0
  %3383 = vmatpush1.msra.mxu0 0.0
  %3384 = vmatprep.subr.mxu0 0.0
  %3385 = vmatpush1.msra.mxu0 0.0
  %3386 = vmatprep.subr.mxu0 0.0
  %3387 = vmatpush1.msra.mxu0 0.0
  %3388 = vmatprep.subr.mxu0 0.0
  %3389 = vmatpush1.msra.mxu0 0.0
  %3390 = vmatprep.subr.mxu0 0.0
  %3391 = vmatpush1.msra.mxu0 0.0
  %3392 = vmatprep.subr.mxu0 0.0
  %3393 = vmatpush1.msra.mxu0 0.0
  %3394 = vmatprep.subr.mxu0 0.0
  %3395 = vmatpush1.msra.mxu0 0.0
  %3396 = vmatprep.subr.mxu0 0.0
  %3397 = vmatpush1.msra.mxu0 0.0
  %3398 = vmatprep.subr.mxu0 0.0
  %3399 = vmatpush1.msra.mxu0 0.0
  %3400 = vmatprep.subr.mxu0 0.0
  %3401 = vmatpush1.msra.mxu0 0.0
  %3402 = vmatprep.subr.mxu0 0.0
  %3403 = vmatpush1.msra.mxu0 0.0
  %3404 = vmatprep.subr.mxu0 0.0
  %3405 = vmatpush1.msra.mxu0 0.0
  %3406 = vmatprep.mubr.f32.mxu0 0.0
  %3407 = vmatmul.mubr.f32.gmra.mrb[0].mxu0 %v3269
  %v3408 = vpop.f32.mrb[0].mxu0
  %v3409 = vadd.f32 0.0, %v3408
  %v3410 = vpop.f32.mrb[0].mxu0
  %v3411 = vadd.f32 0.0, %v3410
  %3412 = vdwg.mxu0
  %v3413 = vadd.f32 %v3234, %v3338
  %v3414 = vadd.f32 %v3235, %v3340
  %v3415 = vadd.f32 %v3236, %v3409
  %v3416 = vadd.f32 %v3237, %v3411
  %v3417 = vmul.f32 %v2875, %v1756
  %v3418 = vmul.f32 %v2876, %v1763
  %v3419 = vmul.f32 %v2877, %v1764
  %v3420 = vmul.f32 %v2878, %v1765
  %v3421 = vmul.f32 %v2879, %v1762
  %s3422 = scalar_lea.vmem %s6, 64
  %v3423 = vld [vmem:[%s3422] sm:$0xff]
  %3429 = vrot.lane.b32.xlu0 %v3417, 111
  %v3430 = vpop.permute.xlu0 %3429
  %3431 = vrot.lane.b32.xlu0 %v3418, 111
  %v3432 = vpop.permute.xlu0 %3431
  %3433 = vrot.lane.b32.xlu0 %v3419, 111
  %v3434 = vpop.permute.xlu0 %3433
  %3435 = vrot.lane.b32.xlu0 %v3420, 111
  %v3436 = vpop.permute.xlu0 %3435
  %3437 = vrot.lane.b32.xlu0 %v3421, 111
  %v3438 = vpop.permute.xlu0 %3437
  %v3439 = vsel %vm102, %v3430, %v3432
  %v3440 = vsel %vm102, %v3432, %v3434
  %v3441 = vsel %vm102, %v3434, %v3436
  %v3442 = vsel %vm102, %v3436, %v3438
  %v3448 = vsel %vm185, %v3423, 0
  %3450 = vmatprep.subr.mxu0 %v3440
  %3451 = vmatpush1.msra.mxu0 %v3439
  %3452 = vmatprep.subr.mxu0 0.0
  %3453 = vmatpush1.msra.mxu0 0.0
  %3454 = vmatprep.subr.mxu0 0.0
  %3455 = vmatpush1.msra.mxu0 0.0
  %3456 = vmatprep.subr.mxu0 0.0
  %3457 = vmatpush1.msra.mxu0 0.0
  %3458 = vmatprep.subr.mxu0 0.0
  %3459 = vmatpush1.msra.mxu0 0.0
  %3460 = vmatprep.subr.mxu0 0.0
  %3461 = vmatpush1.msra.mxu0 0.0
  %3462 = vmatprep.subr.mxu0 0.0
  %3463 = vmatpush1.msra.mxu0 0.0
  %3464 = vmatprep.subr.mxu0 0.0
  %3465 = vmatpush1.msra.mxu0 0.0
  %3466 = vmatprep.subr.mxu0 0.0
  %3467 = vmatpush1.msra.mxu0 0.0
  %3468 = vmatprep.subr.mxu0 0.0
  %3469 = vmatpush1.msra.mxu0 0.0
  %3470 = vmatprep.subr.mxu0 0.0
  %3471 = vmatpush1.msra.mxu0 0.0
  %3472 = vmatprep.subr.mxu0 0.0
  %3473 = vmatpush1.msra.mxu0 0.0
  %3474 = vmatprep.subr.mxu0 0.0
  %3475 = vmatpush1.msra.mxu0 0.0
  %3476 = vmatprep.subr.mxu0 0.0
  %3477 = vmatpush1.msra.mxu0 0.0
  %3478 = vmatprep.subr.mxu0 0.0
  %3479 = vmatpush1.msra.mxu0 0.0
  %3480 = vmatprep.subr.mxu0 0.0
  %3481 = vmatpush1.msra.mxu0 0.0
  %3482 = vmatprep.subr.mxu0 0.0
  %3483 = vmatpush1.msra.mxu0 0.0
  %3484 = vmatprep.subr.mxu0 0.0
  %3485 = vmatpush1.msra.mxu0 0.0
  %3486 = vmatprep.subr.mxu0 0.0
  %3487 = vmatpush1.msra.mxu0 0.0
  %3488 = vmatprep.subr.mxu0 0.0
  %3489 = vmatpush1.msra.mxu0 0.0
  %3490 = vmatprep.subr.mxu0 0.0
  %3491 = vmatpush1.msra.mxu0 0.0
  %3492 = vmatprep.subr.mxu0 0.0
  %3493 = vmatpush1.msra.mxu0 0.0
  %3494 = vmatprep.subr.mxu0 0.0
  %3495 = vmatpush1.msra.mxu0 0.0
  %3496 = vmatprep.subr.mxu0 0.0
  %3497 = vmatpush1.msra.mxu0 0.0
  %3498 = vmatprep.subr.mxu0 0.0
  %3499 = vmatpush1.msra.mxu0 0.0
  %3500 = vmatprep.subr.mxu0 0.0
  %3501 = vmatpush1.msra.mxu0 0.0
  %3502 = vmatprep.subr.mxu0 0.0
  %3503 = vmatpush1.msra.mxu0 0.0
  %3504 = vmatprep.subr.mxu0 0.0
  %3505 = vmatpush1.msra.mxu0 0.0
  %3506 = vmatprep.subr.mxu0 0.0
  %3507 = vmatpush1.msra.mxu0 0.0
  %3508 = vmatprep.subr.mxu0 0.0
  %3509 = vmatpush1.msra.mxu0 0.0
  %3510 = vmatprep.subr.mxu0 0.0
  %3511 = vmatpush1.msra.mxu0 0.0
  %3512 = vmatprep.subr.mxu0 0.0
  %3513 = vmatpush1.msra.mxu0 0.0
  %3514 = vmatprep.mubr.f32.mxu0 0.0
  %3515 = vmatmul.mubr.f32.gmra.mrb[0].mxu0 %v3448
  %v3516 = vpop.f32.mrb[0].mxu0
  %v3517 = vadd.f32 0.0, %v3516
  %v3518 = vpop.f32.mrb[0].mxu0
  %v3519 = vadd.f32 0.0, %v3518
  %3520 = vdwg.mxu0
  %3521 = vmatprep.subr.mxu0 %v3442
  %3522 = vmatpush1.msra.mxu0 %v3441
  %3523 = vmatprep.subr.mxu0 0.0
  %3524 = vmatpush1.msra.mxu0 0.0
  %3525 = vmatprep.subr.mxu0 0.0
  %3526 = vmatpush1.msra.mxu0 0.0
  %3527 = vmatprep.subr.mxu0 0.0
  %3528 = vmatpush1.msra.mxu0 0.0
  %3529 = vmatprep.subr.mxu0 0.0
  %3530 = vmatpush1.msra.mxu0 0.0
  %3531 = vmatprep.subr.mxu0 0.0
  %3532 = vmatpush1.msra.mxu0 0.0
  %3533 = vmatprep.subr.mxu0 0.0
  %3534 = vmatpush1.msra.mxu0 0.0
  %3535 = vmatprep.subr.mxu0 0.0
  %3536 = vmatpush1.msra.mxu0 0.0
  %3537 = vmatprep.subr.mxu0 0.0
  %3538 = vmatpush1.msra.mxu0 0.0
  %3539 = vmatprep.subr.mxu0 0.0
  %3540 = vmatpush1.msra.mxu0 0.0
  %3541 = vmatprep.subr.mxu0 0.0
  %3542 = vmatpush1.msra.mxu0 0.0
  %3543 = vmatprep.subr.mxu0 0.0
  %3544 = vmatpush1.msra.mxu0 0.0
  %3545 = vmatprep.subr.mxu0 0.0
  %3546 = vmatpush1.msra.mxu0 0.0
  %3547 = vmatprep.subr.mxu0 0.0
  %3548 = vmatpush1.msra.mxu0 0.0
  %3549 = vmatprep.subr.mxu0 0.0
  %3550 = vmatpush1.msra.mxu0 0.0
  %3551 = vmatprep.subr.mxu0 0.0
  %3552 = vmatpush1.msra.mxu0 0.0
  %3553 = vmatprep.subr.mxu0 0.0
  %3554 = vmatpush1.msra.mxu0 0.0
  %3555 = vmatprep.subr.mxu0 0.0
  %3556 = vmatpush1.msra.mxu0 0.0
  %3557 = vmatprep.subr.mxu0 0.0
  %3558 = vmatpush1.msra.mxu0 0.0
  %3559 = vmatprep.subr.mxu0 0.0
  %3560 = vmatpush1.msra.mxu0 0.0
  %3561 = vmatprep.subr.mxu0 0.0
  %3562 = vmatpush1.msra.mxu0 0.0
  %3563 = vmatprep.subr.mxu0 0.0
  %3564 = vmatpush1.msra.mxu0 0.0
  %3565 = vmatprep.subr.mxu0 0.0
  %3566 = vmatpush1.msra.mxu0 0.0
  %3567 = vmatprep.subr.mxu0 0.0
  %3568 = vmatpush1.msra.mxu0 0.0
  %3569 = vmatprep.subr.mxu0 0.0
  %3570 = vmatpush1.msra.mxu0 0.0
  %3571 = vmatprep.subr.mxu0 0.0
  %3572 = vmatpush1.msra.mxu0 0.0
  %3573 = vmatprep.subr.mxu0 0.0
  %3574 = vmatpush1.msra.mxu0 0.0
  %3575 = vmatprep.subr.mxu0 0.0
  %3576 = vmatpush1.msra.mxu0 0.0
  %3577 = vmatprep.subr.mxu0 0.0
  %3578 = vmatpush1.msra.mxu0 0.0
  %3579 = vmatprep.subr.mxu0 0.0
  %3580 = vmatpush1.msra.mxu0 0.0
  %3581 = vmatprep.subr.mxu0 0.0
  %3582 = vmatpush1.msra.mxu0 0.0
  %3583 = vmatprep.subr.mxu0 0.0
  %3584 = vmatpush1.msra.mxu0 0.0
  %3585 = vmatprep.mubr.f32.mxu0 0.0
  %3586 = vmatmul.mubr.f32.gmra.mrb[0].mxu0 %v3448
  %v3587 = vpop.f32.mrb[0].mxu0
  %v3588 = vadd.f32 0.0, %v3587
  %v3589 = vpop.f32.mrb[0].mxu0
  %v3590 = vadd.f32 0.0, %v3589
  %3591 = vdwg.mxu0
  %v3592 = vadd.f32 %v3413, %v3517
  %v3593 = vadd.f32 %v3414, %v3519
  %v3594 = vadd.f32 %v3415, %v3588
  %v3595 = vadd.f32 %v3416, %v3590
  %3597 = vset.pattern.permute.xlu0 0
  %3598 = vperm.xlu0 %3597, %v2009
  %v3599 = vpop.permute.xlu0 %3598
  %v3601 = vadd.f32 %v3592, %v3599
  %v3602 = vadd.f32 %v3593, %v3599
  %v3603 = vadd.f32 %v3594, %v3599
  %v3604 = vadd.f32 %v3595, %v3599
  %v3605 = vadd.f32 %v3601, %v3602
  %v3606 = vadd.f32 %v3605, %v3603
  %v3607 = vadd.f32 %v3606, %v3604
  %3608 = vadd.xlane.f32.xlu0 %v3607
  %v3609 = vpop.xlane.xlu0 %3608
  %v3610 = vmul.f32 %v3609, 0.001953125
  %v3611 = vmul.f32 %v3601, %v3601
  %v3612 = vmul.f32 %v3602, %v3602
  %v3613 = vmul.f32 %v3603, %v3603
  %v3614 = vmul.f32 %v3604, %v3604
  %v3615 = vadd.f32 %v3611, %v3612
  %v3616 = vadd.f32 %v3615, %v3613
  %v3617 = vadd.f32 %v3616, %v3614
  %3618 = vadd.xlane.f32.xlu0 %v3617
  %v3619 = vpop.xlane.xlu0 %3618
  %v3620 = vmul.f32 %v3619, 0.001953125
  %v3621 = vmul.f32 %v3610, %v3610
  %v3622 = vsub.f32 %v3620, %v3621
  %v3623 = vmax.f32 %v3622, 0.0
  %v3624 = vadd.f32 %v3623, 1e-05
  %v3625 = vrsqrt.pop %v3624
  %v3626 = vmul.f32 %v2010, %v3625
  %v3627 = vmul.f32 %v3610, %v3626
  %v3628 = vsub.f32 %v2011, %v3627
  %3630 = vset.pattern.permute.xlu0 0
  %3631 = vperm.xlu0 %3630, %v3626
  %v3632 = vpop.permute.xlu0 %3631
  %v3634 = vmul.f32 %v3601, %v3632
  %v3635 = vmul.f32 %v3602, %v3632
  %v3636 = vmul.f32 %v3603, %v3632
  %v3637 = vmul.f32 %v3604, %v3632
  %3639 = vset.pattern.permute.xlu0 0
  %3640 = vperm.xlu0 %3639, %v3628
  %v3641 = vpop.permute.xlu0 %3640
  %v3643 = vadd.f32 %v3634, %v3641
  %v3644 = vadd.f32 %v3635, %v3641
  %v3645 = vadd.f32 %v3636, %v3641
  %v3646 = vadd.f32 %v3637, %v3641
  %v3647 = vmax.f32 %v3643, 0.0
  %v3648 = vmax.f32 %v3644, 0.0
  %v3649 = vmax.f32 %v3645, 0.0
  %v3650 = vmax.f32 %v3646, 0.0
  %3651 = vst [vmem:[%s10] sm:$0xff] %v3647
  %3652 = vst [vmem:[%s10 + $0x8] sm:$0xff] %v3648
  %s3653 = scalar_lea.vmem %s10, 16
  %3654 = vst [vmem:[%s3653] sm:$0xff] %v3649
  %3655 = vst [vmem:[%s3653 + $0x8] sm:$0xff] %v3650
  // Predicated region
  $region42: #{conv_block_forward.1} parent=0 // pred_check
    _
  $region43: #{conv_block_forward.1} parent=0 // pred_check_branch
    %3657 = sbr.rel (0) target = $region45
  $region44: #{conv_block_forward.1} parent=0 // pred_region
    _
  $region45: #{conv_block_forward.1} parent=0 // pred_fallthru
    _
  // Predicated region
  $region46: #{conv_block_forward.1} parent=0 // pred_check
    _
  $region47: #{conv_block_forward.1} parent=0 // pred_check_branch
    %3659 = sbr.rel (0) target = $region49
  $region48: #{conv_block_forward.1} parent=0 // pred_region
    _
  $region49: #{conv_block_forward.1} parent=0 // pred_fallthru
    _

</llo_original>
